<compile_context>
chip_gen: v5e
topology: v5e:2x2
jax: 0.10.0
libtpu: 0.0.40
codegen_flags: <defaults>
</compile_context>

<pallas_src>
import functools

import jax
import jax.numpy as jnp
from jax.experimental import pallas as pl
from jax.experimental.pallas import tpu as pltpu

EPS = 1e-5  # PyTorch BatchNorm2d default


def _pair(v):
    return (v, v) if isinstance(v, int) else (int(v[0]), int(v[1]))


def _vmem_cap_bytes():
    """Usable scoped-VMEM budget: ~3/4 of physical VMEM, never above 96 MiB.

    v7x has only 64 MiB per TensorCore, so never request anywhere near the
    physical size — the row tiling below keeps the working set inside this cap.
    """
    cap = 64 << 20
    try:
        cap = int(pltpu.get_tpu_info().vmem_capacity_bytes)
    except Exception:
        pass
    return max(min(cap * 3 // 4, 96 << 20), 16 << 20)


def _vmem_hint(est_bytes, cap_bytes):
    """Only override the default scoped-VMEM limit when the estimate needs it."""
    if est_bytes <= (16 << 20):
        return None
    return min(int(est_bytes * 5 // 4), cap_bytes)


def _tile_ok(d, out_h, out_w, cout, lane):
    """Row-tile validity: blocks must satisfy the (8, *) sublane rule and the
    lane-packed pass-2 view must tile evenly."""
    if out_h % d != 0:
        return False
    if d == out_h:
        return True
    m = d * out_w
    if m % 8 != 0:
        return False
    if (m * cout) % lane != 0:
        return False
    return ((m * cout) // lane) % 8 == 0


def _select_tile_rows(out_h, out_w, wp, cin, cout, lane, x_itemsize,
                      vmem_cap, x_block_bytes):
    """Largest valid divisor of out_h whose per-tile working set fits the
    per-generation VMEM budget (bigger tiles on v5e/v6e, smaller on v7x)."""
    budget = max(vmem_cap - 2 * x_block_bytes - (4 << 20), 2 << 20)
    per_row = (out_w * cout * 4 * 2          # y tile (f32), double-buffered
               + out_w * cout * 4 * 3        # acc / relu / y*y temporaries
               + wp * cin * x_itemsize * 2   # per-kh slab + relayout copy
               + out_w * cin * 4 * 2)        # tap value + (m, cin) reshape
    max_rows = max(int(budget // max(per_row, 1)), 1)
    valid = [d for d in range(1, out_h + 1)
             if _tile_ok(d, out_h, out_w, cout, lane)]
    fitting = [d for d in valid if d <= max_rows]
    return max(fitting) if fitting else min(valid)


# ---------------------------------------------------------------------------
# Pass 1: Conv2d (per-tap Cin x Cout matmuls, f32 accumulation) + bias + ReLU
#         + per-channel BN partial statistics accumulated across row tiles.
#         Grid: (batch, row_tiles).  The padded image stays VMEM-resident per
#         batch element; each step only touches a tile of output rows.
# ---------------------------------------------------------------------------
def _conv_relu_stats_kernel(x_ref, w_ref, b_ref, y_ref, s_ref, ss_ref, *,
                            ksize_h, ksize_w, dil_h, dil_w, tile_rows, out_w):
    t = pl.program_id(1)
    row0 = pl.multiple_of(t * tile_rows, tile_rows)
    cin = w_ref.shape[1]
    cout = w_ref.shape[2]
    m = tile_rows * out_w

    acc = jnp.zeros((m, cout), jnp.float32)
    for ih in range(ksize_h):
        # One slab load per kernel row; the kw taps below are in-register
        # slices of it (avoids re-reading VMEM at misaligned offsets per tap).
        slab = x_ref[pl.ds(row0 + ih * dil_h, tile_rows), :, :]
        for iw in range(ksize_w):
            off = iw * dil_w
            tap = slab[:, off:off + out_w, :].reshape(m, cin)
            # Per-tap (Cin x Cout) MXU matmul accumulated in f32; K = Cin keeps
            # the MXU fed without building the (M, KH*KW*Cin) im2col slab.
            acc = acc + jnp.dot(tap.astype(w_ref.dtype),
                                w_ref[ih * ksize_w + iw],
                                preferred_element_type=jnp.float32)

    y = jnp.maximum(acc + b_ref[...], 0.0)              # conv bias + ReLU

    # One-pass BN statistics while y is live, accumulated across the spatial
    # grid axis in the output-resident (1, Cout) blocks.
    @pl.when(t == 0)
    def _():
        s_ref[...] = jnp.zeros_like(s_ref)
        ss_ref[...] = jnp.zeros_like(ss_ref)

    s_ref[...] += jnp.sum(y, axis=0, keepdims=True)
    ss_ref[...] += jnp.sum(y * y, axis=0, keepdims=True)

    y_ref[...] = y.astype(y_ref.dtype)


# ---------------------------------------------------------------------------
# Pass 2: BatchNorm apply as a single per-channel FMA on a 128-lane-dense view.
# ---------------------------------------------------------------------------
def _bn_apply_kernel(y_ref, scale_ref, shift_ref, o_ref):
    o_ref[...] = (y_ref[...] * scale_ref[...] + shift_ref[...]).astype(o_ref.dtype)


def prepare_conv_bn_params(weight, bias, gamma, beta, *, compute_dtype=jnp.float32):
    """One-time repack of module parameters (do this at init, not per call)."""
    cout, cin, kh, kw = weight.shape
    # (Cout, Cin, KH, KW) -> (KH*KW, Cin, Cout): one (Cin, Cout) matmul per tap,
    # accumulated in-kernel.  compute_dtype=jnp.bfloat16 trades ~3x MXU time
    # for ~1e-2 absolute error (loosen the test tolerance if enabled).
    w3d = jnp.transpose(weight, (2, 3, 1, 0)).reshape(kh * kw, cin, cout)
    w3d = w3d.astype(compute_dtype)
    return dict(w3d=w3d, b2d=bias.reshape(1, cout).astype(jnp.float32),
                gamma=gamma, beta=beta,
                kh=int(kh), kw=int(kw), cin=int(cin), cout=int(cout))


def conv2d_relu_bn(x_nchw, params, *, padding, dilation=1, tile_rows=None):
    """Forward of Conv2DReLUBN (training-mode BN).  x_nchw: (N, Cin, H, W)."""
    n, cin, h, w = x_nchw.shape
    assert cin == params['cin']
    kh, kw, cout = params['kh'], params['kw'], params['cout']
    ph, pw = _pair(padding)
    dh, dw = _pair(dilation)

    hp, wp = h + 2 * ph, w + 2 * pw
    out_h = hp - dh * (kh - 1)
    out_w = wp - dw * (kw - 1)
    assert out_h > 0 and out_w > 0, "conv window does not fit the padded input"
    hw = out_h * out_w

    # Lane-packing factor for the BN-apply pass: view y as (*, 128) when the
    # channel count divides 128 so loads/stores are full-lane dense.
    lane = 128 if (cout < 128 and 128 % cout == 0
                   and (out_w * cout) % 128 == 0) else cout

    # Layout glue: NCHW -> NHWC (channels on lanes) + spatial zero padding.
    # TODO(synk): when Conv2DReLUBN layers are chained (as in LiteLoc), keep
    # activations NHWC (and pre-padded) end-to-end and fold halo handling into
    # the kernel DMA instead of jnp.pad, saving an HBM round trip per layer.
    x = jnp.transpose(x_nchw, (0, 2, 3, 1))
    x = jnp.pad(x, ((0, 0), (ph, ph), (pw, pw), (0, 0)))

    itemsize = jnp.dtype(x.dtype).itemsize
    cap = _vmem_cap_bytes()
    x_block_bytes = hp * wp * cin * itemsize

    if tile_rows is None:
        tile_rows = _select_tile_rows(out_h, out_w, wp, cin, cout, lane,
                                      itemsize, cap, x_block_bytes)
    assert _tile_ok(tile_rows, out_h, out_w, cout, lane), tile_rows
    n_tiles = out_h // tile_rows
    m = tile_rows * out_w

    w_itemsize = jnp.dtype(params['w3d'].dtype).itemsize
    est1 = (2 * x_block_bytes
            + 2 * kh * kw * cin * cout * w_itemsize
            + 2 * m * cout * 4               # y tile, double-buffered
            + 3 * m * cout * 4               # acc / relu / y*y temporaries
            + 2 * tile_rows * wp * cin * 4   # per-kh slab (+ copy)
            + 2 * m * cin * 4                # tap + reshape
            + (1 << 20))

    kernel1 = functools.partial(
        _conv_relu_stats_kernel, ksize_h=kh, ksize_w=kw, dil_h=dh, dil_w=dw,
        tile_rows=tile_rows, out_w=out_w)

    y, psum, psumsq = pl.pallas_call(
        kernel1,
        grid=(n, n_tiles),
        in_specs=[
            pl.BlockSpec((None, hp, wp, cin), lambda i, t: (i, 0, 0, 0)),
            pl.BlockSpec((kh * kw, cin, cout), lambda i, t: (0, 0, 0)),
            pl.BlockSpec((1, cout), lambda i, t: (0, 0)),
        ],
        out_specs=(
            pl.BlockSpec((None, m, cout), lambda i, t: (i, t, 0)),
            pl.BlockSpec((None, 1, cout), lambda i, t: (i, 0, 0)),
            pl.BlockSpec((None, 1, cout), lambda i, t: (i, 0, 0)),
        ),
        out_shape=(
            jax.ShapeDtypeStruct((n, hw, cout), jnp.float32),
            jax.ShapeDtypeStruct((n, 1, cout), jnp.float32),
            jax.ShapeDtypeStruct((n, 1, cout), jnp.float32),
        ),
        compiler_params=pltpu.CompilerParams(
            # Batch axis is parallel (megacore); the row-tile axis carries the
            # BN statistic accumulators -> arbitrary.
            dimension_semantics=("parallel", "arbitrary"),
            vmem_limit_bytes=_vmem_hint(est1, cap)),
    )(x, params['w3d'], params['b2d'])

    # Tiny per-channel reduction + folding of gamma/beta into a single
    # scale/shift pair (Cout-length vectors -> negligible, plain JAX).
    cnt = float(n * hw)
    mean = jnp.sum(psum, axis=(0, 1)) / cnt
    var = jnp.sum(psumsq, axis=(0, 1)) / cnt - mean * mean   # biased (train mode)
    var = jnp.maximum(var, 0.0)        # guard against catastrophic cancellation
    scale = params['gamma'] * jax.lax.rsqrt(var + EPS)
    shift = params['beta'] - mean * scale

    # Lane-dense view of y for the BN-apply pass: (N, HW, Cout) and
    # (N, HW*Cout/lane, lane) share the same row-major bytes -> free reshape.
    reps = lane // cout
    p_rows = hw * cout // lane
    p_tile = m * cout // lane
    y_p = y.reshape(n, p_rows, lane)
    scale_l = jnp.tile(scale, reps).reshape(1, lane)
    shift_l = jnp.tile(shift, reps).reshape(1, lane)

    out_dtype = x_nchw.dtype
    # Alias the output onto y (no extra HBM buffer) when dtypes allow it.
    # TODO(synk): in the chained-network case, fuse this per-channel FMA into
    # the next layer's tap loads instead and skip this HBM pass entirely.
    alias = {0: 0} if jnp.dtype(out_dtype) == jnp.dtype(jnp.float32) else {}

    est2 = (2 * p_tile * lane * 4
            + 2 * p_tile * lane * jnp.dtype(out_dtype).itemsize
            + 4 * lane * 4 + (1 << 20))

    out = pl.pallas_call(
        _bn_apply_kernel,
        grid=(n, n_tiles),
        in_specs=[
            pl.BlockSpec((None, p_tile, lane), lambda i, t: (i, t, 0)),
            pl.BlockSpec((1, lane), lambda i, t: (0, 0)),
            pl.BlockSpec((1, lane), lambda i, t: (0, 0)),
        ],
        out_specs=pl.BlockSpec((None, p_tile, lane), lambda i, t: (i, t, 0)),
        out_shape=jax.ShapeDtypeStruct((n, p_rows, lane), out_dtype),
        input_output_aliases=alias,
        compiler_params=pltpu.CompilerParams(
            dimension_semantics=("parallel", "parallel"),
            vmem_limit_bytes=_vmem_hint(est2, cap)),
    )(y_p, scale_l, shift_l)

    # Back to the module's NCHW interface (boundary only).
    return jnp.transpose(out.reshape(n, out_h, out_w, cout), (0, 3, 1, 2))


def _reference(x_nchw, weight, bias, gamma, beta, padding, dilation):
    """Pure-JAX reference: PyTorch Conv2d + ReLU + BatchNorm2d (training mode)."""
    ph, pw = _pair(padding)
    dh, dw = _pair(dilation)
    y = jax.lax.conv_general_dilated(
        x_nchw.astype(jnp.float32), weight.astype(jnp.float32),
        window_strides=(1, 1), padding=[(ph, ph), (pw, pw)],
        rhs_dilation=(dh, dw),
        dimension_numbers=('NCHW', 'OIHW', 'NCHW'))
    y = y + bias.reshape(1, -1, 1, 1)
    y = jnp.maximum(y, 0.0)
    mean = jnp.mean(y, axis=(0, 2, 3), keepdims=True)
    var = jnp.mean((y - mean) ** 2, axis=(0, 2, 3), keepdims=True)
    y = (y - mean) / jnp.sqrt(var + EPS)
    return y * gamma.reshape(1, -1, 1, 1) + beta.reshape(1, -1, 1, 1)


if __name__ == "__main__":
    # Small shapes consistent with the module (kernel_size=3, stride=1).
    N, Cin, H, W = 2, 4, 16, 16
    Cout, K = 8, 3

    key = jax.random.PRNGKey(0)
    kx, kwt, kb = jax.random.split(key, 3)

    x = jax.random.normal(kx, (N, Cin, H, W), jnp.float32)

    # kaiming_normal_(fan_in, relu): std = sqrt(2 / fan_in), fan_in = Cin*K*K
    fan_in = Cin * K * K
    weight = jax.random.normal(kwt, (Cout, Cin, K, K), jnp.float32) * jnp.sqrt(2.0 / fan_in)
    # Conv2d default bias init: U(-1/sqrt(fan_in), 1/sqrt(fan_in))
    bound = 1.0 / jnp.sqrt(float(fan_in))
    bias = jax.random.uniform(kb, (Cout,), jnp.float32, -bound, bound)
    # BatchNorm2d default affine params
    gamma = jnp.ones((Cout,), jnp.float32)
    beta = jnp.zeros((Cout,), jnp.float32)

    params = prepare_conv_bn_params(weight, bias, gamma, beta)

    # Standard Conv2DReLUBN (pad=1, dil=1), a dilated CFE variant (pad=2,
    # dil=2), and a forced multi-tile spatial grid to exercise the row-tiling
    # + BN-statistic accumulation path.
    for pad, dil, tile in ((1, 1, None), (2, 2, None), (1, 1, 8)):
        fwd = jax.jit(functools.partial(conv2d_relu_bn, params=params,
                                        padding=pad, dilation=dil,
                                        tile_rows=tile))
        out = jax.block_until_ready(fwd(x))
        ref = _reference(x, weight, bias, gamma, beta, pad, dil)
        assert out.shape == ref.shape, (out.shape, ref.shape)
        err = float(jnp.max(jnp.abs(out - ref)))
        assert err < 1e-4, err

    print("KERNEL_OK")
</pallas_src>

<mosaic_0001>
module attributes {stable_mosaic.version = 11 : i64} {
  func.func @_conv_relu_stats_kernel(%arg0: i32, %arg1: i32, %arg2: memref<1x18x18x4xf32, #tpu.memory_space<vmem>>, %arg3: memref<9x4x8xf32, #tpu.memory_space<vmem>>, %arg4: memref<1x8xf32, #tpu.memory_space<vmem>>, %arg5: memref<1x256x8xf32, #tpu.memory_space<vmem>>, %arg6: memref<1x1x8xf32, #tpu.memory_space<vmem>>, %arg7: memref<1x1x8xf32, #tpu.memory_space<vmem>>) attributes {dimension_semantics = [#tpu.dimension_semantics<parallel>, #tpu.dimension_semantics<arbitrary>], iteration_bounds = array<i64: 2, 1>, scalar_prefetch = 0 : i64, scratch_operands = 0 : i64, tpu.core_type = #tpu.core_type<tc>, window_params = [{transform_indices = @transform_0, window_bounds = array<i64: 1, 18, 18, 4>}, {pipeline_mode = #tpu.pipeline_mode<synchronous>, transform_indices = @transform_1, window_bounds = array<i64: 9, 4, 8>}, {pipeline_mode = #tpu.pipeline_mode<synchronous>, transform_indices = @transform_2, window_bounds = array<i64: 1, 8>}, {transform_indices = @transform_3, window_bounds = array<i64: 1, 256, 8>}, {transform_indices = @transform_4, window_bounds = array<i64: 1, 1, 8>}, {transform_indices = @transform_5, window_bounds = array<i64: 1, 1, 8>}]} {
    %c16_i32 = arith.constant 16 : i32
    %0 = arith.muli %arg1, %c16_i32 : i32
    %1 = tpu.assume_multiple %0, 16 : i32
    %cst = arith.constant 0.000000e+00 : f32
    %2 = vector.broadcast %cst : f32 to vector<256x8xf32>
    %c0_i32 = arith.constant 0 : i32
    %3 = arith.addi %1, %c0_i32 : i32
    %c0 = arith.constant 0 : index
    %4 = arith.index_cast %3 : i32 to index
    %c0_0 = arith.constant 0 : index
    %c0_1 = arith.constant 0 : index
    %5 = vector.load %arg2[%c0, %4, %c0_0, %c0_1] : memref<1x18x18x4xf32, #tpu.memory_space<vmem>>, vector<1x16x18x4xf32>
    %6 = vector.shape_cast %5 : vector<1x16x18x4xf32> to vector<16x18x4xf32>
    %7 = vector.extract_strided_slice %6 {offsets = [0, 0, 0], sizes = [16, 16, 4], strides = [1, 1, 1]} : vector<16x18x4xf32> to vector<16x16x4xf32>
    %8 = vector.shape_cast %7 : vector<16x16x4xf32> to vector<256x4xf32>
    %c0_2 = arith.constant 0 : index
    %c0_3 = arith.constant 0 : index
    %c0_4 = arith.constant 0 : index
    %9 = vector.load %arg3[%c0_2, %c0_3, %c0_4] : memref<9x4x8xf32, #tpu.memory_space<vmem>>, vector<1x4x8xf32>
    %10 = vector.shape_cast %9 : vector<1x4x8xf32> to vector<4x8xf32>
    %cst_5 = arith.constant dense<0.000000e+00> : vector<256x8xf32>
    %11 = tpu.matmul %8, %10, %cst_5 {dimension_numbers = #tpu.dot_dimension_numbers<[1], [0], [0], [1], [0, 0, 1, 1], [], []>} : vector<256x4xf32>, vector<4x8xf32>, vector<256x8xf32> -> vector<256x8xf32>
    %12 = arith.addf %2, %11 : vector<256x8xf32>
    %13 = vector.extract_strided_slice %6 {offsets = [0, 1, 0], sizes = [16, 16, 4], strides = [1, 1, 1]} : vector<16x18x4xf32> to vector<16x16x4xf32>
    %14 = vector.shape_cast %13 : vector<16x16x4xf32> to vector<256x4xf32>
    %c1 = arith.constant 1 : index
    %c0_6 = arith.constant 0 : index
    %c0_7 = arith.constant 0 : index
    %15 = vector.load %arg3[%c1, %c0_6, %c0_7] : memref<9x4x8xf32, #tpu.memory_space<vmem>>, vector<1x4x8xf32>
    %16 = vector.shape_cast %15 : vector<1x4x8xf32> to vector<4x8xf32>
    %cst_8 = arith.constant dense<0.000000e+00> : vector<256x8xf32>
    %17 = tpu.matmul %14, %16, %cst_8 {dimension_numbers = #tpu.dot_dimension_numbers<[1], [0], [0], [1], [0, 0, 1, 1], [], []>} : vector<256x4xf32>, vector<4x8xf32>, vector<256x8xf32> -> vector<256x8xf32>
    %18 = arith.addf %12, %17 : vector<256x8xf32>
    %19 = vector.extract_strided_slice %6 {offsets = [0, 2, 0], sizes = [16, 16, 4], strides = [1, 1, 1]} : vector<16x18x4xf32> to vector<16x16x4xf32>
    %20 = vector.shape_cast %19 : vector<16x16x4xf32> to vector<256x4xf32>
    %c2 = arith.constant 2 : index
    %c0_9 = arith.constant 0 : index
    %c0_10 = arith.constant 0 : index
    %21 = vector.load %arg3[%c2, %c0_9, %c0_10] : memref<9x4x8xf32, #tpu.memory_space<vmem>>, vector<1x4x8xf32>
    %22 = vector.shape_cast %21 : vector<1x4x8xf32> to vector<4x8xf32>
    %cst_11 = arith.constant dense<0.000000e+00> : vector<256x8xf32>
    %23 = tpu.matmul %20, %22, %cst_11 {dimension_numbers = #tpu.dot_dimension_numbers<[1], [0], [0], [1], [0, 0, 1, 1], [], []>} : vector<256x4xf32>, vector<4x8xf32>, vector<256x8xf32> -> vector<256x8xf32>
    %24 = arith.addf %18, %23 : vector<256x8xf32>
    %c1_i32 = arith.constant 1 : i32
    %25 = arith.addi %1, %c1_i32 : i32
    %c0_12 = arith.constant 0 : index
    %26 = arith.index_cast %25 : i32 to index
    %c0_13 = arith.constant 0 : index
    %c0_14 = arith.constant 0 : index
    %27 = vector.load %arg2[%c0_12, %26, %c0_13, %c0_14] : memref<1x18x18x4xf32, #tpu.memory_space<vmem>>, vector<1x16x18x4xf32>
    %28 = vector.shape_cast %27 : vector<1x16x18x4xf32> to vector<16x18x4xf32>
    %29 = vector.extract_strided_slice %28 {offsets = [0, 0, 0], sizes = [16, 16, 4], strides = [1, 1, 1]} : vector<16x18x4xf32> to vector<16x16x4xf32>
    %30 = vector.shape_cast %29 : vector<16x16x4xf32> to vector<256x4xf32>
    %c3 = arith.constant 3 : index
    %c0_15 = arith.constant 0 : index
    %c0_16 = arith.constant 0 : index
    %31 = vector.load %arg3[%c3, %c0_15, %c0_16] : memref<9x4x8xf32, #tpu.memory_space<vmem>>, vector<1x4x8xf32>
    %32 = vector.shape_cast %31 : vector<1x4x8xf32> to vector<4x8xf32>
    %cst_17 = arith.constant dense<0.000000e+00> : vector<256x8xf32>
    %33 = tpu.matmul %30, %32, %cst_17 {dimension_numbers = #tpu.dot_dimension_numbers<[1], [0], [0], [1], [0, 0, 1, 1], [], []>} : vector<256x4xf32>, vector<4x8xf32>, vector<256x8xf32> -> vector<256x8xf32>
    %34 = arith.addf %24, %33 : vector<256x8xf32>
    %35 = vector.extract_strided_slice %28 {offsets = [0, 1, 0], sizes = [16, 16, 4], strides = [1, 1, 1]} : vector<16x18x4xf32> to vector<16x16x4xf32>
    %36 = vector.shape_cast %35 : vector<16x16x4xf32> to vector<256x4xf32>
    %c4 = arith.constant 4 : index
    %c0_18 = arith.constant 0 : index
    %c0_19 = arith.constant 0 : index
    %37 = vector.load %arg3[%c4, %c0_18, %c0_19] : memref<9x4x8xf32, #tpu.memory_space<vmem>>, vector<1x4x8xf32>
    %38 = vector.shape_cast %37 : vector<1x4x8xf32> to vector<4x8xf32>
    %cst_20 = arith.constant dense<0.000000e+00> : vector<256x8xf32>
    %39 = tpu.matmul %36, %38, %cst_20 {dimension_numbers = #tpu.dot_dimension_numbers<[1], [0], [0], [1], [0, 0, 1, 1], [], []>} : vector<256x4xf32>, vector<4x8xf32>, vector<256x8xf32> -> vector<256x8xf32>
    %40 = arith.addf %34, %39 : vector<256x8xf32>
    %41 = vector.extract_strided_slice %28 {offsets = [0, 2, 0], sizes = [16, 16, 4], strides = [1, 1, 1]} : vector<16x18x4xf32> to vector<16x16x4xf32>
    %42 = vector.shape_cast %41 : vector<16x16x4xf32> to vector<256x4xf32>
    %c5 = arith.constant 5 : index
    %c0_21 = arith.constant 0 : index
    %c0_22 = arith.constant 0 : index
    %43 = vector.load %arg3[%c5, %c0_21, %c0_22] : memref<9x4x8xf32, #tpu.memory_space<vmem>>, vector<1x4x8xf32>
    %44 = vector.shape_cast %43 : vector<1x4x8xf32> to vector<4x8xf32>
    %cst_23 = arith.constant dense<0.000000e+00> : vector<256x8xf32>
    %45 = tpu.matmul %42, %44, %cst_23 {dimension_numbers = #tpu.dot_dimension_numbers<[1], [0], [0], [1], [0, 0, 1, 1], [], []>} : vector<256x4xf32>, vector<4x8xf32>, vector<256x8xf32> -> vector<256x8xf32>
    %46 = arith.addf %40, %45 : vector<256x8xf32>
    %c2_i32 = arith.constant 2 : i32
    %47 = arith.addi %1, %c2_i32 : i32
    %c0_24 = arith.constant 0 : index
    %48 = arith.index_cast %47 : i32 to index
    %c0_25 = arith.constant 0 : index
    %c0_26 = arith.constant 0 : index
    %49 = vector.load %arg2[%c0_24, %48, %c0_25, %c0_26] : memref<1x18x18x4xf32, #tpu.memory_space<vmem>>, vector<1x16x18x4xf32>
    %50 = vector.shape_cast %49 : vector<1x16x18x4xf32> to vector<16x18x4xf32>
    %51 = vector.extract_strided_slice %50 {offsets = [0, 0, 0], sizes = [16, 16, 4], strides = [1, 1, 1]} : vector<16x18x4xf32> to vector<16x16x4xf32>
    %52 = vector.shape_cast %51 : vector<16x16x4xf32> to vector<256x4xf32>
    %c6 = arith.constant 6 : index
    %c0_27 = arith.constant 0 : index
    %c0_28 = arith.constant 0 : index
    %53 = vector.load %arg3[%c6, %c0_27, %c0_28] : memref<9x4x8xf32, #tpu.memory_space<vmem>>, vector<1x4x8xf32>
    %54 = vector.shape_cast %53 : vector<1x4x8xf32> to vector<4x8xf32>
    %cst_29 = arith.constant dense<0.000000e+00> : vector<256x8xf32>
    %55 = tpu.matmul %52, %54, %cst_29 {dimension_numbers = #tpu.dot_dimension_numbers<[1], [0], [0], [1], [0, 0, 1, 1], [], []>} : vector<256x4xf32>, vector<4x8xf32>, vector<256x8xf32> -> vector<256x8xf32>
    %56 = arith.addf %46, %55 : vector<256x8xf32>
    %57 = vector.extract_strided_slice %50 {offsets = [0, 1, 0], sizes = [16, 16, 4], strides = [1, 1, 1]} : vector<16x18x4xf32> to vector<16x16x4xf32>
    %58 = vector.shape_cast %57 : vector<16x16x4xf32> to vector<256x4xf32>
    %c7 = arith.constant 7 : index
    %c0_30 = arith.constant 0 : index
    %c0_31 = arith.constant 0 : index
    %59 = vector.load %arg3[%c7, %c0_30, %c0_31] : memref<9x4x8xf32, #tpu.memory_space<vmem>>, vector<1x4x8xf32>
    %60 = vector.shape_cast %59 : vector<1x4x8xf32> to vector<4x8xf32>
    %cst_32 = arith.constant dense<0.000000e+00> : vector<256x8xf32>
    %61 = tpu.matmul %58, %60, %cst_32 {dimension_numbers = #tpu.dot_dimension_numbers<[1], [0], [0], [1], [0, 0, 1, 1], [], []>} : vector<256x4xf32>, vector<4x8xf32>, vector<256x8xf32> -> vector<256x8xf32>
    %62 = arith.addf %56, %61 : vector<256x8xf32>
    %63 = vector.extract_strided_slice %50 {offsets = [0, 2, 0], sizes = [16, 16, 4], strides = [1, 1, 1]} : vector<16x18x4xf32> to vector<16x16x4xf32>
    %64 = vector.shape_cast %63 : vector<16x16x4xf32> to vector<256x4xf32>
    %c8 = arith.constant 8 : index
    %c0_33 = arith.constant 0 : index
    %c0_34 = arith.constant 0 : index
    %65 = vector.load %arg3[%c8, %c0_33, %c0_34] : memref<9x4x8xf32, #tpu.memory_space<vmem>>, vector<1x4x8xf32>
    %66 = vector.shape_cast %65 : vector<1x4x8xf32> to vector<4x8xf32>
    %cst_35 = arith.constant dense<0.000000e+00> : vector<256x8xf32>
    %67 = tpu.matmul %64, %66, %cst_35 {dimension_numbers = #tpu.dot_dimension_numbers<[1], [0], [0], [1], [0, 0, 1, 1], [], []>} : vector<256x4xf32>, vector<4x8xf32>, vector<256x8xf32> -> vector<256x8xf32>
    %68 = arith.addf %62, %67 : vector<256x8xf32>
    %c0_36 = arith.constant 0 : index
    %c0_37 = arith.constant 0 : index
    %69 = vector.load %arg4[%c0_36, %c0_37] : memref<1x8xf32, #tpu.memory_space<vmem>>, vector<1x8xf32>
    %70 = vector.broadcast %69 : vector<1x8xf32> to vector<256x8xf32>
    %71 = arith.addf %68, %70 : vector<256x8xf32>
    %cst_38 = arith.constant 0.000000e+00 : f32
    %72 = vector.broadcast %cst_38 : f32 to vector<256x8xf32>
    %73 = arith.maximumf %71, %72 : vector<256x8xf32>
    %c0_i32_39 = arith.constant 0 : i32
    %74 = arith.cmpi eq, %arg1, %c0_i32_39 : i32
    %75 = arith.extui %74 : i1 to i32
    %c0_i32_40 = arith.constant 0 : i32
    %76 = arith.cmpi ne, %75, %c0_i32_40 : i32
    scf.if %76 {
      %cst_58 = arith.constant 0.000000e+00 : f32
      %97 = vector.broadcast %cst_58 : f32 to vector<1x8xf32>
      %c0_59 = arith.constant 0 : index
      %c0_60 = arith.constant 0 : index
      %c0_61 = arith.constant 0 : index
      %98 = vector.load %arg6[%c0_59, %c0_60, %c0_61] : memref<1x1x8xf32, #tpu.memory_space<vmem>>, vector<1x1x8xf32>
      %99 = vector.shape_cast %98 : vector<1x1x8xf32> to vector<1x8xf32>
      %100 = vector.shape_cast %97 : vector<1x8xf32> to vector<1x1x8xf32>
      tpu.vector_store %arg6[%c0_59, %c0_60, %c0_61], %100 {strides = array<i32>} : memref<1x1x8xf32, #tpu.memory_space<vmem>>, vector<1x1x8xf32>,
      %cst_62 = arith.constant 0.000000e+00 : f32
      %101 = vector.broadcast %cst_62 : f32 to vector<1x8xf32>
      %c0_63 = arith.constant 0 : index
      %c0_64 = arith.constant 0 : index
      %c0_65 = arith.constant 0 : index
      %102 = vector.load %arg7[%c0_63, %c0_64, %c0_65] : memref<1x1x8xf32, #tpu.memory_space<vmem>>, vector<1x1x8xf32>
      %103 = vector.shape_cast %102 : vector<1x1x8xf32> to vector<1x8xf32>
      %104 = vector.shape_cast %101 : vector<1x8xf32> to vector<1x1x8xf32>
      tpu.vector_store %arg7[%c0_63, %c0_64, %c0_65], %104 {strides = array<i32>} : memref<1x1x8xf32, #tpu.memory_space<vmem>>, vector<1x1x8xf32>,
    } else {
    }
    %c0_41 = arith.constant 0 : index
    %c0_42 = arith.constant 0 : index
    %c0_43 = arith.constant 0 : index
    %77 = vector.load %arg6[%c0_41, %c0_42, %c0_43] : memref<1x1x8xf32, #tpu.memory_space<vmem>>, vector<1x1x8xf32>
    %78 = vector.shape_cast %77 : vector<1x1x8xf32> to vector<1x8xf32>
    %cst_44 = arith.constant dense<0.000000e+00> : vector<8xf32>
    %79 = vector.multi_reduction <add>, %73, %cst_44 [0] : vector<256x8xf32> to vector<8xf32>
    %80 = vector.shape_cast %79 : vector<8xf32> to vector<1x8xf32>
    %81 = arith.addf %78, %80 : vector<1x8xf32>
    %c0_45 = arith.constant 0 : index
    %c0_46 = arith.constant 0 : index
    %c0_47 = arith.constant 0 : index
    %82 = vector.load %arg6[%c0_45, %c0_46, %c0_47] : memref<1x1x8xf32, #tpu.memory_space<vmem>>, vector<1x1x8xf32>
    %83 = vector.shape_cast %82 : vector<1x1x8xf32> to vector<1x8xf32>
    %84 = vector.shape_cast %81 : vector<1x8xf32> to vector<1x1x8xf32>
    tpu.vector_store %arg6[%c0_45, %c0_46, %c0_47], %84 {strides = array<i32>} : memref<1x1x8xf32, #tpu.memory_space<vmem>>, vector<1x1x8xf32>,
    %c0_48 = arith.constant 0 : index
    %c0_49 = arith.constant 0 : index
    %c0_50 = arith.constant 0 : index
    %85 = vector.load %arg7[%c0_48, %c0_49, %c0_50] : memref<1x1x8xf32, #tpu.memory_space<vmem>>, vector<1x1x8xf32>
    %86 = vector.shape_cast %85 : vector<1x1x8xf32> to vector<1x8xf32>
    %87 = arith.mulf %73, %73 : vector<256x8xf32>
    %cst_51 = arith.constant dense<0.000000e+00> : vector<8xf32>
    %88 = vector.multi_reduction <add>, %87, %cst_51 [0] : vector<256x8xf32> to vector<8xf32>
    %89 = vector.shape_cast %88 : vector<8xf32> to vector<1x8xf32>
    %90 = arith.addf %86, %89 : vector<1x8xf32>
    %c0_52 = arith.constant 0 : index
    %c0_53 = arith.constant 0 : index
    %c0_54 = arith.constant 0 : index
    %91 = vector.load %arg7[%c0_52, %c0_53, %c0_54] : memref<1x1x8xf32, #tpu.memory_space<vmem>>, vector<1x1x8xf32>
    %92 = vector.shape_cast %91 : vector<1x1x8xf32> to vector<1x8xf32>
    %93 = vector.shape_cast %90 : vector<1x8xf32> to vector<1x1x8xf32>
    tpu.vector_store %arg7[%c0_52, %c0_53, %c0_54], %93 {strides = array<i32>} : memref<1x1x8xf32, #tpu.memory_space<vmem>>, vector<1x1x8xf32>,
    %c0_55 = arith.constant 0 : index
    %c0_56 = arith.constant 0 : index
    %c0_57 = arith.constant 0 : index
    %94 = vector.load %arg5[%c0_55, %c0_56, %c0_57] : memref<1x256x8xf32, #tpu.memory_space<vmem>>, vector<1x256x8xf32>
    %95 = vector.shape_cast %94 : vector<1x256x8xf32> to vector<256x8xf32>
    %96 = vector.shape_cast %73 : vector<256x8xf32> to vector<1x256x8xf32>
    tpu.vector_store %arg5[%c0_55, %c0_56, %c0_57], %96 {strides = array<i32>} : memref<1x256x8xf32, #tpu.memory_space<vmem>>, vector<1x256x8xf32>,
    return
  }
  func.func @transform_0(%arg0: i32, %arg1: i32) -> (i32, i32, i32, i32) {
    %c0_i32 = arith.constant 0 : i32
    %c0_i32_0 = arith.constant 0 : i32
    %c0_i32_1 = arith.constant 0 : i32
    %c0_i32_2 = arith.constant 0 : i32
    return %arg0, %c0_i32, %c0_i32_0, %c0_i32_1 : i32, i32, i32, i32
  }
  func.func @transform_1(%arg0: i32, %arg1: i32) -> (i32, i32, i32) {
    %c0_i32 = arith.constant 0 : i32
    %c0_i32_0 = arith.constant 0 : i32
    %c0_i32_1 = arith.constant 0 : i32
    %c0_i32_2 = arith.constant 0 : i32
    return %c0_i32, %c0_i32_0, %c0_i32_1 : i32, i32, i32
  }
  func.func @transform_2(%arg0: i32, %arg1: i32) -> (i32, i32) {
    %c0_i32 = arith.constant 0 : i32
    %c0_i32_0 = arith.constant 0 : i32
    %c0_i32_1 = arith.constant 0 : i32
    return %c0_i32, %c0_i32_0 : i32, i32
  }
  func.func @transform_3(%arg0: i32, %arg1: i32) -> (i32, i32, i32) {
    %c0_i32 = arith.constant 0 : i32
    %c0_i32_0 = arith.constant 0 : i32
    return %arg0, %arg1, %c0_i32 : i32, i32, i32
  }
  func.func @transform_4(%arg0: i32, %arg1: i32) -> (i32, i32, i32) {
    %c0_i32 = arith.constant 0 : i32
    %c0_i32_0 = arith.constant 0 : i32
    %c0_i32_1 = arith.constant 0 : i32
    return %arg0, %c0_i32, %c0_i32_0 : i32, i32, i32
  }
  func.func @transform_5(%arg0: i32, %arg1: i32) -> (i32, i32, i32) {
    %c0_i32 = arith.constant 0 : i32
    %c0_i32_0 = arith.constant 0 : i32
    %c0_i32_1 = arith.constant 0 : i32
    return %arg0, %c0_i32, %c0_i32_0 : i32, i32, i32
  }
}

module attributes {stable_mosaic.version = 11 : i64} {
  func.func @_bn_apply_kernel(%arg0: i32, %arg1: i32, %arg2: memref<1x16x128xf32, #tpu.memory_space<vmem>>, %arg3: memref<1x128xf32, #tpu.memory_space<vmem>>, %arg4: memref<1x128xf32, #tpu.memory_space<vmem>>, %arg5: memref<1x16x128xf32, #tpu.memory_space<vmem>>) attributes {dimension_semantics = [#tpu.dimension_semantics<parallel>, #tpu.dimension_semantics<parallel>], iteration_bounds = array<i64: 2, 1>, scalar_prefetch = 0 : i64, scratch_operands = 0 : i64, tpu.core_type = #tpu.core_type<tc>, window_params = [{transform_indices = @transform_0, window_bounds = array<i64: 1, 16, 128>}, {pipeline_mode = #tpu.pipeline_mode<synchronous>, transform_indices = @transform_1, window_bounds = array<i64: 1, 128>}, {pipeline_mode = #tpu.pipeline_mode<synchronous>, transform_indices = @transform_2, window_bounds = array<i64: 1, 128>}, {transform_indices = @transform_3, window_bounds = array<i64: 1, 16, 128>}]} {
    %c0 = arith.constant 0 : index
    %c0_0 = arith.constant 0 : index
    %c0_1 = arith.constant 0 : index
    %0 = vector.load %arg2[%c0, %c0_0, %c0_1] : memref<1x16x128xf32, #tpu.memory_space<vmem>>, vector<1x16x128xf32>
    %1 = vector.shape_cast %0 : vector<1x16x128xf32> to vector<16x128xf32>
    %c0_2 = arith.constant 0 : index
    %c0_3 = arith.constant 0 : index
    %2 = vector.load %arg3[%c0_2, %c0_3] : memref<1x128xf32, #tpu.memory_space<vmem>>, vector<1x128xf32>
    %3 = vector.broadcast %2 : vector<1x128xf32> to vector<16x128xf32>
    %4 = arith.mulf %1, %3 : vector<16x128xf32>
    %c0_4 = arith.constant 0 : index
    %c0_5 = arith.constant 0 : index
    %5 = vector.load %arg4[%c0_4, %c0_5] : memref<1x128xf32, #tpu.memory_space<vmem>>, vector<1x128xf32>
    %6 = vector.broadcast %5 : vector<1x128xf32> to vector<16x128xf32>
    %7 = arith.addf %4, %6 : vector<16x128xf32>
    %c0_6 = arith.constant 0 : index
    %c0_7 = arith.constant 0 : index
    %c0_8 = arith.constant 0 : index
    %8 = vector.load %arg5[%c0_6, %c0_7, %c0_8] : memref<1x16x128xf32, #tpu.memory_space<vmem>>, vector<1x16x128xf32>
    %9 = vector.shape_cast %8 : vector<1x16x128xf32> to vector<16x128xf32>
    %10 = vector.shape_cast %7 : vector<16x128xf32> to vector<1x16x128xf32>
    tpu.vector_store %arg5[%c0_6, %c0_7, %c0_8], %10 {strides = array<i32>} : memref<1x16x128xf32, #tpu.memory_space<vmem>>, vector<1x16x128xf32>,
    return
  }
  func.func @transform_0(%arg0: i32, %arg1: i32) -> (i32, i32, i32) {
    %c0_i32 = arith.constant 0 : i32
    %c0_i32_0 = arith.constant 0 : i32
    return %arg0, %arg1, %c0_i32 : i32, i32, i32
  }
  func.func @transform_1(%arg0: i32, %arg1: i32) -> (i32, i32) {
    %c0_i32 = arith.constant 0 : i32
    %c0_i32_0 = arith.constant 0 : i32
    %c0_i32_1 = arith.constant 0 : i32
    return %c0_i32, %c0_i32_0 : i32, i32
  }
  func.func @transform_2(%arg0: i32, %arg1: i32) -> (i32, i32) {
    %c0_i32 = arith.constant 0 : i32
    %c0_i32_0 = arith.constant 0 : i32
    %c0_i32_1 = arith.constant 0 : i32
    return %c0_i32, %c0_i32_0 : i32, i32
  }
  func.func @transform_3(%arg0: i32, %arg1: i32) -> (i32, i32, i32) {
    %c0_i32 = arith.constant 0 : i32
    %c0_i32_0 = arith.constant 0 : i32
    return %arg0, %arg1, %c0_i32 : i32, i32, i32
  }
}

</mosaic_0001>

<llo_original>
// kernel: tile.18
$region0: #{tile.18}
  #allocation0 [shape = 's32[1]{0}', space=sflag, size = 0x4, scoped, tag = 'scoped memory for tile.18']
  %s0 = inlined_call_operand.vmem [shape: f32[8], index: 0, kind: input, shape index: {}]
  %s1 = inlined_call_operand.vmem [shape: f32[16,8], index: 1, kind: output, shape index: {}]
  // Predicated region
  $region2: #{tile.18} parent=0 // pred_check
    _
  $region3: #{tile.18} parent=0 // pred_check_branch
    %3 = sbr.rel (0) target = $region5
  $region4: #{tile.18} parent=0 // pred_region
    _
  $region5: #{tile.18} parent=0 // pred_fallthru
    _
  %v4 = vld [vmem:[%s0] ss:$0 sm:$0xff]
  %5 = vst [vmem:[%s1] sm:$0xff] %v4
  %s6 = scalar_lea.vmem %s1, 8
  %7 = vst [vmem:[%s6] sm:$0xff] %v4

// kernel: tile.19
$region0: #{tile.19}
  %s0 = inlined_call_operand.vmem [shape: f32[16,8], index: 0, kind: input, shape index: {}]
  %s1 = inlined_call_operand.vmem [shape: f32[1,128], index: 1, kind: output, shape index: {}]
  $region1: #{tile.19} parent=0
    #allocation0 [shape = 'u8[4096]{0}', space=vmem, size = 0x1000, scoped, tag = 'scoped mem for output reshape']
    %v2 = vld [vmem:[%s0] sm:$0x1]
    %vm3 = vcmask 64512
    %4 = vst.msk [vmem:[#allocation0] sm:$0x1] %vm3, %v2
    %s5 = scalar_lea.vmem %s0, 15
    %v6 = vld [vmem:[%s5] sm:$0x1]
    %7 = vrot.lane.b32.xlu0 %v6, 120
    %v8 = vpop.permute.xlu0 %7
    %vm9 = vcmask 1048512
    %10 = vst.msk [vmem:[#allocation0] sm:$0x1] %vm9, %v8
    %s11 = scalar_lea.vmem %s0, 14
    %v12 = vld [vmem:[%s11] sm:$0x1]
    %13 = vrot.lane.b32.xlu0 %v12, 112
    %v14 = vpop.permute.xlu0 %13
    %vm15 = vcmask 982912
    %16 = vst.msk [vmem:[#allocation0] sm:$0x1] %vm15, %v14
    %s17 = scalar_lea.vmem %s0, 13
    %v18 = vld [vmem:[%s17] sm:$0x1]
    %19 = vrot.lane.b32.xlu0 %v18, 104
    %v20 = vpop.permute.xlu0 %19
    %vm21 = vcmask 917312
    %22 = vst.msk [vmem:[#allocation0] sm:$0x1] %vm21, %v20
    %s23 = scalar_lea.vmem %s0, 12
    %v24 = vld [vmem:[%s23] sm:$0x1]
    %25 = vrot.lane.b32.xlu0 %v24, 96
    %v26 = vpop.permute.xlu0 %25
    %vm27 = vcmask 851712
    %28 = vst.msk [vmem:[#allocation0] sm:$0x1] %vm27, %v26
    %s29 = scalar_lea.vmem %s0, 11
    %v30 = vld [vmem:[%s29] sm:$0x1]
    %31 = vrot.lane.b32.xlu0 %v30, 88
    %v32 = vpop.permute.xlu0 %31
    %vm33 = vcmask 786112
    %34 = vst.msk [vmem:[#allocation0] sm:$0x1] %vm33, %v32
    %s35 = scalar_lea.vmem %s0, 10
    %v36 = vld [vmem:[%s35] sm:$0x1]
    %37 = vrot.lane.b32.xlu0 %v36, 80
    %v38 = vpop.permute.xlu0 %37
    %vm39 = vcmask 720512
    %40 = vst.msk [vmem:[#allocation0] sm:$0x1] %vm39, %v38
    %s41 = scalar_lea.vmem %s0, 9
    %v42 = vld [vmem:[%s41] sm:$0x1]
    %43 = vrot.lane.b32.xlu0 %v42, 72
    %v44 = vpop.permute.xlu0 %43
    %vm45 = vcmask 654912
    %46 = vst.msk [vmem:[#allocation0] sm:$0x1] %vm45, %v44
    %s47 = scalar_lea.vmem %s0, 8
    %v48 = vld [vmem:[%s47] sm:$0x1]
    %49 = vrot.lane.b32.xlu0 %v48, 64
    %v50 = vpop.permute.xlu0 %49
    %vm51 = vcmask 589312
    %52 = vst.msk [vmem:[#allocation0] sm:$0x1] %vm51, %v50
    %s53 = scalar_lea.vmem %s0, 7
    %v54 = vld [vmem:[%s53] sm:$0x1]
    %55 = vrot.lane.b32.xlu0 %v54, 56
    %v56 = vpop.permute.xlu0 %55
    %vm57 = vcmask 523712
    %58 = vst.msk [vmem:[#allocation0] sm:$0x1] %vm57, %v56
    %s59 = scalar_lea.vmem %s0, 6
    %v60 = vld [vmem:[%s59] sm:$0x1]
    %61 = vrot.lane.b32.xlu0 %v60, 48
    %v62 = vpop.permute.xlu0 %61
    %vm63 = vcmask 458112
    %64 = vst.msk [vmem:[#allocation0] sm:$0x1] %vm63, %v62
    %s65 = scalar_lea.vmem %s0, 5
    %v66 = vld [vmem:[%s65] sm:$0x1]
    %67 = vrot.lane.b32.xlu0 %v66, 40
    %v68 = vpop.permute.xlu0 %67
    %vm69 = vcmask 392512
    %70 = vst.msk [vmem:[#allocation0] sm:$0x1] %vm69, %v68
    %s71 = scalar_lea.vmem %s0, 4
    %v72 = vld [vmem:[%s71] sm:$0x1]
    %73 = vrot.lane.b32.xlu0 %v72, 32
    %v74 = vpop.permute.xlu0 %73
    %vm75 = vcmask 326912
    %76 = vst.msk [vmem:[#allocation0] sm:$0x1] %vm75, %v74
    %s77 = scalar_lea.vmem %s0, 3
    %v78 = vld [vmem:[%s77] sm:$0x1]
    %79 = vrot.lane.b32.xlu0 %v78, 24
    %v80 = vpop.permute.xlu0 %79
    %vm81 = vcmask 261312
    %82 = vst.msk [vmem:[#allocation0] sm:$0x1] %vm81, %v80
    %s83 = scalar_lea.vmem %s0, 2
    %v84 = vld [vmem:[%s83] sm:$0x1]
    %85 = vrot.lane.b32.xlu0 %v84, 16
    %v86 = vpop.permute.xlu0 %85
    %vm87 = vcmask 195712
    %88 = vst.msk [vmem:[#allocation0] sm:$0x1] %vm87, %v86
    %s89 = scalar_lea.vmem %s0, 1
    %v90 = vld [vmem:[%s89] sm:$0x1]
    %91 = vrot.lane.b32.xlu0 %v90, 8
    %v92 = vpop.permute.xlu0 %91
    %vm93 = vcmask 130112
    %94 = vst.msk [vmem:[#allocation0] sm:$0x1] %vm93, %v92
    %s96 = ssub.s32 2, 1
    %v97 = vld [vmem:[#allocation0] sm:%s96]
    %s99 = ssub.s32 2, 1
    %100 = vst [vmem:[%s1] sm:%s99] %v97

// kernel: conv2d_relu_bn.3
$region0: #{conv2d_relu_bn.3}
  #allocation0 [shape = 'u32[]', space=smem, size = 0x4, offset = 0x4, fixed_abs, tag = 'smem constant byte address 0x4 - core index']
  #allocation1 [shape = 'u32[72,128]{1,0:T(1,128)}', space=vmem, size = 0x9000, scoped, tag = 'internal scratch']
  %s0 = inlined_call_operand.vmem [shape: f32[2,16,128], index: 0, kind: input, shape index: {}, may-alias: {0,3}]
  %s1 = inlined_call_operand.vmem [shape: f32[1,128], index: 1, kind: input, shape index: {}]
  %s2 = inlined_call_operand.vmem [shape: f32[1,128], index: 2, kind: input, shape index: {}]
  %s3 = inlined_call_operand.vmem [shape: f32[2,16,128], index: 3, kind: output, shape index: {}, may-alias: {0,3}]
  %s4 = sld [smem:[#allocation0]]
  $region45: #{conv2d_relu_bn.3} parent=0
    _
  %s6 = ssub.s32 1, %s4
  %s7 = scalar_select 0, %s6, %s4
  loop: start=0, step=1, limit=4
  $region2: #{conv2d_relu_bn.3} parent=0 // loop_pre_header
    _
  $region3: #{conv2d_relu_bn.3} parent=0 // loop_header
    %s9 = sphi 0, %s13
    %p10 = scmp.ge.s32.totalorder %s9, 4
    %s16 = sphi 0, %s28
    %s17 = sphi 0, %s24
    %s18 = sphi 0, %s16
    %s19 = sphi 0, %s17
    %s20 = sphi 0, %s18
    %s21 = sphi 0, %s19
    %s33 = sphi 0, %s35
    %s36 = sphi 0, %s33
    %s37 = sphi 0, %s36
    %s53 = sphi 0, %s37
    %s57 = sphi 0, %s57
    %s59 = sphi 0, %s57
    %s60 = sphi 0, %s59
    %s74 = sphi 0, %s60
    %s78 = sphi 0, %s78
    %s80 = sphi 0, %s78
    %s81 = sphi 0, %s80
    %s95 = sphi 0, %s81
    %s103 = sphi 0, %s105
    %s106 = sphi 0, %s103
    %s107 = sphi 0, %s106
    %s123 = sphi 0, %s107
  $region4: #{conv2d_relu_bn.3} parent=0 // loop_header_branch
    %12 = sbr.rel (%p10) target = $region8
  $region5: #{conv2d_relu_bn.3} parent=0 // loop_body
    %s14 = ssub.s32 %s9, 1
    %s15 = ssub.s32 %s9, 2
    %s22 = sadd.s32 1, %s17
    %p23 = scmp.ge.s32.totalorder %s22, 1
    %s24 = scalar_select %p23, 0, %s22
    %s25 = sadd.s32 1, %s16
    %s26 = scalar_select %p23, %s25, %s16
    %p27 = scmp.ge.s32.totalorder %s26, 2
    %s28 = scalar_select %p27, 0, %s26
    %s29 = ssub.s32 %s16, %s28
    %s30 = ssub.s32 %s17, %s24
    %s31 = sor.u32 %s29, %s30
    %p32 = scmp.eq.s32.totalorder %s31, 0
    %s34 = sadd.s32 %s33, 1
    %s35 = scalar_select %p32, %s33, %s34
    %p38 = pneg %p32
    %p39 = scmp.eq.s32.totalorder %s9, 1
    %p40 = por %p38, %p39
    %p41 = scmp.ne.s32.totalorder %s33, %s36
    %p42 = scmp.eq.s32.totalorder %s9, 0
    %p43 = por %p41, %p42
    %p44 = scmp.ne.s32.totalorder %s33, %s36
    %p45 = scmp.eq.s32.totalorder %s14, 1
    %p46 = por %p44, %p45
    %p47 = scmp.ne.s32.totalorder %s36, %s37
    %p48 = scmp.eq.s32.totalorder %s14, 0
    %p49 = por %p47, %p48
    %p50 = scmp.ne.s32.totalorder %s36, %s37
    %p51 = scmp.eq.s32.totalorder %s15, 1
    %p52 = por %p50, %p51
    %p54 = scmp.ne.s32.totalorder %s37, %s53
    %p55 = scmp.eq.s32.totalorder %s15, 0
    %p56 = por %p54, %p55
    %s58 = sadd.s32 %s57, 1
    %p61 = scmp.eq.s32.totalorder %s9, 1
    %p62 = scmp.ne.s32.totalorder %s57, %s59
    %p63 = scmp.eq.s32.totalorder %s9, 0
    %p64 = por %p62, %p63
    %p65 = scmp.ne.s32.totalorder %s57, %s59
    %p66 = scmp.eq.s32.totalorder %s14, 1
    %p67 = por %p65, %p66
    %p68 = scmp.ne.s32.totalorder %s59, %s60
    %p69 = scmp.eq.s32.totalorder %s14, 0
    %p70 = por %p68, %p69
    %p71 = scmp.ne.s32.totalorder %s59, %s60
    %p72 = scmp.eq.s32.totalorder %s15, 1
    %p73 = por %p71, %p72
    %p75 = scmp.ne.s32.totalorder %s60, %s74
    %p76 = scmp.eq.s32.totalorder %s15, 0
    %p77 = por %p75, %p76
    %s79 = sadd.s32 %s78, 1
    %p82 = scmp.eq.s32.totalorder %s9, 1
    %p83 = scmp.ne.s32.totalorder %s78, %s80
    %p84 = scmp.eq.s32.totalorder %s9, 0
    %p85 = por %p83, %p84
    %p86 = scmp.ne.s32.totalorder %s78, %s80
    %p87 = scmp.eq.s32.totalorder %s14, 1
    %p88 = por %p86, %p87
    %p89 = scmp.ne.s32.totalorder %s80, %s81
    %p90 = scmp.eq.s32.totalorder %s14, 0
    %p91 = por %p89, %p90
    %p92 = scmp.ne.s32.totalorder %s80, %s81
    %p93 = scmp.eq.s32.totalorder %s15, 1
    %p94 = por %p92, %p93
    %p96 = scmp.ne.s32.totalorder %s81, %s95
    %p97 = scmp.eq.s32.totalorder %s15, 0
    %p98 = por %p96, %p97
    %s99 = ssub.s32 %s16, %s28
    %s100 = ssub.s32 %s17, %s24
    %s101 = sor.u32 %s99, %s100
    %p102 = scmp.eq.s32.totalorder %s101, 0
    %s104 = sadd.s32 %s103, 1
    %s105 = scalar_select %p102, %s103, %s104
    %p108 = pneg %p102
    %p109 = scmp.eq.s32.totalorder %s9, 1
    %p110 = por %p108, %p109
    %p111 = scmp.ne.s32.totalorder %s103, %s106
    %p112 = scmp.eq.s32.totalorder %s9, 0
    %p113 = por %p111, %p112
    %p114 = scmp.ne.s32.totalorder %s103, %s106
    %p115 = scmp.eq.s32.totalorder %s14, 1
    %p116 = por %p114, %p115
    %p117 = scmp.ne.s32.totalorder %s106, %s107
    %p118 = scmp.eq.s32.totalorder %s14, 0
    %p119 = por %p117, %p118
    %p120 = scmp.ne.s32.totalorder %s106, %s107
    %p121 = scmp.eq.s32.totalorder %s15, 1
    %p122 = por %p120, %p121
    %p124 = scmp.ne.s32.totalorder %s107, %s123
    %p125 = scmp.eq.s32.totalorder %s15, 0
    %p126 = por %p124, %p125
    %p127 = scmp.le.s32.totalorder 1, %s9
    %p128 = scmp.lt.s32.totalorder %s9, 3
    %p129 = pnand %p127, %p128
    %p130 = pneg %p129
    // Predicated region
    $region9: #{conv2d_relu_bn.3} parent=5 // pred_check
      _
    $region10: #{conv2d_relu_bn.3} parent=5 // pred_check_branch
      %132 = sbr.rel (%p129) target = $region12
    $region11: #{conv2d_relu_bn.3} parent=5 // pred_region
      %s133 = ssub.s32 %s9, 1
      // Predicated region
      $region13: #{conv2d_relu_bn.3} parent=11 // pred_check
        %p134 = pneg %p70
      $region14: #{conv2d_relu_bn.3} parent=11 // pred_check_branch
        %136 = sbr.rel (%p134) target = $region16
      $region15: #{conv2d_relu_bn.3} parent=11 // pred_region
        _
      $region16: #{conv2d_relu_bn.3} parent=11 // pred_fallthru
        _
      // Predicated region
      $region17: #{conv2d_relu_bn.3} parent=11 // pred_check
        %p137 = pneg %p91
      $region18: #{conv2d_relu_bn.3} parent=11 // pred_check_branch
        %139 = sbr.rel (%p137) target = $region20
      $region19: #{conv2d_relu_bn.3} parent=11 // pred_region
        _
      $region20: #{conv2d_relu_bn.3} parent=11 // pred_fallthru
        _
    $region12: #{conv2d_relu_bn.3} parent=5 // pred_fallthru
      _
    %p140 = scmp.lt.s32.totalorder %s9, 2
    // Predicated region
    $region21: #{conv2d_relu_bn.3} parent=5 // pred_check
      %p141 = pneg %p140
    $region22: #{conv2d_relu_bn.3} parent=5 // pred_check_branch
      %143 = sbr.rel (%p141) target = $region24
    $region23: #{conv2d_relu_bn.3} parent=5 // pred_region
      // Predicated region
      $region25: #{conv2d_relu_bn.3} parent=23 // pred_check
        %p144 = pneg %p43
      $region26: #{conv2d_relu_bn.3} parent=23 // pred_check_branch
        %146 = sbr.rel (%p144) target = $region28
      $region27: #{conv2d_relu_bn.3} parent=23 // pred_region
        %s147 = smul.u32 2, %s17
        %p148 = scmp.lt.s32.totalorder %s16, 1
        %s149 = scalar_select %p148, %s16, 1
        %p150 = scmp.lt.s32.totalorder %s147, 1
        %s151 = scalar_select %p150, %s147, 1
        %s152 = smul.addr %s149, 2
        %s153 = sadd.s32 %s151, %s152
        %s154 = smul.addr %s153, 8
        %s155 = scalar_lea.vmem %s0, %s154
        %s156 = smul.u32 2, %s17
      $region28: #{conv2d_relu_bn.3} parent=23 // pred_fallthru
        _
    $region24: #{conv2d_relu_bn.3} parent=5 // pred_fallthru
      _
    %p157 = scmp.le.s32.totalorder 1, %s9
    %p158 = scmp.lt.s32.totalorder %s9, 3
    %p159 = pnand %p157, %p158
    %p160 = pneg %p159
    // Predicated region
    $region29: #{conv2d_relu_bn.3} parent=5 // pred_check
      _
    $region30: #{conv2d_relu_bn.3} parent=5 // pred_check_branch
      %162 = sbr.rel (%p159) target = $region32
    $region31: #{conv2d_relu_bn.3} parent=5 // pred_region
      %s163 = ssub.s32 %s9, 1
      %s164 = smul.u32 2, %s19
      %p165 = scmp.lt.s32.totalorder %s18, 1
      %s166 = scalar_select %p165, %s18, 1
      %p167 = scmp.lt.s32.totalorder %s164, 1
      %s168 = scalar_select %p167, %s164, 1
      %s169 = smul.addr %s166, 2
      %s170 = sadd.s32 %s168, %s169
      %s171 = smul.addr %s170, 8
      %s172 = scalar_lea.vmem %s0, %s171
      %p173 = pneg %p49
      %p174 = pneg %p46
      %p175 = pneg %p70
      %p176 = pneg %p67
      %p177 = pneg %p91
      %p178 = pneg %p88
      %p179 = pneg %p119
      %p180 = pneg %p116
      %s181 = smul.u32 2, %s19
      %p182 = scmp.lt.s32.totalorder %s18, 1
      %s183 = scalar_select %p182, %s18, 1
      %p184 = scmp.lt.s32.totalorder %s181, 1
      %s185 = scalar_select %p184, %s181, 1
      %s186 = smul.addr %s183, 2
      %s187 = sadd.s32 %s185, %s186
      %s188 = smul.addr %s187, 8
      %s189 = scalar_lea.vmem %s3, %s188
      %s190 = smul.u32 2, %s19
      %p191 = scmp.lt.s32.totalorder %s18, 1
      %s192 = scalar_select %p191, %s18, 1
      %p193 = scmp.lt.s32.totalorder %s190, 1
      %s194 = scalar_select %p193, %s190, 1
      %s195 = smul.addr %s192, 2
      %s196 = sadd.s32 %s194, %s195
      %s197 = smul.addr %s196, 8
      %s198 = scalar_lea.vmem %s0, %s197
      %s199 = smul.u32 2, %s19
      %s200 = smul.u32 2, %s19
      %p201 = scmp.lt.s32.totalorder %s18, 1
      %s202 = scalar_select %p201, %s18, 1
      %p203 = scmp.lt.s32.totalorder %s200, 1
      %s204 = scalar_select %p203, %s200, 1
      %s205 = smul.addr %s202, 2
      %s206 = sadd.s32 %s204, %s205
      %s207 = smul.addr %s206, 8
      %s208 = scalar_lea.vmem %s3, %s207
      %s209 = smul.u32 2, %s19
      %v210 = vld [vmem:[%s198] sm:$0xff]
      %v211 = vld [vmem:[%s198 + $0x8] sm:$0xff]
      %v212 = vld [vmem:[%s1] sm:$0x1]
      %v214 = vperm.slane %v212, 0
      %v216 = vmul.f32 %v210, %v214
      %v217 = vmul.f32 %v211, %v214
      %v218 = vld [vmem:[%s2] sm:$0x1]
      %v220 = vperm.slane %v218, 0
      %v222 = vadd.f32 %v216, %v220
      %v223 = vadd.f32 %v217, %v220
      %224 = vst [vmem:[%s208] sm:$0xff] %v222
      %225 = vst [vmem:[%s208 + $0x8] sm:$0xff] %v223
      %s226 = smul.u32 2, %s19
      %p227 = scmp.lt.s32.totalorder %s18, 1
      %s228 = scalar_select %p227, %s18, 1
      %p229 = scmp.lt.s32.totalorder %s226, 1
      %s230 = scalar_select %p229, %s226, 1
      %s231 = smul.addr %s228, 2
      %s232 = sadd.s32 %s230, %s231
      %s233 = smul.addr %s232, 8
      %s234 = scalar_lea.vmem %s3, %s233
      // Predicated region
      $region33: #{conv2d_relu_bn.3} parent=31 // pred_check
        %p235 = pneg %p116
      $region34: #{conv2d_relu_bn.3} parent=31 // pred_check_branch
        %237 = sbr.rel (%p235) target = $region36
      $region35: #{conv2d_relu_bn.3} parent=31 // pred_region
        %s238 = smul.u32 2, %s19
      $region36: #{conv2d_relu_bn.3} parent=31 // pred_fallthru
        _
    $region32: #{conv2d_relu_bn.3} parent=5 // pred_fallthru
      _
    %p239 = scmp.le.s32.totalorder 2, %s9
    // Predicated region
    $region37: #{conv2d_relu_bn.3} parent=5 // pred_check
      %p240 = pneg %p239
    $region38: #{conv2d_relu_bn.3} parent=5 // pred_check_branch
      %242 = sbr.rel (%p240) target = $region40
    $region39: #{conv2d_relu_bn.3} parent=5 // pred_region
      %s243 = ssub.s32 %s9, 2
      // Predicated region
      $region41: #{conv2d_relu_bn.3} parent=39 // pred_check
        %p244 = pneg %p122
      $region42: #{conv2d_relu_bn.3} parent=39 // pred_check_branch
        %246 = sbr.rel (%p244) target = $region44
      $region43: #{conv2d_relu_bn.3} parent=39 // pred_region
        %s247 = smul.u32 2, %s21
        %p248 = scmp.lt.s32.totalorder %s20, 1
        %s249 = scalar_select %p248, %s20, 1
        %p250 = scmp.lt.s32.totalorder %s247, 1
        %s251 = scalar_select %p250, %s247, 1
        %s252 = smul.addr %s249, 2
        %s253 = sadd.s32 %s251, %s252
        %s254 = smul.addr %s253, 8
        %s255 = scalar_lea.vmem %s3, %s254
      $region44: #{conv2d_relu_bn.3} parent=39 // pred_fallthru
        _
    $region40: #{conv2d_relu_bn.3} parent=5 // pred_fallthru
      _
  $region6: #{conv2d_relu_bn.3} parent=0 // loop_footer
    %s13 = sadd.s32 1, %s9
  $region7: #{conv2d_relu_bn.3} parent=0 // loop_footer_branch
    %8 = sbr.rel target = $region3
  $region8: #{conv2d_relu_bn.3} parent=0 // loop_exit
    _

// kernel: conv2d_relu_bn.2
$region0: #{conv2d_relu_bn.2}
  #allocation0 [shape = 'u32[]', space=smem, size = 0x4, offset = 0x4, fixed_abs, tag = 'smem constant byte address 0x4 - core index']
  #allocation1 [shape = 'u32[72,128]{1,0:T(1,128)}', space=vmem, size = 0x9000, scoped, tag = 'internal scratch']
  %s0 = inlined_call_operand.vmem [shape: f32[2,18,18,4], index: 0, kind: input, shape index: {}]
  %s1 = inlined_call_operand.vmem [shape: f32[9,4,8], index: 1, kind: input, shape index: {}]
  %s2 = inlined_call_operand.vmem [shape: f32[1,8], index: 2, kind: input, shape index: {}]
  %s3 = inlined_call_operand.vmem [shape: f32[2,256,8], index: 3, kind: output, shape index: {0}]
  %s4 = inlined_call_operand.vmem [shape: f32[2,1,8], index: 4, kind: output, shape index: {1}]
  %s5 = inlined_call_operand.vmem [shape: f32[2,1,8], index: 5, kind: output, shape index: {2}]
  %6 = xla_tuple %s3, %s4, %s5
  %s7 = sld [smem:[#allocation0]]
  $region65: #{conv2d_relu_bn.2} parent=0
    _
  %s9 = ssub.s32 1, %s7
  %s10 = scalar_select 0, %s9, %s7
  loop: start=0, step=1, limit=4
  $region2: #{conv2d_relu_bn.2} parent=0 // loop_pre_header
    _
  $region3: #{conv2d_relu_bn.2} parent=0 // loop_header
    %s12 = sphi 0, %s16
    %p13 = scmp.ge.s32.totalorder %s12, 4
    %s19 = sphi 0, %s31
    %s20 = sphi 0, %s27
    %s21 = sphi 0, %s19
    %s22 = sphi 0, %s20
    %s23 = sphi 0, %s21
    %s24 = sphi 0, %s22
    %s34 = sphi 0, %s36
    %s37 = sphi 0, %s34
    %s38 = sphi 0, %s37
    %s54 = sphi 0, %s38
    %s58 = sphi 0, %s58
    %s60 = sphi 0, %s58
    %s61 = sphi 0, %s60
    %s75 = sphi 0, %s61
    %s79 = sphi 0, %s79
    %s81 = sphi 0, %s79
    %s82 = sphi 0, %s81
    %s96 = sphi 0, %s82
    %s104 = sphi 0, %s106
    %s107 = sphi 0, %s104
    %s108 = sphi 0, %s107
    %s124 = sphi 0, %s108
    %s130 = sphi 0, %s132
    %s133 = sphi 0, %s130
    %s134 = sphi 0, %s133
    %s150 = sphi 0, %s134
    %s156 = sphi 0, %s158
    %s159 = sphi 0, %s156
    %s160 = sphi 0, %s159
    %s176 = sphi 0, %s160
  $region4: #{conv2d_relu_bn.2} parent=0 // loop_header_branch
    %15 = sbr.rel (%p13) target = $region8
  $region5: #{conv2d_relu_bn.2} parent=0 // loop_body
    %s17 = ssub.s32 %s12, 1
    %s18 = ssub.s32 %s12, 2
    %s25 = sadd.s32 1, %s20
    %p26 = scmp.ge.s32.totalorder %s25, 1
    %s27 = scalar_select %p26, 0, %s25
    %s28 = sadd.s32 1, %s19
    %s29 = scalar_select %p26, %s28, %s19
    %p30 = scmp.ge.s32.totalorder %s29, 2
    %s31 = scalar_select %p30, 0, %s29
    %s32 = ssub.s32 %s19, %s31
    %p33 = scmp.eq.s32.totalorder %s32, 0
    %s35 = sadd.s32 %s34, 1
    %s36 = scalar_select %p33, %s34, %s35
    %p39 = pneg %p33
    %p40 = scmp.eq.s32.totalorder %s12, 1
    %p41 = por %p39, %p40
    %p42 = scmp.ne.s32.totalorder %s34, %s37
    %p43 = scmp.eq.s32.totalorder %s12, 0
    %p44 = por %p42, %p43
    %p45 = scmp.ne.s32.totalorder %s34, %s37
    %p46 = scmp.eq.s32.totalorder %s17, 1
    %p47 = por %p45, %p46
    %p48 = scmp.ne.s32.totalorder %s37, %s38
    %p49 = scmp.eq.s32.totalorder %s17, 0
    %p50 = por %p48, %p49
    %p51 = scmp.ne.s32.totalorder %s37, %s38
    %p52 = scmp.eq.s32.totalorder %s18, 1
    %p53 = por %p51, %p52
    %p55 = scmp.ne.s32.totalorder %s38, %s54
    %p56 = scmp.eq.s32.totalorder %s18, 0
    %p57 = por %p55, %p56
    %s59 = sadd.s32 %s58, 1
    %p62 = scmp.eq.s32.totalorder %s12, 1
    %p63 = scmp.ne.s32.totalorder %s58, %s60
    %p64 = scmp.eq.s32.totalorder %s12, 0
    %p65 = por %p63, %p64
    %p66 = scmp.ne.s32.totalorder %s58, %s60
    %p67 = scmp.eq.s32.totalorder %s17, 1
    %p68 = por %p66, %p67
    %p69 = scmp.ne.s32.totalorder %s60, %s61
    %p70 = scmp.eq.s32.totalorder %s17, 0
    %p71 = por %p69, %p70
    %p72 = scmp.ne.s32.totalorder %s60, %s61
    %p73 = scmp.eq.s32.totalorder %s18, 1
    %p74 = por %p72, %p73
    %p76 = scmp.ne.s32.totalorder %s61, %s75
    %p77 = scmp.eq.s32.totalorder %s18, 0
    %p78 = por %p76, %p77
    %s80 = sadd.s32 %s79, 1
    %p83 = scmp.eq.s32.totalorder %s12, 1
    %p84 = scmp.ne.s32.totalorder %s79, %s81
    %p85 = scmp.eq.s32.totalorder %s12, 0
    %p86 = por %p84, %p85
    %p87 = scmp.ne.s32.totalorder %s79, %s81
    %p88 = scmp.eq.s32.totalorder %s17, 1
    %p89 = por %p87, %p88
    %p90 = scmp.ne.s32.totalorder %s81, %s82
    %p91 = scmp.eq.s32.totalorder %s17, 0
    %p92 = por %p90, %p91
    %p93 = scmp.ne.s32.totalorder %s81, %s82
    %p94 = scmp.eq.s32.totalorder %s18, 1
    %p95 = por %p93, %p94
    %p97 = scmp.ne.s32.totalorder %s82, %s96
    %p98 = scmp.eq.s32.totalorder %s18, 0
    %p99 = por %p97, %p98
    %s100 = ssub.s32 %s19, %s31
    %s101 = ssub.s32 %s20, %s27
    %s102 = sor.u32 %s100, %s101
    %p103 = scmp.eq.s32.totalorder %s102, 0
    %s105 = sadd.s32 %s104, 1
    %s106 = scalar_select %p103, %s104, %s105
    %p109 = pneg %p103
    %p110 = scmp.eq.s32.totalorder %s12, 1
    %p111 = por %p109, %p110
    %p112 = scmp.ne.s32.totalorder %s104, %s107
    %p113 = scmp.eq.s32.totalorder %s12, 0
    %p114 = por %p112, %p113
    %p115 = scmp.ne.s32.totalorder %s104, %s107
    %p116 = scmp.eq.s32.totalorder %s17, 1
    %p117 = por %p115, %p116
    %p118 = scmp.ne.s32.totalorder %s107, %s108
    %p119 = scmp.eq.s32.totalorder %s17, 0
    %p120 = por %p118, %p119
    %p121 = scmp.ne.s32.totalorder %s107, %s108
    %p122 = scmp.eq.s32.totalorder %s18, 1
    %p123 = por %p121, %p122
    %p125 = scmp.ne.s32.totalorder %s108, %s124
    %p126 = scmp.eq.s32.totalorder %s18, 0
    %p127 = por %p125, %p126
    %s128 = ssub.s32 %s19, %s31
    %p129 = scmp.eq.s32.totalorder %s128, 0
    %s131 = sadd.s32 %s130, 1
    %s132 = scalar_select %p129, %s130, %s131
    %p135 = pneg %p129
    %p136 = scmp.eq.s32.totalorder %s12, 1
    %p137 = por %p135, %p136
    %p138 = scmp.ne.s32.totalorder %s130, %s133
    %p139 = scmp.eq.s32.totalorder %s12, 0
    %p140 = por %p138, %p139
    %p141 = scmp.ne.s32.totalorder %s130, %s133
    %p142 = scmp.eq.s32.totalorder %s17, 1
    %p143 = por %p141, %p142
    %p144 = scmp.ne.s32.totalorder %s133, %s134
    %p145 = scmp.eq.s32.totalorder %s17, 0
    %p146 = por %p144, %p145
    %p147 = scmp.ne.s32.totalorder %s133, %s134
    %p148 = scmp.eq.s32.totalorder %s18, 1
    %p149 = por %p147, %p148
    %p151 = scmp.ne.s32.totalorder %s134, %s150
    %p152 = scmp.eq.s32.totalorder %s18, 0
    %p153 = por %p151, %p152
    %s154 = ssub.s32 %s19, %s31
    %p155 = scmp.eq.s32.totalorder %s154, 0
    %s157 = sadd.s32 %s156, 1
    %s158 = scalar_select %p155, %s156, %s157
    %p161 = pneg %p155
    %p162 = scmp.eq.s32.totalorder %s12, 1
    %p163 = por %p161, %p162
    %p164 = scmp.ne.s32.totalorder %s156, %s159
    %p165 = scmp.eq.s32.totalorder %s12, 0
    %p166 = por %p164, %p165
    %p167 = scmp.ne.s32.totalorder %s156, %s159
    %p168 = scmp.eq.s32.totalorder %s17, 1
    %p169 = por %p167, %p168
    %p170 = scmp.ne.s32.totalorder %s159, %s160
    %p171 = scmp.eq.s32.totalorder %s17, 0
    %p172 = por %p170, %p171
    %p173 = scmp.ne.s32.totalorder %s159, %s160
    %p174 = scmp.eq.s32.totalorder %s18, 1
    %p175 = por %p173, %p174
    %p177 = scmp.ne.s32.totalorder %s160, %s176
    %p178 = scmp.eq.s32.totalorder %s18, 0
    %p179 = por %p177, %p178
    %p180 = scmp.le.s32.totalorder 1, %s12
    %p181 = scmp.lt.s32.totalorder %s12, 3
    %p182 = pnand %p180, %p181
    %p183 = pneg %p182
    // Predicated region
    $region9: #{conv2d_relu_bn.2} parent=5 // pred_check
      _
    $region10: #{conv2d_relu_bn.2} parent=5 // pred_check_branch
      %185 = sbr.rel (%p182) target = $region12
    $region11: #{conv2d_relu_bn.2} parent=5 // pred_region
      %s186 = ssub.s32 %s12, 1
      // Predicated region
      $region13: #{conv2d_relu_bn.2} parent=11 // pred_check
        %p187 = pneg %p71
      $region14: #{conv2d_relu_bn.2} parent=11 // pred_check_branch
        %189 = sbr.rel (%p187) target = $region16
      $region15: #{conv2d_relu_bn.2} parent=11 // pred_region
        _
      $region16: #{conv2d_relu_bn.2} parent=11 // pred_fallthru
        _
      // Predicated region
      $region17: #{conv2d_relu_bn.2} parent=11 // pred_check
        %p190 = pneg %p92
      $region18: #{conv2d_relu_bn.2} parent=11 // pred_check_branch
        %192 = sbr.rel (%p190) target = $region20
      $region19: #{conv2d_relu_bn.2} parent=11 // pred_region
        _
      $region20: #{conv2d_relu_bn.2} parent=11 // pred_fallthru
        _
    $region12: #{conv2d_relu_bn.2} parent=5 // pred_fallthru
      _
    %p193 = scmp.lt.s32.totalorder %s12, 2
    // Predicated region
    $region21: #{conv2d_relu_bn.2} parent=5 // pred_check
      %p194 = pneg %p193
    $region22: #{conv2d_relu_bn.2} parent=5 // pred_check_branch
      %196 = sbr.rel (%p194) target = $region24
    $region23: #{conv2d_relu_bn.2} parent=5 // pred_region
      // Predicated region
      $region25: #{conv2d_relu_bn.2} parent=23 // pred_check
        %p197 = pneg %p44
      $region26: #{conv2d_relu_bn.2} parent=23 // pred_check_branch
        %199 = sbr.rel (%p197) target = $region28
      $region27: #{conv2d_relu_bn.2} parent=23 // pred_region
        %p200 = scmp.lt.s32.totalorder %s19, 1
        %s201 = scalar_select %p200, %s19, 1
        %s202 = smul.addr %s201, 54
        %s203 = smul.addr %s202, 8
        %s204 = scalar_lea.vmem %s0, %s203
      $region28: #{conv2d_relu_bn.2} parent=23 // pred_fallthru
        _
    $region24: #{conv2d_relu_bn.2} parent=5 // pred_fallthru
      _
    %p205 = scmp.le.s32.totalorder 1, %s12
    %p206 = scmp.lt.s32.totalorder %s12, 3
    %p207 = pnand %p205, %p206
    %p208 = pneg %p207
    // Predicated region
    $region29: #{conv2d_relu_bn.2} parent=5 // pred_check
      _
    $region30: #{conv2d_relu_bn.2} parent=5 // pred_check_branch
      %210 = sbr.rel (%p207) target = $region32
    $region31: #{conv2d_relu_bn.2} parent=5 // pred_region
      %s211 = ssub.s32 %s12, 1
      %p212 = scmp.lt.s32.totalorder %s21, 1
      %s213 = scalar_select %p212, %s21, 1
      %s214 = smul.addr %s213, 54
      %s215 = smul.addr %s214, 8
      %s216 = scalar_lea.vmem %s0, %s215
      %p217 = pneg %p50
      %p218 = pneg %p47
      %p219 = pneg %p71
      %p220 = pneg %p68
      %p221 = pneg %p92
      %p222 = pneg %p89
      %p223 = pneg %p120
      %p224 = pneg %p117
      %s225 = smul.u32 32, %s22
      %p226 = scmp.lt.s32.totalorder %s21, 1
      %s227 = scalar_select %p226, %s21, 1
      %p228 = scmp.lt.s32.totalorder %s225, 31
      %s229 = scalar_select %p228, %s225, 31
      %s230 = smul.addr %s227, 32
      %s231 = sadd.s32 %s229, %s230
      %s232 = smul.addr %s231, 8
      %s233 = scalar_lea.vmem %s3, %s232
      %p234 = pneg %p146
      %p235 = pneg %p143
      %p236 = scmp.lt.s32.totalorder %s21, 1
      %s237 = scalar_select %p236, %s21, 1
      %s238 = scalar_lea.vmem %s4, %s237
      %p239 = pneg %p172
      %p240 = pneg %p169
      %p241 = scmp.lt.s32.totalorder %s21, 1
      %s242 = scalar_select %p241, %s21, 1
      %s243 = scalar_lea.vmem %s5, %s242
      %p244 = scmp.lt.s32.totalorder %s21, 1
      %s245 = scalar_select %p244, %s21, 1
      %s246 = smul.addr %s245, 54
      %s247 = smul.addr %s246, 8
      %s248 = scalar_lea.vmem %s0, %s247
      %s249 = smul.u32 32, %s22
      %p250 = scmp.lt.s32.totalorder %s21, 1
      %s251 = scalar_select %p250, %s21, 1
      %p252 = scmp.lt.s32.totalorder %s249, 31
      %s253 = scalar_select %p252, %s249, 31
      %s254 = smul.addr %s251, 32
      %s255 = sadd.s32 %s253, %s254
      %s256 = smul.addr %s255, 8
      %s257 = scalar_lea.vmem %s3, %s256
      %s258 = smul.u32 32, %s22
      %p259 = scmp.lt.s32.totalorder %s21, 1
      %s260 = scalar_select %p259, %s21, 1
      %s261 = scalar_lea.vmem %s4, %s260
      %p262 = scmp.lt.s32.totalorder %s21, 1
      %s263 = scalar_select %p262, %s21, 1
      %s264 = scalar_lea.vmem %s5, %s263
      %s265 = smul.u32 %s22, 16
      %s266 = smul.u32 %s265, 24
      %s267 = scalar_lea.vmem %s248, %s266
      %v268 = vld [vmem:[%s267] sm:$0xff]
      %v269 = vld [vmem:[%s267 + $0x8] sm:$0xff]
      %v270 = vld [vmem:[%s267 + $0x10] sm:$0x3]
      %v271 = vld [vmem:[%s267 + $0x18] sm:$0xff]
      %v272 = vld [vmem:[%s267 + $0x20] sm:$0xff]
      %v273 = vld [vmem:[%s267 + $0x28] sm:$0x3]
      %v274 = vld [vmem:[%s267 + $0x30] sm:$0xff]
      %v275 = vld [vmem:[%s267 + $0x38] sm:$0xff]
      %v276 = vld [vmem:[%s267 + $0x40] sm:$0x3]
      %v277 = vld [vmem:[%s267 + $0x48] sm:$0xff]
      %v278 = vld [vmem:[%s267 + $0x50] sm:$0xff]
      %v279 = vld [vmem:[%s267 + $0x58] sm:$0x3]
      %v280 = vld [vmem:[%s267 + $0x60] sm:$0xff]
      %v281 = vld [vmem:[%s267 + $0x68] sm:$0xff]
      %v282 = vld [vmem:[%s267 + $0x70] sm:$0x3]
      %v283 = vld [vmem:[%s267 + $0x78] sm:$0xff]
      %v284 = vld [vmem:[%s267 + $0x80] sm:$0xff]
      %v285 = vld [vmem:[%s267 + $0x88] sm:$0x3]
      %v286 = vld [vmem:[%s267 + $0x90] sm:$0xff]
      %v287 = vld [vmem:[%s267 + $0x98] sm:$0xff]
      %v288 = vld [vmem:[%s267 + $0xa0] sm:$0x3]
      %v289 = vld [vmem:[%s267 + $0xa8] sm:$0xff]
      %v290 = vld [vmem:[%s267 + $0xb0] sm:$0xff]
      %v291 = vld [vmem:[%s267 + $0xb8] sm:$0x3]
      %v292 = vld [vmem:[%s267 + $0xc0] sm:$0xff]
      %v293 = vld [vmem:[%s267 + $0xc8] sm:$0xff]
      %v294 = vld [vmem:[%s267 + $0xd0] sm:$0x3]
      %v295 = vld [vmem:[%s267 + $0xd8] sm:$0xff]
      %v296 = vld [vmem:[%s267 + $0xe0] sm:$0xff]
      %v297 = vld [vmem:[%s267 + $0xe8] sm:$0x3]
      %v298 = vld [vmem:[%s267 + $0xf0] sm:$0xff]
      %v299 = vld [vmem:[%s267 + $0xf8] sm:$0xff]
      %v300 = vld [vmem:[%s267 + $0x100] sm:$0x3]
      %v301 = vld [vmem:[%s267 + $0x108] sm:$0xff]
      %v302 = vld [vmem:[%s267 + $0x110] sm:$0xff]
      %v303 = vld [vmem:[%s267 + $0x118] sm:$0x3]
      %v304 = vld [vmem:[%s267 + $0x120] sm:$0xff]
      %v305 = vld [vmem:[%s267 + $0x128] sm:$0xff]
      %v306 = vld [vmem:[%s267 + $0x130] sm:$0x3]
      %v307 = vld [vmem:[%s267 + $0x138] sm:$0xff]
      %v308 = vld [vmem:[%s267 + $0x140] sm:$0xff]
      %v309 = vld [vmem:[%s267 + $0x148] sm:$0x3]
      %v310 = vld [vmem:[%s267 + $0x150] sm:$0xff]
      %v311 = vld [vmem:[%s267 + $0x158] sm:$0xff]
      %v312 = vld [vmem:[%s267 + $0x160] sm:$0x3]
      %v313 = vld [vmem:[%s267 + $0x168] sm:$0xff]
      %v314 = vld [vmem:[%s267 + $0x170] sm:$0xff]
      %v315 = vld [vmem:[%s267 + $0x178] sm:$0x3]
      %v316 = vld [vmem:[%s1] sm:$0xf]
      %vm365 = vcmask 1046528
      %v366 = vrot.slane %v268, 1
      %v367 = vrot.slane %v269, 1
      %v368 = vsel %vm365, %v366, %v367
      %v369 = vrot.slane %v270, 1
      %v370 = vsel %vm365, %v367, %v369
      %v371 = vrot.slane %v271, 1
      %v372 = vrot.slane %v272, 1
      %v373 = vsel %vm365, %v371, %v372
      %v374 = vrot.slane %v273, 1
      %v375 = vsel %vm365, %v372, %v374
      %v376 = vrot.slane %v274, 1
      %v377 = vrot.slane %v275, 1
      %v378 = vsel %vm365, %v376, %v377
      %v379 = vrot.slane %v276, 1
      %v380 = vsel %vm365, %v377, %v379
      %v381 = vrot.slane %v277, 1
      %v382 = vrot.slane %v278, 1
      %v383 = vsel %vm365, %v381, %v382
      %v384 = vrot.slane %v279, 1
      %v385 = vsel %vm365, %v382, %v384
      %v386 = vrot.slane %v280, 1
      %v387 = vrot.slane %v281, 1
      %v388 = vsel %vm365, %v386, %v387
      %v389 = vrot.slane %v282, 1
      %v390 = vsel %vm365, %v387, %v389
      %v391 = vrot.slane %v283, 1
      %v392 = vrot.slane %v284, 1
      %v393 = vsel %vm365, %v391, %v392
      %v394 = vrot.slane %v285, 1
      %v395 = vsel %vm365, %v392, %v394
      %v396 = vrot.slane %v286, 1
      %v397 = vrot.slane %v287, 1
      %v398 = vsel %vm365, %v396, %v397
      %v399 = vrot.slane %v288, 1
      %v400 = vsel %vm365, %v397, %v399
      %v401 = vrot.slane %v289, 1
      %v402 = vrot.slane %v290, 1
      %v403 = vsel %vm365, %v401, %v402
      %v404 = vrot.slane %v291, 1
      %v405 = vsel %vm365, %v402, %v404
      %v406 = vrot.slane %v292, 1
      %v407 = vrot.slane %v293, 1
      %v408 = vsel %vm365, %v406, %v407
      %v409 = vrot.slane %v294, 1
      %v410 = vsel %vm365, %v407, %v409
      %v411 = vrot.slane %v295, 1
      %v412 = vrot.slane %v296, 1
      %v413 = vsel %vm365, %v411, %v412
      %v414 = vrot.slane %v297, 1
      %v415 = vsel %vm365, %v412, %v414
      %v416 = vrot.slane %v298, 1
      %v417 = vrot.slane %v299, 1
      %v418 = vsel %vm365, %v416, %v417
      %v419 = vrot.slane %v300, 1
      %v420 = vsel %vm365, %v417, %v419
      %v421 = vrot.slane %v301, 1
      %v422 = vrot.slane %v302, 1
      %v423 = vsel %vm365, %v421, %v422
      %v424 = vrot.slane %v303, 1
      %v425 = vsel %vm365, %v422, %v424
      %v426 = vrot.slane %v304, 1
      %v427 = vrot.slane %v305, 1
      %v428 = vsel %vm365, %v426, %v427
      %v429 = vrot.slane %v306, 1
      %v430 = vsel %vm365, %v427, %v429
      %v431 = vrot.slane %v307, 1
      %v432 = vrot.slane %v308, 1
      %v433 = vsel %vm365, %v431, %v432
      %v434 = vrot.slane %v309, 1
      %v435 = vsel %vm365, %v432, %v434
      %v436 = vrot.slane %v310, 1
      %v437 = vrot.slane %v311, 1
      %v438 = vsel %vm365, %v436, %v437
      %v439 = vrot.slane %v312, 1
      %v440 = vsel %vm365, %v437, %v439
      %v441 = vrot.slane %v313, 1
      %v442 = vrot.slane %v314, 1
      %v443 = vsel %vm365, %v441, %v442
      %v444 = vrot.slane %v315, 1
      %v445 = vsel %vm365, %v442, %v444
      %s446 = scalar_lea.vmem %s1, 4
      %v447 = vld [vmem:[%s446] sm:$0xf]
      %vm448 = vcmask 31744
      %v449 = vsel %vm448, %v368, 0
      %v451 = vsel %vm448, %v370, 0
      %v453 = vsel %vm448, %v373, 0
      %v455 = vsel %vm448, %v375, 0
      %v457 = vsel %vm448, %v378, 0
      %v459 = vsel %vm448, %v380, 0
      %v461 = vsel %vm448, %v383, 0
      %v463 = vsel %vm448, %v385, 0
      %v465 = vsel %vm448, %v388, 0
      %v467 = vsel %vm448, %v390, 0
      %v469 = vsel %vm448, %v393, 0
      %v471 = vsel %vm448, %v395, 0
      %v473 = vsel %vm448, %v398, 0
      %v475 = vsel %vm448, %v400, 0
      %v477 = vsel %vm448, %v403, 0
      %v479 = vsel %vm448, %v405, 0
      %v481 = vsel %vm448, %v408, 0
      %v483 = vsel %vm448, %v410, 0
      %v485 = vsel %vm448, %v413, 0
      %v487 = vsel %vm448, %v415, 0
      %v489 = vsel %vm448, %v418, 0
      %v491 = vsel %vm448, %v420, 0
      %v493 = vsel %vm448, %v423, 0
      %v495 = vsel %vm448, %v425, 0
      %v497 = vsel %vm448, %v428, 0
      %v499 = vsel %vm448, %v430, 0
      %v501 = vsel %vm448, %v433, 0
      %v503 = vsel %vm448, %v435, 0
      %v505 = vsel %vm448, %v438, 0
      %v507 = vsel %vm448, %v440, 0
      %v509 = vsel %vm448, %v443, 0
      %v511 = vsel %vm448, %v445, 0
      %vm513 = vcmask 1043456
      %v515 = vsel %vm513, %v447, 0
      %517 = vmatpush.msra.mxu0 0.0
      %518 = vmatpush.msra.mxu0 0.0
      %519 = vmatpush.msra.mxu0 0.0
      %520 = vmatpush.msra.mxu0 0.0
      %521 = vmatpush.msra.mxu0 0.0
      %522 = vmatpush.msra.mxu0 0.0
      %523 = vmatpush.msra.mxu0 0.0
      %524 = vmatpush.msra.mxu0 0.0
      %525 = vmatpush.msra.mxu0 0.0
      %526 = vmatpush.msra.mxu0 0.0
      %527 = vmatpush.msra.mxu0 0.0
      %528 = vmatpush.msra.mxu0 0.0
      %529 = vmatpush.msra.mxu0 0.0
      %530 = vmatpush.msra.mxu0 0.0
      %531 = vmatpush.msra.mxu0 0.0
      %532 = vmatpush.msra.mxu0 %v515
      %533 = vmatmul.f32.gmra.mxu0 %v449
      %v534 = vpop.f32.mrf.mxu0
      %v535 = vadd.f32 0.0, %v534
      %536 = vmatmul.f32.gmra.mxu0 %v451
      %v537 = vpop.f32.mrf.mxu0
      %v538 = vadd.f32 0.0, %v537
      %539 = vmatmul.f32.gmra.mxu0 %v453
      %v540 = vpop.f32.mrf.mxu0
      %v541 = vadd.f32 0.0, %v540
      %542 = vmatmul.f32.gmra.mxu0 %v455
      %v543 = vpop.f32.mrf.mxu0
      %v544 = vadd.f32 0.0, %v543
      %545 = vmatmul.f32.gmra.mxu0 %v457
      %v546 = vpop.f32.mrf.mxu0
      %v547 = vadd.f32 0.0, %v546
      %548 = vmatmul.f32.gmra.mxu0 %v459
      %v549 = vpop.f32.mrf.mxu0
      %v550 = vadd.f32 0.0, %v549
      %551 = vmatmul.f32.gmra.mxu0 %v461
      %v552 = vpop.f32.mrf.mxu0
      %v553 = vadd.f32 0.0, %v552
      %554 = vmatmul.f32.gmra.mxu0 %v463
      %v555 = vpop.f32.mrf.mxu0
      %v556 = vadd.f32 0.0, %v555
      %557 = vmatmul.f32.gmra.mxu0 %v465
      %v558 = vpop.f32.mrf.mxu0
      %v559 = vadd.f32 0.0, %v558
      %560 = vmatmul.f32.gmra.mxu0 %v467
      %v561 = vpop.f32.mrf.mxu0
      %v562 = vadd.f32 0.0, %v561
      %563 = vmatmul.f32.gmra.mxu0 %v469
      %v564 = vpop.f32.mrf.mxu0
      %v565 = vadd.f32 0.0, %v564
      %566 = vmatmul.f32.gmra.mxu0 %v471
      %v567 = vpop.f32.mrf.mxu0
      %v568 = vadd.f32 0.0, %v567
      %569 = vmatmul.f32.gmra.mxu0 %v473
      %v570 = vpop.f32.mrf.mxu0
      %v571 = vadd.f32 0.0, %v570
      %572 = vmatmul.f32.gmra.mxu0 %v475
      %v573 = vpop.f32.mrf.mxu0
      %v574 = vadd.f32 0.0, %v573
      %575 = vmatmul.f32.gmra.mxu0 %v477
      %v576 = vpop.f32.mrf.mxu0
      %v577 = vadd.f32 0.0, %v576
      %578 = vmatmul.f32.gmra.mxu0 %v479
      %v579 = vpop.f32.mrf.mxu0
      %v580 = vadd.f32 0.0, %v579
      %581 = vmatmul.f32.gmra.mxu0 %v481
      %v582 = vpop.f32.mrf.mxu0
      %v583 = vadd.f32 0.0, %v582
      %584 = vmatmul.f32.gmra.mxu0 %v483
      %v585 = vpop.f32.mrf.mxu0
      %v586 = vadd.f32 0.0, %v585
      %587 = vmatmul.f32.gmra.mxu0 %v485
      %v588 = vpop.f32.mrf.mxu0
      %v589 = vadd.f32 0.0, %v588
      %590 = vmatmul.f32.gmra.mxu0 %v487
      %v591 = vpop.f32.mrf.mxu0
      %v592 = vadd.f32 0.0, %v591
      %593 = vmatmul.f32.gmra.mxu0 %v489
      %v594 = vpop.f32.mrf.mxu0
      %v595 = vadd.f32 0.0, %v594
      %596 = vmatmul.f32.gmra.mxu0 %v491
      %v597 = vpop.f32.mrf.mxu0
      %v598 = vadd.f32 0.0, %v597
      %599 = vmatmul.f32.gmra.mxu0 %v493
      %v600 = vpop.f32.mrf.mxu0
      %v601 = vadd.f32 0.0, %v600
      %602 = vmatmul.f32.gmra.mxu0 %v495
      %v603 = vpop.f32.mrf.mxu0
      %v604 = vadd.f32 0.0, %v603
      %605 = vmatmul.f32.gmra.mxu0 %v497
      %v606 = vpop.f32.mrf.mxu0
      %v607 = vadd.f32 0.0, %v606
      %608 = vmatmul.f32.gmra.mxu0 %v499
      %v609 = vpop.f32.mrf.mxu0
      %v610 = vadd.f32 0.0, %v609
      %611 = vmatmul.f32.gmra.mxu0 %v501
      %v612 = vpop.f32.mrf.mxu0
      %v613 = vadd.f32 0.0, %v612
      %614 = vmatmul.f32.gmra.mxu0 %v503
      %v615 = vpop.f32.mrf.mxu0
      %v616 = vadd.f32 0.0, %v615
      %617 = vmatmul.f32.gmra.mxu0 %v505
      %v618 = vpop.f32.mrf.mxu0
      %v619 = vadd.f32 0.0, %v618
      %620 = vmatmul.f32.gmra.mxu0 %v507
      %v621 = vpop.f32.mrf.mxu0
      %v622 = vadd.f32 0.0, %v621
      %623 = vmatmul.f32.gmra.mxu0 %v509
      %v624 = vpop.f32.mrf.mxu0
      %v625 = vadd.f32 0.0, %v624
      %626 = vmatmul.f32.gmra.mxu0 %v511
      %v627 = vpop.f32.mrf.mxu0
      %v628 = vadd.f32 0.0, %v627
      %629 = vdwg.mxu0
      %v630 = vsel %vm448, %v268, 0
      %v632 = vsel %vm448, %v269, 0
      %v634 = vsel %vm448, %v271, 0
      %v636 = vsel %vm448, %v272, 0
      %v638 = vsel %vm448, %v274, 0
      %v640 = vsel %vm448, %v275, 0
      %v642 = vsel %vm448, %v277, 0
      %v644 = vsel %vm448, %v278, 0
      %v646 = vsel %vm448, %v280, 0
      %v648 = vsel %vm448, %v281, 0
      %v650 = vsel %vm448, %v283, 0
      %v652 = vsel %vm448, %v284, 0
      %v654 = vsel %vm448, %v286, 0
      %v656 = vsel %vm448, %v287, 0
      %v658 = vsel %vm448, %v289, 0
      %v660 = vsel %vm448, %v290, 0
      %v662 = vsel %vm448, %v292, 0
      %v664 = vsel %vm448, %v293, 0
      %v666 = vsel %vm448, %v295, 0
      %v668 = vsel %vm448, %v296, 0
      %v670 = vsel %vm448, %v298, 0
      %v672 = vsel %vm448, %v299, 0
      %v674 = vsel %vm448, %v301, 0
      %v676 = vsel %vm448, %v302, 0
      %v678 = vsel %vm448, %v304, 0
      %v680 = vsel %vm448, %v305, 0
      %v682 = vsel %vm448, %v307, 0
      %v684 = vsel %vm448, %v308, 0
      %v686 = vsel %vm448, %v310, 0
      %v688 = vsel %vm448, %v311, 0
      %v690 = vsel %vm448, %v313, 0
      %v692 = vsel %vm448, %v314, 0
      %v695 = vsel %vm513, %v316, 0
      %697 = vmatpush.msra.mxu0 0.0
      %698 = vmatpush.msra.mxu0 0.0
      %699 = vmatpush.msra.mxu0 0.0
      %700 = vmatpush.msra.mxu0 0.0
      %701 = vmatpush.msra.mxu0 0.0
      %702 = vmatpush.msra.mxu0 0.0
      %703 = vmatpush.msra.mxu0 0.0
      %704 = vmatpush.msra.mxu0 0.0
      %705 = vmatpush.msra.mxu0 0.0
      %706 = vmatpush.msra.mxu0 0.0
      %707 = vmatpush.msra.mxu0 0.0
      %708 = vmatpush.msra.mxu0 0.0
      %709 = vmatpush.msra.mxu0 0.0
      %710 = vmatpush.msra.mxu0 0.0
      %711 = vmatpush.msra.mxu0 0.0
      %712 = vmatpush.msra.mxu0 %v695
      %713 = vmatmul.f32.gmra.mxu0 %v630
      %v714 = vpop.f32.mrf.mxu0
      %v715 = vadd.f32 %v535, %v714
      %716 = vmatmul.f32.gmra.mxu0 %v632
      %v717 = vpop.f32.mrf.mxu0
      %v718 = vadd.f32 %v538, %v717
      %719 = vmatmul.f32.gmra.mxu0 %v634
      %v720 = vpop.f32.mrf.mxu0
      %v721 = vadd.f32 %v541, %v720
      %722 = vmatmul.f32.gmra.mxu0 %v636
      %v723 = vpop.f32.mrf.mxu0
      %v724 = vadd.f32 %v544, %v723
      %725 = vmatmul.f32.gmra.mxu0 %v638
      %v726 = vpop.f32.mrf.mxu0
      %v727 = vadd.f32 %v547, %v726
      %728 = vmatmul.f32.gmra.mxu0 %v640
      %v729 = vpop.f32.mrf.mxu0
      %v730 = vadd.f32 %v550, %v729
      %731 = vmatmul.f32.gmra.mxu0 %v642
      %v732 = vpop.f32.mrf.mxu0
      %v733 = vadd.f32 %v553, %v732
      %734 = vmatmul.f32.gmra.mxu0 %v644
      %v735 = vpop.f32.mrf.mxu0
      %v736 = vadd.f32 %v556, %v735
      %737 = vmatmul.f32.gmra.mxu0 %v646
      %v738 = vpop.f32.mrf.mxu0
      %v739 = vadd.f32 %v559, %v738
      %740 = vmatmul.f32.gmra.mxu0 %v648
      %v741 = vpop.f32.mrf.mxu0
      %v742 = vadd.f32 %v562, %v741
      %743 = vmatmul.f32.gmra.mxu0 %v650
      %v744 = vpop.f32.mrf.mxu0
      %v745 = vadd.f32 %v565, %v744
      %746 = vmatmul.f32.gmra.mxu0 %v652
      %v747 = vpop.f32.mrf.mxu0
      %v748 = vadd.f32 %v568, %v747
      %749 = vmatmul.f32.gmra.mxu0 %v654
      %v750 = vpop.f32.mrf.mxu0
      %v751 = vadd.f32 %v571, %v750
      %752 = vmatmul.f32.gmra.mxu0 %v656
      %v753 = vpop.f32.mrf.mxu0
      %v754 = vadd.f32 %v574, %v753
      %755 = vmatmul.f32.gmra.mxu0 %v658
      %v756 = vpop.f32.mrf.mxu0
      %v757 = vadd.f32 %v577, %v756
      %758 = vmatmul.f32.gmra.mxu0 %v660
      %v759 = vpop.f32.mrf.mxu0
      %v760 = vadd.f32 %v580, %v759
      %761 = vmatmul.f32.gmra.mxu0 %v662
      %v762 = vpop.f32.mrf.mxu0
      %v763 = vadd.f32 %v583, %v762
      %764 = vmatmul.f32.gmra.mxu0 %v664
      %v765 = vpop.f32.mrf.mxu0
      %v766 = vadd.f32 %v586, %v765
      %767 = vmatmul.f32.gmra.mxu0 %v666
      %v768 = vpop.f32.mrf.mxu0
      %v769 = vadd.f32 %v589, %v768
      %770 = vmatmul.f32.gmra.mxu0 %v668
      %v771 = vpop.f32.mrf.mxu0
      %v772 = vadd.f32 %v592, %v771
      %773 = vmatmul.f32.gmra.mxu0 %v670
      %v774 = vpop.f32.mrf.mxu0
      %v775 = vadd.f32 %v595, %v774
      %776 = vmatmul.f32.gmra.mxu0 %v672
      %v777 = vpop.f32.mrf.mxu0
      %v778 = vadd.f32 %v598, %v777
      %779 = vmatmul.f32.gmra.mxu0 %v674
      %v780 = vpop.f32.mrf.mxu0
      %v781 = vadd.f32 %v601, %v780
      %782 = vmatmul.f32.gmra.mxu0 %v676
      %v783 = vpop.f32.mrf.mxu0
      %v784 = vadd.f32 %v604, %v783
      %785 = vmatmul.f32.gmra.mxu0 %v678
      %v786 = vpop.f32.mrf.mxu0
      %v787 = vadd.f32 %v607, %v786
      %788 = vmatmul.f32.gmra.mxu0 %v680
      %v789 = vpop.f32.mrf.mxu0
      %v790 = vadd.f32 %v610, %v789
      %791 = vmatmul.f32.gmra.mxu0 %v682
      %v792 = vpop.f32.mrf.mxu0
      %v793 = vadd.f32 %v613, %v792
      %794 = vmatmul.f32.gmra.mxu0 %v684
      %v795 = vpop.f32.mrf.mxu0
      %v796 = vadd.f32 %v616, %v795
      %797 = vmatmul.f32.gmra.mxu0 %v686
      %v798 = vpop.f32.mrf.mxu0
      %v799 = vadd.f32 %v619, %v798
      %800 = vmatmul.f32.gmra.mxu0 %v688
      %v801 = vpop.f32.mrf.mxu0
      %v802 = vadd.f32 %v622, %v801
      %803 = vmatmul.f32.gmra.mxu0 %v690
      %v804 = vpop.f32.mrf.mxu0
      %v805 = vadd.f32 %v625, %v804
      %806 = vmatmul.f32.gmra.mxu0 %v692
      %v807 = vpop.f32.mrf.mxu0
      %v808 = vadd.f32 %v628, %v807
      %809 = vdwg.mxu0
      %vm810 = vcmask 1045504
      %v811 = vrot.slane %v268, 2
      %v812 = vrot.slane %v269, 2
      %v813 = vsel %vm810, %v811, %v812
      %v814 = vrot.slane %v270, 2
      %v815 = vsel %vm810, %v812, %v814
      %v816 = vrot.slane %v271, 2
      %v817 = vrot.slane %v272, 2
      %v818 = vsel %vm810, %v816, %v817
      %v819 = vrot.slane %v273, 2
      %v820 = vsel %vm810, %v817, %v819
      %v821 = vrot.slane %v274, 2
      %v822 = vrot.slane %v275, 2
      %v823 = vsel %vm810, %v821, %v822
      %v824 = vrot.slane %v276, 2
      %v825 = vsel %vm810, %v822, %v824
      %v826 = vrot.slane %v277, 2
      %v827 = vrot.slane %v278, 2
      %v828 = vsel %vm810, %v826, %v827
      %v829 = vrot.slane %v279, 2
      %v830 = vsel %vm810, %v827, %v829
      %v831 = vrot.slane %v280, 2
      %v832 = vrot.slane %v281, 2
      %v833 = vsel %vm810, %v831, %v832
      %v834 = vrot.slane %v282, 2
      %v835 = vsel %vm810, %v832, %v834
      %v836 = vrot.slane %v283, 2
      %v837 = vrot.slane %v284, 2
      %v838 = vsel %vm810, %v836, %v837
      %v839 = vrot.slane %v285, 2
      %v840 = vsel %vm810, %v837, %v839
      %v841 = vrot.slane %v286, 2
      %v842 = vrot.slane %v287, 2
      %v843 = vsel %vm810, %v841, %v842
      %v844 = vrot.slane %v288, 2
      %v845 = vsel %vm810, %v842, %v844
      %v846 = vrot.slane %v289, 2
      %v847 = vrot.slane %v290, 2
      %v848 = vsel %vm810, %v846, %v847
      %v849 = vrot.slane %v291, 2
      %v850 = vsel %vm810, %v847, %v849
      %v851 = vrot.slane %v292, 2
      %v852 = vrot.slane %v293, 2
      %v853 = vsel %vm810, %v851, %v852
      %v854 = vrot.slane %v294, 2
      %v855 = vsel %vm810, %v852, %v854
      %v856 = vrot.slane %v295, 2
      %v857 = vrot.slane %v296, 2
      %v858 = vsel %vm810, %v856, %v857
      %v859 = vrot.slane %v297, 2
      %v860 = vsel %vm810, %v857, %v859
      %v861 = vrot.slane %v298, 2
      %v862 = vrot.slane %v299, 2
      %v863 = vsel %vm810, %v861, %v862
      %v864 = vrot.slane %v300, 2
      %v865 = vsel %vm810, %v862, %v864
      %v866 = vrot.slane %v301, 2
      %v867 = vrot.slane %v302, 2
      %v868 = vsel %vm810, %v866, %v867
      %v869 = vrot.slane %v303, 2
      %v870 = vsel %vm810, %v867, %v869
      %v871 = vrot.slane %v304, 2
      %v872 = vrot.slane %v305, 2
      %v873 = vsel %vm810, %v871, %v872
      %v874 = vrot.slane %v306, 2
      %v875 = vsel %vm810, %v872, %v874
      %v876 = vrot.slane %v307, 2
      %v877 = vrot.slane %v308, 2
      %v878 = vsel %vm810, %v876, %v877
      %v879 = vrot.slane %v309, 2
      %v880 = vsel %vm810, %v877, %v879
      %v881 = vrot.slane %v310, 2
      %v882 = vrot.slane %v311, 2
      %v883 = vsel %vm810, %v881, %v882
      %v884 = vrot.slane %v312, 2
      %v885 = vsel %vm810, %v882, %v884
      %v886 = vrot.slane %v313, 2
      %v887 = vrot.slane %v314, 2
      %v888 = vsel %vm810, %v886, %v887
      %v889 = vrot.slane %v315, 2
      %v890 = vsel %vm810, %v887, %v889
      %s891 = scalar_lea.vmem %s1, 8
      %v892 = vld [vmem:[%s891] sm:$0xf]
      %v893 = vsel %vm448, %v813, 0
      %v895 = vsel %vm448, %v815, 0
      %v897 = vsel %vm448, %v818, 0
      %v899 = vsel %vm448, %v820, 0
      %v901 = vsel %vm448, %v823, 0
      %v903 = vsel %vm448, %v825, 0
      %v905 = vsel %vm448, %v828, 0
      %v907 = vsel %vm448, %v830, 0
      %v909 = vsel %vm448, %v833, 0
      %v911 = vsel %vm448, %v835, 0
      %v913 = vsel %vm448, %v838, 0
      %v915 = vsel %vm448, %v840, 0
      %v917 = vsel %vm448, %v843, 0
      %v919 = vsel %vm448, %v845, 0
      %v921 = vsel %vm448, %v848, 0
      %v923 = vsel %vm448, %v850, 0
      %v925 = vsel %vm448, %v853, 0
      %v927 = vsel %vm448, %v855, 0
      %v929 = vsel %vm448, %v858, 0
      %v931 = vsel %vm448, %v860, 0
      %v933 = vsel %vm448, %v863, 0
      %v935 = vsel %vm448, %v865, 0
      %v937 = vsel %vm448, %v868, 0
      %v939 = vsel %vm448, %v870, 0
      %v941 = vsel %vm448, %v873, 0
      %v943 = vsel %vm448, %v875, 0
      %v945 = vsel %vm448, %v878, 0
      %v947 = vsel %vm448, %v880, 0
      %v949 = vsel %vm448, %v883, 0
      %v951 = vsel %vm448, %v885, 0
      %v953 = vsel %vm448, %v888, 0
      %v955 = vsel %vm448, %v890, 0
      %v958 = vsel %vm513, %v892, 0
      %960 = vmatpush.msra.mxu0 0.0
      %961 = vmatpush.msra.mxu0 0.0
      %962 = vmatpush.msra.mxu0 0.0
      %963 = vmatpush.msra.mxu0 0.0
      %964 = vmatpush.msra.mxu0 0.0
      %965 = vmatpush.msra.mxu0 0.0
      %966 = vmatpush.msra.mxu0 0.0
      %967 = vmatpush.msra.mxu0 0.0
      %968 = vmatpush.msra.mxu0 0.0
      %969 = vmatpush.msra.mxu0 0.0
      %970 = vmatpush.msra.mxu0 0.0
      %971 = vmatpush.msra.mxu0 0.0
      %972 = vmatpush.msra.mxu0 0.0
      %973 = vmatpush.msra.mxu0 0.0
      %974 = vmatpush.msra.mxu0 0.0
      %975 = vmatpush.msra.mxu0 %v958
      %976 = vmatmul.f32.gmra.mxu0 %v893
      %v977 = vpop.f32.mrf.mxu0
      %v978 = vadd.f32 0.0, %v977
      %979 = vmatmul.f32.gmra.mxu0 %v895
      %v980 = vpop.f32.mrf.mxu0
      %v981 = vadd.f32 0.0, %v980
      %982 = vmatmul.f32.gmra.mxu0 %v897
      %v983 = vpop.f32.mrf.mxu0
      %v984 = vadd.f32 0.0, %v983
      %985 = vmatmul.f32.gmra.mxu0 %v899
      %v986 = vpop.f32.mrf.mxu0
      %v987 = vadd.f32 0.0, %v986
      %988 = vmatmul.f32.gmra.mxu0 %v901
      %v989 = vpop.f32.mrf.mxu0
      %v990 = vadd.f32 0.0, %v989
      %991 = vmatmul.f32.gmra.mxu0 %v903
      %v992 = vpop.f32.mrf.mxu0
      %v993 = vadd.f32 0.0, %v992
      %994 = vmatmul.f32.gmra.mxu0 %v905
      %v995 = vpop.f32.mrf.mxu0
      %v996 = vadd.f32 0.0, %v995
      %997 = vmatmul.f32.gmra.mxu0 %v907
      %v998 = vpop.f32.mrf.mxu0
      %v999 = vadd.f32 0.0, %v998
      %1000 = vmatmul.f32.gmra.mxu0 %v909
      %v1001 = vpop.f32.mrf.mxu0
      %v1002 = vadd.f32 0.0, %v1001
      %1003 = vmatmul.f32.gmra.mxu0 %v911
      %v1004 = vpop.f32.mrf.mxu0
      %v1005 = vadd.f32 0.0, %v1004
      %1006 = vmatmul.f32.gmra.mxu0 %v913
      %v1007 = vpop.f32.mrf.mxu0
      %v1008 = vadd.f32 0.0, %v1007
      %1009 = vmatmul.f32.gmra.mxu0 %v915
      %v1010 = vpop.f32.mrf.mxu0
      %v1011 = vadd.f32 0.0, %v1010
      %1012 = vmatmul.f32.gmra.mxu0 %v917
      %v1013 = vpop.f32.mrf.mxu0
      %v1014 = vadd.f32 0.0, %v1013
      %1015 = vmatmul.f32.gmra.mxu0 %v919
      %v1016 = vpop.f32.mrf.mxu0
      %v1017 = vadd.f32 0.0, %v1016
      %1018 = vmatmul.f32.gmra.mxu0 %v921
      %v1019 = vpop.f32.mrf.mxu0
      %v1020 = vadd.f32 0.0, %v1019
      %1021 = vmatmul.f32.gmra.mxu0 %v923
      %v1022 = vpop.f32.mrf.mxu0
      %v1023 = vadd.f32 0.0, %v1022
      %1024 = vmatmul.f32.gmra.mxu0 %v925
      %v1025 = vpop.f32.mrf.mxu0
      %v1026 = vadd.f32 0.0, %v1025
      %1027 = vmatmul.f32.gmra.mxu0 %v927
      %v1028 = vpop.f32.mrf.mxu0
      %v1029 = vadd.f32 0.0, %v1028
      %1030 = vmatmul.f32.gmra.mxu0 %v929
      %v1031 = vpop.f32.mrf.mxu0
      %v1032 = vadd.f32 0.0, %v1031
      %1033 = vmatmul.f32.gmra.mxu0 %v931
      %v1034 = vpop.f32.mrf.mxu0
      %v1035 = vadd.f32 0.0, %v1034
      %1036 = vmatmul.f32.gmra.mxu0 %v933
      %v1037 = vpop.f32.mrf.mxu0
      %v1038 = vadd.f32 0.0, %v1037
      %1039 = vmatmul.f32.gmra.mxu0 %v935
      %v1040 = vpop.f32.mrf.mxu0
      %v1041 = vadd.f32 0.0, %v1040
      %1042 = vmatmul.f32.gmra.mxu0 %v937
      %v1043 = vpop.f32.mrf.mxu0
      %v1044 = vadd.f32 0.0, %v1043
      %1045 = vmatmul.f32.gmra.mxu0 %v939
      %v1046 = vpop.f32.mrf.mxu0
      %v1047 = vadd.f32 0.0, %v1046
      %1048 = vmatmul.f32.gmra.mxu0 %v941
      %v1049 = vpop.f32.mrf.mxu0
      %v1050 = vadd.f32 0.0, %v1049
      %1051 = vmatmul.f32.gmra.mxu0 %v943
      %v1052 = vpop.f32.mrf.mxu0
      %v1053 = vadd.f32 0.0, %v1052
      %1054 = vmatmul.f32.gmra.mxu0 %v945
      %v1055 = vpop.f32.mrf.mxu0
      %v1056 = vadd.f32 0.0, %v1055
      %1057 = vmatmul.f32.gmra.mxu0 %v947
      %v1058 = vpop.f32.mrf.mxu0
      %v1059 = vadd.f32 0.0, %v1058
      %1060 = vmatmul.f32.gmra.mxu0 %v949
      %v1061 = vpop.f32.mrf.mxu0
      %v1062 = vadd.f32 0.0, %v1061
      %1063 = vmatmul.f32.gmra.mxu0 %v951
      %v1064 = vpop.f32.mrf.mxu0
      %v1065 = vadd.f32 0.0, %v1064
      %1066 = vmatmul.f32.gmra.mxu0 %v953
      %v1067 = vpop.f32.mrf.mxu0
      %v1068 = vadd.f32 0.0, %v1067
      %1069 = vmatmul.f32.gmra.mxu0 %v955
      %v1070 = vpop.f32.mrf.mxu0
      %v1071 = vadd.f32 0.0, %v1070
      %1072 = vdwg.mxu0
      %v1073 = vadd.f32 %v715, %v978
      %v1074 = vadd.f32 %v718, %v981
      %v1075 = vadd.f32 %v721, %v984
      %v1076 = vadd.f32 %v724, %v987
      %v1077 = vadd.f32 %v727, %v990
      %v1078 = vadd.f32 %v730, %v993
      %v1079 = vadd.f32 %v733, %v996
      %v1080 = vadd.f32 %v736, %v999
      %v1081 = vadd.f32 %v739, %v1002
      %v1082 = vadd.f32 %v742, %v1005
      %v1083 = vadd.f32 %v745, %v1008
      %v1084 = vadd.f32 %v748, %v1011
      %v1085 = vadd.f32 %v751, %v1014
      %v1086 = vadd.f32 %v754, %v1017
      %v1087 = vadd.f32 %v757, %v1020
      %v1088 = vadd.f32 %v760, %v1023
      %v1089 = vadd.f32 %v763, %v1026
      %v1090 = vadd.f32 %v766, %v1029
      %v1091 = vadd.f32 %v769, %v1032
      %v1092 = vadd.f32 %v772, %v1035
      %v1093 = vadd.f32 %v775, %v1038
      %v1094 = vadd.f32 %v778, %v1041
      %v1095 = vadd.f32 %v781, %v1044
      %v1096 = vadd.f32 %v784, %v1047
      %v1097 = vadd.f32 %v787, %v1050
      %v1098 = vadd.f32 %v790, %v1053
      %v1099 = vadd.f32 %v793, %v1056
      %v1100 = vadd.f32 %v796, %v1059
      %v1101 = vadd.f32 %v799, %v1062
      %v1102 = vadd.f32 %v802, %v1065
      %v1103 = vadd.f32 %v805, %v1068
      %v1104 = vadd.f32 %v808, %v1071
      %s1105 = sadd.s32 %s265, 1
      %s1106 = smul.u32 %s1105, 24
      %s1107 = scalar_lea.vmem %s248, %s1106
      %v1108 = vld [vmem:[%s1107] sm:$0xff]
      %v1109 = vld [vmem:[%s1107 + $0x8] sm:$0xff]
      %v1110 = vld [vmem:[%s1107 + $0x10] sm:$0x3]
      %v1111 = vld [vmem:[%s1107 + $0x18] sm:$0xff]
      %v1112 = vld [vmem:[%s1107 + $0x20] sm:$0xff]
      %v1113 = vld [vmem:[%s1107 + $0x28] sm:$0x3]
      %v1114 = vld [vmem:[%s1107 + $0x30] sm:$0xff]
      %v1115 = vld [vmem:[%s1107 + $0x38] sm:$0xff]
      %v1116 = vld [vmem:[%s1107 + $0x40] sm:$0x3]
      %v1117 = vld [vmem:[%s1107 + $0x48] sm:$0xff]
      %v1118 = vld [vmem:[%s1107 + $0x50] sm:$0xff]
      %v1119 = vld [vmem:[%s1107 + $0x58] sm:$0x3]
      %v1120 = vld [vmem:[%s1107 + $0x60] sm:$0xff]
      %v1121 = vld [vmem:[%s1107 + $0x68] sm:$0xff]
      %v1122 = vld [vmem:[%s1107 + $0x70] sm:$0x3]
      %v1123 = vld [vmem:[%s1107 + $0x78] sm:$0xff]
      %v1124 = vld [vmem:[%s1107 + $0x80] sm:$0xff]
      %v1125 = vld [vmem:[%s1107 + $0x88] sm:$0x3]
      %v1126 = vld [vmem:[%s1107 + $0x90] sm:$0xff]
      %v1127 = vld [vmem:[%s1107 + $0x98] sm:$0xff]
      %v1128 = vld [vmem:[%s1107 + $0xa0] sm:$0x3]
      %v1129 = vld [vmem:[%s1107 + $0xa8] sm:$0xff]
      %v1130 = vld [vmem:[%s1107 + $0xb0] sm:$0xff]
      %v1131 = vld [vmem:[%s1107 + $0xb8] sm:$0x3]
      %v1132 = vld [vmem:[%s1107 + $0xc0] sm:$0xff]
      %v1133 = vld [vmem:[%s1107 + $0xc8] sm:$0xff]
      %v1134 = vld [vmem:[%s1107 + $0xd0] sm:$0x3]
      %v1135 = vld [vmem:[%s1107 + $0xd8] sm:$0xff]
      %v1136 = vld [vmem:[%s1107 + $0xe0] sm:$0xff]
      %v1137 = vld [vmem:[%s1107 + $0xe8] sm:$0x3]
      %v1138 = vld [vmem:[%s1107 + $0xf0] sm:$0xff]
      %v1139 = vld [vmem:[%s1107 + $0xf8] sm:$0xff]
      %v1140 = vld [vmem:[%s1107 + $0x100] sm:$0x3]
      %v1141 = vld [vmem:[%s1107 + $0x108] sm:$0xff]
      %v1142 = vld [vmem:[%s1107 + $0x110] sm:$0xff]
      %v1143 = vld [vmem:[%s1107 + $0x118] sm:$0x3]
      %v1144 = vld [vmem:[%s1107 + $0x120] sm:$0xff]
      %v1145 = vld [vmem:[%s1107 + $0x128] sm:$0xff]
      %v1146 = vld [vmem:[%s1107 + $0x130] sm:$0x3]
      %v1147 = vld [vmem:[%s1107 + $0x138] sm:$0xff]
      %v1148 = vld [vmem:[%s1107 + $0x140] sm:$0xff]
      %v1149 = vld [vmem:[%s1107 + $0x148] sm:$0x3]
      %v1150 = vld [vmem:[%s1107 + $0x150] sm:$0xff]
      %v1151 = vld [vmem:[%s1107 + $0x158] sm:$0xff]
      %v1152 = vld [vmem:[%s1107 + $0x160] sm:$0x3]
      %v1153 = vld [vmem:[%s1107 + $0x168] sm:$0xff]
      %v1154 = vld [vmem:[%s1107 + $0x170] sm:$0xff]
      %v1155 = vld [vmem:[%s1107 + $0x178] sm:$0x3]
      %s1156 = scalar_lea.vmem %s1, 12
      %v1157 = vld [vmem:[%s1156] sm:$0xf]
      %v1159 = vsel %vm448, %v1108, 0
      %v1162 = vsel %vm448, %v1109, 0
      %v1165 = vsel %vm448, %v1111, 0
      %v1168 = vsel %vm448, %v1112, 0
      %v1171 = vsel %vm448, %v1114, 0
      %v1174 = vsel %vm448, %v1115, 0
      %v1177 = vsel %vm448, %v1117, 0
      %v1180 = vsel %vm448, %v1118, 0
      %v1183 = vsel %vm448, %v1120, 0
      %v1186 = vsel %vm448, %v1121, 0
      %v1189 = vsel %vm448, %v1123, 0
      %v1192 = vsel %vm448, %v1124, 0
      %v1195 = vsel %vm448, %v1126, 0
      %v1198 = vsel %vm448, %v1127, 0
      %v1201 = vsel %vm448, %v1129, 0
      %v1204 = vsel %vm448, %v1130, 0
      %v1207 = vsel %vm448, %v1132, 0
      %v1210 = vsel %vm448, %v1133, 0
      %v1213 = vsel %vm448, %v1135, 0
      %v1216 = vsel %vm448, %v1136, 0
      %v1219 = vsel %vm448, %v1138, 0
      %v1222 = vsel %vm448, %v1139, 0
      %v1225 = vsel %vm448, %v1141, 0
      %v1228 = vsel %vm448, %v1142, 0
      %v1231 = vsel %vm448, %v1144, 0
      %v1234 = vsel %vm448, %v1145, 0
      %v1237 = vsel %vm448, %v1147, 0
      %v1240 = vsel %vm448, %v1148, 0
      %v1243 = vsel %vm448, %v1150, 0
      %v1246 = vsel %vm448, %v1151, 0
      %v1249 = vsel %vm448, %v1153, 0
      %v1252 = vsel %vm448, %v1154, 0
      %v1255 = vsel %vm513, %v1157, 0
      %1257 = vmatpush.msra.mxu0 0.0
      %1258 = vmatpush.msra.mxu0 0.0
      %1259 = vmatpush.msra.mxu0 0.0
      %1260 = vmatpush.msra.mxu0 0.0
      %1261 = vmatpush.msra.mxu0 0.0
      %1262 = vmatpush.msra.mxu0 0.0
      %1263 = vmatpush.msra.mxu0 0.0
      %1264 = vmatpush.msra.mxu0 0.0
      %1265 = vmatpush.msra.mxu0 0.0
      %1266 = vmatpush.msra.mxu0 0.0
      %1267 = vmatpush.msra.mxu0 0.0
      %1268 = vmatpush.msra.mxu0 0.0
      %1269 = vmatpush.msra.mxu0 0.0
      %1270 = vmatpush.msra.mxu0 0.0
      %1271 = vmatpush.msra.mxu0 0.0
      %1272 = vmatpush.msra.mxu0 %v1255
      %1273 = vmatmul.f32.gmra.mxu0 %v1159
      %v1274 = vpop.f32.mrf.mxu0
      %v1275 = vadd.f32 0.0, %v1274
      %1276 = vmatmul.f32.gmra.mxu0 %v1162
      %v1277 = vpop.f32.mrf.mxu0
      %v1278 = vadd.f32 0.0, %v1277
      %1279 = vmatmul.f32.gmra.mxu0 %v1165
      %v1280 = vpop.f32.mrf.mxu0
      %v1281 = vadd.f32 0.0, %v1280
      %1282 = vmatmul.f32.gmra.mxu0 %v1168
      %v1283 = vpop.f32.mrf.mxu0
      %v1284 = vadd.f32 0.0, %v1283
      %1285 = vmatmul.f32.gmra.mxu0 %v1171
      %v1286 = vpop.f32.mrf.mxu0
      %v1287 = vadd.f32 0.0, %v1286
      %1288 = vmatmul.f32.gmra.mxu0 %v1174
      %v1289 = vpop.f32.mrf.mxu0
      %v1290 = vadd.f32 0.0, %v1289
      %1291 = vmatmul.f32.gmra.mxu0 %v1177
      %v1292 = vpop.f32.mrf.mxu0
      %v1293 = vadd.f32 0.0, %v1292
      %1294 = vmatmul.f32.gmra.mxu0 %v1180
      %v1295 = vpop.f32.mrf.mxu0
      %v1296 = vadd.f32 0.0, %v1295
      %1297 = vmatmul.f32.gmra.mxu0 %v1183
      %v1298 = vpop.f32.mrf.mxu0
      %v1299 = vadd.f32 0.0, %v1298
      %1300 = vmatmul.f32.gmra.mxu0 %v1186
      %v1301 = vpop.f32.mrf.mxu0
      %v1302 = vadd.f32 0.0, %v1301
      %1303 = vmatmul.f32.gmra.mxu0 %v1189
      %v1304 = vpop.f32.mrf.mxu0
      %v1305 = vadd.f32 0.0, %v1304
      %1306 = vmatmul.f32.gmra.mxu0 %v1192
      %v1307 = vpop.f32.mrf.mxu0
      %v1308 = vadd.f32 0.0, %v1307
      %1309 = vmatmul.f32.gmra.mxu0 %v1195
      %v1310 = vpop.f32.mrf.mxu0
      %v1311 = vadd.f32 0.0, %v1310
      %1312 = vmatmul.f32.gmra.mxu0 %v1198
      %v1313 = vpop.f32.mrf.mxu0
      %v1314 = vadd.f32 0.0, %v1313
      %1315 = vmatmul.f32.gmra.mxu0 %v1201
      %v1316 = vpop.f32.mrf.mxu0
      %v1317 = vadd.f32 0.0, %v1316
      %1318 = vmatmul.f32.gmra.mxu0 %v1204
      %v1319 = vpop.f32.mrf.mxu0
      %v1320 = vadd.f32 0.0, %v1319
      %1321 = vmatmul.f32.gmra.mxu0 %v1207
      %v1322 = vpop.f32.mrf.mxu0
      %v1323 = vadd.f32 0.0, %v1322
      %1324 = vmatmul.f32.gmra.mxu0 %v1210
      %v1325 = vpop.f32.mrf.mxu0
      %v1326 = vadd.f32 0.0, %v1325
      %1327 = vmatmul.f32.gmra.mxu0 %v1213
      %v1328 = vpop.f32.mrf.mxu0
      %v1329 = vadd.f32 0.0, %v1328
      %1330 = vmatmul.f32.gmra.mxu0 %v1216
      %v1331 = vpop.f32.mrf.mxu0
      %v1332 = vadd.f32 0.0, %v1331
      %1333 = vmatmul.f32.gmra.mxu0 %v1219
      %v1334 = vpop.f32.mrf.mxu0
      %v1335 = vadd.f32 0.0, %v1334
      %1336 = vmatmul.f32.gmra.mxu0 %v1222
      %v1337 = vpop.f32.mrf.mxu0
      %v1338 = vadd.f32 0.0, %v1337
      %1339 = vmatmul.f32.gmra.mxu0 %v1225
      %v1340 = vpop.f32.mrf.mxu0
      %v1341 = vadd.f32 0.0, %v1340
      %1342 = vmatmul.f32.gmra.mxu0 %v1228
      %v1343 = vpop.f32.mrf.mxu0
      %v1344 = vadd.f32 0.0, %v1343
      %1345 = vmatmul.f32.gmra.mxu0 %v1231
      %v1346 = vpop.f32.mrf.mxu0
      %v1347 = vadd.f32 0.0, %v1346
      %1348 = vmatmul.f32.gmra.mxu0 %v1234
      %v1349 = vpop.f32.mrf.mxu0
      %v1350 = vadd.f32 0.0, %v1349
      %1351 = vmatmul.f32.gmra.mxu0 %v1237
      %v1352 = vpop.f32.mrf.mxu0
      %v1353 = vadd.f32 0.0, %v1352
      %1354 = vmatmul.f32.gmra.mxu0 %v1240
      %v1355 = vpop.f32.mrf.mxu0
      %v1356 = vadd.f32 0.0, %v1355
      %1357 = vmatmul.f32.gmra.mxu0 %v1243
      %v1358 = vpop.f32.mrf.mxu0
      %v1359 = vadd.f32 0.0, %v1358
      %1360 = vmatmul.f32.gmra.mxu0 %v1246
      %v1361 = vpop.f32.mrf.mxu0
      %v1362 = vadd.f32 0.0, %v1361
      %1363 = vmatmul.f32.gmra.mxu0 %v1249
      %v1364 = vpop.f32.mrf.mxu0
      %v1365 = vadd.f32 0.0, %v1364
      %1366 = vmatmul.f32.gmra.mxu0 %v1252
      %v1367 = vpop.f32.mrf.mxu0
      %v1368 = vadd.f32 0.0, %v1367
      %1369 = vdwg.mxu0
      %v1370 = vadd.f32 %v1073, %v1275
      %v1371 = vadd.f32 %v1074, %v1278
      %v1372 = vadd.f32 %v1075, %v1281
      %v1373 = vadd.f32 %v1076, %v1284
      %v1374 = vadd.f32 %v1077, %v1287
      %v1375 = vadd.f32 %v1078, %v1290
      %v1376 = vadd.f32 %v1079, %v1293
      %v1377 = vadd.f32 %v1080, %v1296
      %v1378 = vadd.f32 %v1081, %v1299
      %v1379 = vadd.f32 %v1082, %v1302
      %v1380 = vadd.f32 %v1083, %v1305
      %v1381 = vadd.f32 %v1084, %v1308
      %v1382 = vadd.f32 %v1085, %v1311
      %v1383 = vadd.f32 %v1086, %v1314
      %v1384 = vadd.f32 %v1087, %v1317
      %v1385 = vadd.f32 %v1088, %v1320
      %v1386 = vadd.f32 %v1089, %v1323
      %v1387 = vadd.f32 %v1090, %v1326
      %v1388 = vadd.f32 %v1091, %v1329
      %v1389 = vadd.f32 %v1092, %v1332
      %v1390 = vadd.f32 %v1093, %v1335
      %v1391 = vadd.f32 %v1094, %v1338
      %v1392 = vadd.f32 %v1095, %v1341
      %v1393 = vadd.f32 %v1096, %v1344
      %v1394 = vadd.f32 %v1097, %v1347
      %v1395 = vadd.f32 %v1098, %v1350
      %v1396 = vadd.f32 %v1099, %v1353
      %v1397 = vadd.f32 %v1100, %v1356
      %v1398 = vadd.f32 %v1101, %v1359
      %v1399 = vadd.f32 %v1102, %v1362
      %v1400 = vadd.f32 %v1103, %v1365
      %v1401 = vadd.f32 %v1104, %v1368
      %v1418 = vrot.slane %v1108, 1
      %v1419 = vrot.slane %v1109, 1
      %v1420 = vsel %vm365, %v1418, %v1419
      %v1421 = vrot.slane %v1110, 1
      %v1422 = vsel %vm365, %v1419, %v1421
      %v1423 = vrot.slane %v1111, 1
      %v1424 = vrot.slane %v1112, 1
      %v1425 = vsel %vm365, %v1423, %v1424
      %v1426 = vrot.slane %v1113, 1
      %v1427 = vsel %vm365, %v1424, %v1426
      %v1428 = vrot.slane %v1114, 1
      %v1429 = vrot.slane %v1115, 1
      %v1430 = vsel %vm365, %v1428, %v1429
      %v1431 = vrot.slane %v1116, 1
      %v1432 = vsel %vm365, %v1429, %v1431
      %v1433 = vrot.slane %v1117, 1
      %v1434 = vrot.slane %v1118, 1
      %v1435 = vsel %vm365, %v1433, %v1434
      %v1436 = vrot.slane %v1119, 1
      %v1437 = vsel %vm365, %v1434, %v1436
      %v1438 = vrot.slane %v1120, 1
      %v1439 = vrot.slane %v1121, 1
      %v1440 = vsel %vm365, %v1438, %v1439
      %v1441 = vrot.slane %v1122, 1
      %v1442 = vsel %vm365, %v1439, %v1441
      %v1443 = vrot.slane %v1123, 1
      %v1444 = vrot.slane %v1124, 1
      %v1445 = vsel %vm365, %v1443, %v1444
      %v1446 = vrot.slane %v1125, 1
      %v1447 = vsel %vm365, %v1444, %v1446
      %v1448 = vrot.slane %v1126, 1
      %v1449 = vrot.slane %v1127, 1
      %v1450 = vsel %vm365, %v1448, %v1449
      %v1451 = vrot.slane %v1128, 1
      %v1452 = vsel %vm365, %v1449, %v1451
      %v1453 = vrot.slane %v1129, 1
      %v1454 = vrot.slane %v1130, 1
      %v1455 = vsel %vm365, %v1453, %v1454
      %v1456 = vrot.slane %v1131, 1
      %v1457 = vsel %vm365, %v1454, %v1456
      %v1458 = vrot.slane %v1132, 1
      %v1459 = vrot.slane %v1133, 1
      %v1460 = vsel %vm365, %v1458, %v1459
      %v1461 = vrot.slane %v1134, 1
      %v1462 = vsel %vm365, %v1459, %v1461
      %v1463 = vrot.slane %v1135, 1
      %v1464 = vrot.slane %v1136, 1
      %v1465 = vsel %vm365, %v1463, %v1464
      %v1466 = vrot.slane %v1137, 1
      %v1467 = vsel %vm365, %v1464, %v1466
      %v1468 = vrot.slane %v1138, 1
      %v1469 = vrot.slane %v1139, 1
      %v1470 = vsel %vm365, %v1468, %v1469
      %v1471 = vrot.slane %v1140, 1
      %v1472 = vsel %vm365, %v1469, %v1471
      %v1473 = vrot.slane %v1141, 1
      %v1474 = vrot.slane %v1142, 1
      %v1475 = vsel %vm365, %v1473, %v1474
      %v1476 = vrot.slane %v1143, 1
      %v1477 = vsel %vm365, %v1474, %v1476
      %v1478 = vrot.slane %v1144, 1
      %v1479 = vrot.slane %v1145, 1
      %v1480 = vsel %vm365, %v1478, %v1479
      %v1481 = vrot.slane %v1146, 1
      %v1482 = vsel %vm365, %v1479, %v1481
      %v1483 = vrot.slane %v1147, 1
      %v1484 = vrot.slane %v1148, 1
      %v1485 = vsel %vm365, %v1483, %v1484
      %v1486 = vrot.slane %v1149, 1
      %v1487 = vsel %vm365, %v1484, %v1486
      %v1488 = vrot.slane %v1150, 1
      %v1489 = vrot.slane %v1151, 1
      %v1490 = vsel %vm365, %v1488, %v1489
      %v1491 = vrot.slane %v1152, 1
      %v1492 = vsel %vm365, %v1489, %v1491
      %v1493 = vrot.slane %v1153, 1
      %v1494 = vrot.slane %v1154, 1
      %v1495 = vsel %vm365, %v1493, %v1494
      %v1496 = vrot.slane %v1155, 1
      %v1497 = vsel %vm365, %v1494, %v1496
      %s1498 = scalar_lea.vmem %s1, 16
      %v1499 = vld [vmem:[%s1498] sm:$0xf]
      %v1500 = vsel %vm448, %v1420, 0
      %v1502 = vsel %vm448, %v1422, 0
      %v1504 = vsel %vm448, %v1425, 0
      %v1506 = vsel %vm448, %v1427, 0
      %v1508 = vsel %vm448, %v1430, 0
      %v1510 = vsel %vm448, %v1432, 0
      %v1512 = vsel %vm448, %v1435, 0
      %v1514 = vsel %vm448, %v1437, 0
      %v1516 = vsel %vm448, %v1440, 0
      %v1518 = vsel %vm448, %v1442, 0
      %v1520 = vsel %vm448, %v1445, 0
      %v1522 = vsel %vm448, %v1447, 0
      %v1524 = vsel %vm448, %v1450, 0
      %v1526 = vsel %vm448, %v1452, 0
      %v1528 = vsel %vm448, %v1455, 0
      %v1530 = vsel %vm448, %v1457, 0
      %v1532 = vsel %vm448, %v1460, 0
      %v1534 = vsel %vm448, %v1462, 0
      %v1536 = vsel %vm448, %v1465, 0
      %v1538 = vsel %vm448, %v1467, 0
      %v1540 = vsel %vm448, %v1470, 0
      %v1542 = vsel %vm448, %v1472, 0
      %v1544 = vsel %vm448, %v1475, 0
      %v1546 = vsel %vm448, %v1477, 0
      %v1548 = vsel %vm448, %v1480, 0
      %v1550 = vsel %vm448, %v1482, 0
      %v1552 = vsel %vm448, %v1485, 0
      %v1554 = vsel %vm448, %v1487, 0
      %v1556 = vsel %vm448, %v1490, 0
      %v1558 = vsel %vm448, %v1492, 0
      %v1560 = vsel %vm448, %v1495, 0
      %v1562 = vsel %vm448, %v1497, 0
      %v1565 = vsel %vm513, %v1499, 0
      %1567 = vmatpush.msra.mxu0 0.0
      %1568 = vmatpush.msra.mxu0 0.0
      %1569 = vmatpush.msra.mxu0 0.0
      %1570 = vmatpush.msra.mxu0 0.0
      %1571 = vmatpush.msra.mxu0 0.0
      %1572 = vmatpush.msra.mxu0 0.0
      %1573 = vmatpush.msra.mxu0 0.0
      %1574 = vmatpush.msra.mxu0 0.0
      %1575 = vmatpush.msra.mxu0 0.0
      %1576 = vmatpush.msra.mxu0 0.0
      %1577 = vmatpush.msra.mxu0 0.0
      %1578 = vmatpush.msra.mxu0 0.0
      %1579 = vmatpush.msra.mxu0 0.0
      %1580 = vmatpush.msra.mxu0 0.0
      %1581 = vmatpush.msra.mxu0 0.0
      %1582 = vmatpush.msra.mxu0 %v1565
      %1583 = vmatmul.f32.gmra.mxu0 %v1500
      %v1584 = vpop.f32.mrf.mxu0
      %v1585 = vadd.f32 0.0, %v1584
      %1586 = vmatmul.f32.gmra.mxu0 %v1502
      %v1587 = vpop.f32.mrf.mxu0
      %v1588 = vadd.f32 0.0, %v1587
      %1589 = vmatmul.f32.gmra.mxu0 %v1504
      %v1590 = vpop.f32.mrf.mxu0
      %v1591 = vadd.f32 0.0, %v1590
      %1592 = vmatmul.f32.gmra.mxu0 %v1506
      %v1593 = vpop.f32.mrf.mxu0
      %v1594 = vadd.f32 0.0, %v1593
      %1595 = vmatmul.f32.gmra.mxu0 %v1508
      %v1596 = vpop.f32.mrf.mxu0
      %v1597 = vadd.f32 0.0, %v1596
      %1598 = vmatmul.f32.gmra.mxu0 %v1510
      %v1599 = vpop.f32.mrf.mxu0
      %v1600 = vadd.f32 0.0, %v1599
      %1601 = vmatmul.f32.gmra.mxu0 %v1512
      %v1602 = vpop.f32.mrf.mxu0
      %v1603 = vadd.f32 0.0, %v1602
      %1604 = vmatmul.f32.gmra.mxu0 %v1514
      %v1605 = vpop.f32.mrf.mxu0
      %v1606 = vadd.f32 0.0, %v1605
      %1607 = vmatmul.f32.gmra.mxu0 %v1516
      %v1608 = vpop.f32.mrf.mxu0
      %v1609 = vadd.f32 0.0, %v1608
      %1610 = vmatmul.f32.gmra.mxu0 %v1518
      %v1611 = vpop.f32.mrf.mxu0
      %v1612 = vadd.f32 0.0, %v1611
      %1613 = vmatmul.f32.gmra.mxu0 %v1520
      %v1614 = vpop.f32.mrf.mxu0
      %v1615 = vadd.f32 0.0, %v1614
      %1616 = vmatmul.f32.gmra.mxu0 %v1522
      %v1617 = vpop.f32.mrf.mxu0
      %v1618 = vadd.f32 0.0, %v1617
      %1619 = vmatmul.f32.gmra.mxu0 %v1524
      %v1620 = vpop.f32.mrf.mxu0
      %v1621 = vadd.f32 0.0, %v1620
      %1622 = vmatmul.f32.gmra.mxu0 %v1526
      %v1623 = vpop.f32.mrf.mxu0
      %v1624 = vadd.f32 0.0, %v1623
      %1625 = vmatmul.f32.gmra.mxu0 %v1528
      %v1626 = vpop.f32.mrf.mxu0
      %v1627 = vadd.f32 0.0, %v1626
      %1628 = vmatmul.f32.gmra.mxu0 %v1530
      %v1629 = vpop.f32.mrf.mxu0
      %v1630 = vadd.f32 0.0, %v1629
      %1631 = vmatmul.f32.gmra.mxu0 %v1532
      %v1632 = vpop.f32.mrf.mxu0
      %v1633 = vadd.f32 0.0, %v1632
      %1634 = vmatmul.f32.gmra.mxu0 %v1534
      %v1635 = vpop.f32.mrf.mxu0
      %v1636 = vadd.f32 0.0, %v1635
      %1637 = vmatmul.f32.gmra.mxu0 %v1536
      %v1638 = vpop.f32.mrf.mxu0
      %v1639 = vadd.f32 0.0, %v1638
      %1640 = vmatmul.f32.gmra.mxu0 %v1538
      %v1641 = vpop.f32.mrf.mxu0
      %v1642 = vadd.f32 0.0, %v1641
      %1643 = vmatmul.f32.gmra.mxu0 %v1540
      %v1644 = vpop.f32.mrf.mxu0
      %v1645 = vadd.f32 0.0, %v1644
      %1646 = vmatmul.f32.gmra.mxu0 %v1542
      %v1647 = vpop.f32.mrf.mxu0
      %v1648 = vadd.f32 0.0, %v1647
      %1649 = vmatmul.f32.gmra.mxu0 %v1544
      %v1650 = vpop.f32.mrf.mxu0
      %v1651 = vadd.f32 0.0, %v1650
      %1652 = vmatmul.f32.gmra.mxu0 %v1546
      %v1653 = vpop.f32.mrf.mxu0
      %v1654 = vadd.f32 0.0, %v1653
      %1655 = vmatmul.f32.gmra.mxu0 %v1548
      %v1656 = vpop.f32.mrf.mxu0
      %v1657 = vadd.f32 0.0, %v1656
      %1658 = vmatmul.f32.gmra.mxu0 %v1550
      %v1659 = vpop.f32.mrf.mxu0
      %v1660 = vadd.f32 0.0, %v1659
      %1661 = vmatmul.f32.gmra.mxu0 %v1552
      %v1662 = vpop.f32.mrf.mxu0
      %v1663 = vadd.f32 0.0, %v1662
      %1664 = vmatmul.f32.gmra.mxu0 %v1554
      %v1665 = vpop.f32.mrf.mxu0
      %v1666 = vadd.f32 0.0, %v1665
      %1667 = vmatmul.f32.gmra.mxu0 %v1556
      %v1668 = vpop.f32.mrf.mxu0
      %v1669 = vadd.f32 0.0, %v1668
      %1670 = vmatmul.f32.gmra.mxu0 %v1558
      %v1671 = vpop.f32.mrf.mxu0
      %v1672 = vadd.f32 0.0, %v1671
      %1673 = vmatmul.f32.gmra.mxu0 %v1560
      %v1674 = vpop.f32.mrf.mxu0
      %v1675 = vadd.f32 0.0, %v1674
      %1676 = vmatmul.f32.gmra.mxu0 %v1562
      %v1677 = vpop.f32.mrf.mxu0
      %v1678 = vadd.f32 0.0, %v1677
      %1679 = vdwg.mxu0
      %v1680 = vadd.f32 %v1370, %v1585
      %v1681 = vadd.f32 %v1371, %v1588
      %v1682 = vadd.f32 %v1372, %v1591
      %v1683 = vadd.f32 %v1373, %v1594
      %v1684 = vadd.f32 %v1374, %v1597
      %v1685 = vadd.f32 %v1375, %v1600
      %v1686 = vadd.f32 %v1376, %v1603
      %v1687 = vadd.f32 %v1377, %v1606
      %v1688 = vadd.f32 %v1378, %v1609
      %v1689 = vadd.f32 %v1379, %v1612
      %v1690 = vadd.f32 %v1380, %v1615
      %v1691 = vadd.f32 %v1381, %v1618
      %v1692 = vadd.f32 %v1382, %v1621
      %v1693 = vadd.f32 %v1383, %v1624
      %v1694 = vadd.f32 %v1384, %v1627
      %v1695 = vadd.f32 %v1385, %v1630
      %v1696 = vadd.f32 %v1386, %v1633
      %v1697 = vadd.f32 %v1387, %v1636
      %v1698 = vadd.f32 %v1388, %v1639
      %v1699 = vadd.f32 %v1389, %v1642
      %v1700 = vadd.f32 %v1390, %v1645
      %v1701 = vadd.f32 %v1391, %v1648
      %v1702 = vadd.f32 %v1392, %v1651
      %v1703 = vadd.f32 %v1393, %v1654
      %v1704 = vadd.f32 %v1394, %v1657
      %v1705 = vadd.f32 %v1395, %v1660
      %v1706 = vadd.f32 %v1396, %v1663
      %v1707 = vadd.f32 %v1397, %v1666
      %v1708 = vadd.f32 %v1398, %v1669
      %v1709 = vadd.f32 %v1399, %v1672
      %v1710 = vadd.f32 %v1400, %v1675
      %v1711 = vadd.f32 %v1401, %v1678
      %v1712 = vrot.slane %v1108, 2
      %v1713 = vrot.slane %v1109, 2
      %v1714 = vsel %vm810, %v1712, %v1713
      %v1715 = vrot.slane %v1110, 2
      %v1716 = vsel %vm810, %v1713, %v1715
      %v1717 = vrot.slane %v1111, 2
      %v1718 = vrot.slane %v1112, 2
      %v1719 = vsel %vm810, %v1717, %v1718
      %v1720 = vrot.slane %v1113, 2
      %v1721 = vsel %vm810, %v1718, %v1720
      %v1722 = vrot.slane %v1114, 2
      %v1723 = vrot.slane %v1115, 2
      %v1724 = vsel %vm810, %v1722, %v1723
      %v1725 = vrot.slane %v1116, 2
      %v1726 = vsel %vm810, %v1723, %v1725
      %v1727 = vrot.slane %v1117, 2
      %v1728 = vrot.slane %v1118, 2
      %v1729 = vsel %vm810, %v1727, %v1728
      %v1730 = vrot.slane %v1119, 2
      %v1731 = vsel %vm810, %v1728, %v1730
      %v1732 = vrot.slane %v1120, 2
      %v1733 = vrot.slane %v1121, 2
      %v1734 = vsel %vm810, %v1732, %v1733
      %v1735 = vrot.slane %v1122, 2
      %v1736 = vsel %vm810, %v1733, %v1735
      %v1737 = vrot.slane %v1123, 2
      %v1738 = vrot.slane %v1124, 2
      %v1739 = vsel %vm810, %v1737, %v1738
      %v1740 = vrot.slane %v1125, 2
      %v1741 = vsel %vm810, %v1738, %v1740
      %v1742 = vrot.slane %v1126, 2
      %v1743 = vrot.slane %v1127, 2
      %v1744 = vsel %vm810, %v1742, %v1743
      %v1745 = vrot.slane %v1128, 2
      %v1746 = vsel %vm810, %v1743, %v1745
      %v1747 = vrot.slane %v1129, 2
      %v1748 = vrot.slane %v1130, 2
      %v1749 = vsel %vm810, %v1747, %v1748
      %v1750 = vrot.slane %v1131, 2
      %v1751 = vsel %vm810, %v1748, %v1750
      %v1752 = vrot.slane %v1132, 2
      %v1753 = vrot.slane %v1133, 2
      %v1754 = vsel %vm810, %v1752, %v1753
      %v1755 = vrot.slane %v1134, 2
      %v1756 = vsel %vm810, %v1753, %v1755
      %v1757 = vrot.slane %v1135, 2
      %v1758 = vrot.slane %v1136, 2
      %v1759 = vsel %vm810, %v1757, %v1758
      %v1760 = vrot.slane %v1137, 2
      %v1761 = vsel %vm810, %v1758, %v1760
      %v1762 = vrot.slane %v1138, 2
      %v1763 = vrot.slane %v1139, 2
      %v1764 = vsel %vm810, %v1762, %v1763
      %v1765 = vrot.slane %v1140, 2
      %v1766 = vsel %vm810, %v1763, %v1765
      %v1767 = vrot.slane %v1141, 2
      %v1768 = vrot.slane %v1142, 2
      %v1769 = vsel %vm810, %v1767, %v1768
      %v1770 = vrot.slane %v1143, 2
      %v1771 = vsel %vm810, %v1768, %v1770
      %v1772 = vrot.slane %v1144, 2
      %v1773 = vrot.slane %v1145, 2
      %v1774 = vsel %vm810, %v1772, %v1773
      %v1775 = vrot.slane %v1146, 2
      %v1776 = vsel %vm810, %v1773, %v1775
      %v1777 = vrot.slane %v1147, 2
      %v1778 = vrot.slane %v1148, 2
      %v1779 = vsel %vm810, %v1777, %v1778
      %v1780 = vrot.slane %v1149, 2
      %v1781 = vsel %vm810, %v1778, %v1780
      %v1782 = vrot.slane %v1150, 2
      %v1783 = vrot.slane %v1151, 2
      %v1784 = vsel %vm810, %v1782, %v1783
      %v1785 = vrot.slane %v1152, 2
      %v1786 = vsel %vm810, %v1783, %v1785
      %v1787 = vrot.slane %v1153, 2
      %v1788 = vrot.slane %v1154, 2
      %v1789 = vsel %vm810, %v1787, %v1788
      %v1790 = vrot.slane %v1155, 2
      %v1791 = vsel %vm810, %v1788, %v1790
      %s1792 = scalar_lea.vmem %s1, 20
      %v1793 = vld [vmem:[%s1792] sm:$0xf]
      %v1794 = vsel %vm448, %v1714, 0
      %v1796 = vsel %vm448, %v1716, 0
      %v1798 = vsel %vm448, %v1719, 0
      %v1800 = vsel %vm448, %v1721, 0
      %v1802 = vsel %vm448, %v1724, 0
      %v1804 = vsel %vm448, %v1726, 0
      %v1806 = vsel %vm448, %v1729, 0
      %v1808 = vsel %vm448, %v1731, 0
      %v1810 = vsel %vm448, %v1734, 0
      %v1812 = vsel %vm448, %v1736, 0
      %v1814 = vsel %vm448, %v1739, 0
      %v1816 = vsel %vm448, %v1741, 0
      %v1818 = vsel %vm448, %v1744, 0
      %v1820 = vsel %vm448, %v1746, 0
      %v1822 = vsel %vm448, %v1749, 0
      %v1824 = vsel %vm448, %v1751, 0
      %v1826 = vsel %vm448, %v1754, 0
      %v1828 = vsel %vm448, %v1756, 0
      %v1830 = vsel %vm448, %v1759, 0
      %v1832 = vsel %vm448, %v1761, 0
      %v1834 = vsel %vm448, %v1764, 0
      %v1836 = vsel %vm448, %v1766, 0
      %v1838 = vsel %vm448, %v1769, 0
      %v1840 = vsel %vm448, %v1771, 0
      %v1842 = vsel %vm448, %v1774, 0
      %v1844 = vsel %vm448, %v1776, 0
      %v1846 = vsel %vm448, %v1779, 0
      %v1848 = vsel %vm448, %v1781, 0
      %v1850 = vsel %vm448, %v1784, 0
      %v1852 = vsel %vm448, %v1786, 0
      %v1854 = vsel %vm448, %v1789, 0
      %v1856 = vsel %vm448, %v1791, 0
      %v1859 = vsel %vm513, %v1793, 0
      %1861 = vmatpush.msra.mxu0 0.0
      %1862 = vmatpush.msra.mxu0 0.0
      %1863 = vmatpush.msra.mxu0 0.0
      %1864 = vmatpush.msra.mxu0 0.0
      %1865 = vmatpush.msra.mxu0 0.0
      %1866 = vmatpush.msra.mxu0 0.0
      %1867 = vmatpush.msra.mxu0 0.0
      %1868 = vmatpush.msra.mxu0 0.0
      %1869 = vmatpush.msra.mxu0 0.0
      %1870 = vmatpush.msra.mxu0 0.0
      %1871 = vmatpush.msra.mxu0 0.0
      %1872 = vmatpush.msra.mxu0 0.0
      %1873 = vmatpush.msra.mxu0 0.0
      %1874 = vmatpush.msra.mxu0 0.0
      %1875 = vmatpush.msra.mxu0 0.0
      %1876 = vmatpush.msra.mxu0 %v1859
      %1877 = vmatmul.f32.gmra.mxu0 %v1794
      %v1878 = vpop.f32.mrf.mxu0
      %v1879 = vadd.f32 0.0, %v1878
      %1880 = vmatmul.f32.gmra.mxu0 %v1796
      %v1881 = vpop.f32.mrf.mxu0
      %v1882 = vadd.f32 0.0, %v1881
      %1883 = vmatmul.f32.gmra.mxu0 %v1798
      %v1884 = vpop.f32.mrf.mxu0
      %v1885 = vadd.f32 0.0, %v1884
      %1886 = vmatmul.f32.gmra.mxu0 %v1800
      %v1887 = vpop.f32.mrf.mxu0
      %v1888 = vadd.f32 0.0, %v1887
      %1889 = vmatmul.f32.gmra.mxu0 %v1802
      %v1890 = vpop.f32.mrf.mxu0
      %v1891 = vadd.f32 0.0, %v1890
      %1892 = vmatmul.f32.gmra.mxu0 %v1804
      %v1893 = vpop.f32.mrf.mxu0
      %v1894 = vadd.f32 0.0, %v1893
      %1895 = vmatmul.f32.gmra.mxu0 %v1806
      %v1896 = vpop.f32.mrf.mxu0
      %v1897 = vadd.f32 0.0, %v1896
      %1898 = vmatmul.f32.gmra.mxu0 %v1808
      %v1899 = vpop.f32.mrf.mxu0
      %v1900 = vadd.f32 0.0, %v1899
      %1901 = vmatmul.f32.gmra.mxu0 %v1810
      %v1902 = vpop.f32.mrf.mxu0
      %v1903 = vadd.f32 0.0, %v1902
      %1904 = vmatmul.f32.gmra.mxu0 %v1812
      %v1905 = vpop.f32.mrf.mxu0
      %v1906 = vadd.f32 0.0, %v1905
      %1907 = vmatmul.f32.gmra.mxu0 %v1814
      %v1908 = vpop.f32.mrf.mxu0
      %v1909 = vadd.f32 0.0, %v1908
      %1910 = vmatmul.f32.gmra.mxu0 %v1816
      %v1911 = vpop.f32.mrf.mxu0
      %v1912 = vadd.f32 0.0, %v1911
      %1913 = vmatmul.f32.gmra.mxu0 %v1818
      %v1914 = vpop.f32.mrf.mxu0
      %v1915 = vadd.f32 0.0, %v1914
      %1916 = vmatmul.f32.gmra.mxu0 %v1820
      %v1917 = vpop.f32.mrf.mxu0
      %v1918 = vadd.f32 0.0, %v1917
      %1919 = vmatmul.f32.gmra.mxu0 %v1822
      %v1920 = vpop.f32.mrf.mxu0
      %v1921 = vadd.f32 0.0, %v1920
      %1922 = vmatmul.f32.gmra.mxu0 %v1824
      %v1923 = vpop.f32.mrf.mxu0
      %v1924 = vadd.f32 0.0, %v1923
      %1925 = vmatmul.f32.gmra.mxu0 %v1826
      %v1926 = vpop.f32.mrf.mxu0
      %v1927 = vadd.f32 0.0, %v1926
      %1928 = vmatmul.f32.gmra.mxu0 %v1828
      %v1929 = vpop.f32.mrf.mxu0
      %v1930 = vadd.f32 0.0, %v1929
      %1931 = vmatmul.f32.gmra.mxu0 %v1830
      %v1932 = vpop.f32.mrf.mxu0
      %v1933 = vadd.f32 0.0, %v1932
      %1934 = vmatmul.f32.gmra.mxu0 %v1832
      %v1935 = vpop.f32.mrf.mxu0
      %v1936 = vadd.f32 0.0, %v1935
      %1937 = vmatmul.f32.gmra.mxu0 %v1834
      %v1938 = vpop.f32.mrf.mxu0
      %v1939 = vadd.f32 0.0, %v1938
      %1940 = vmatmul.f32.gmra.mxu0 %v1836
      %v1941 = vpop.f32.mrf.mxu0
      %v1942 = vadd.f32 0.0, %v1941
      %1943 = vmatmul.f32.gmra.mxu0 %v1838
      %v1944 = vpop.f32.mrf.mxu0
      %v1945 = vadd.f32 0.0, %v1944
      %1946 = vmatmul.f32.gmra.mxu0 %v1840
      %v1947 = vpop.f32.mrf.mxu0
      %v1948 = vadd.f32 0.0, %v1947
      %1949 = vmatmul.f32.gmra.mxu0 %v1842
      %v1950 = vpop.f32.mrf.mxu0
      %v1951 = vadd.f32 0.0, %v1950
      %1952 = vmatmul.f32.gmra.mxu0 %v1844
      %v1953 = vpop.f32.mrf.mxu0
      %v1954 = vadd.f32 0.0, %v1953
      %1955 = vmatmul.f32.gmra.mxu0 %v1846
      %v1956 = vpop.f32.mrf.mxu0
      %v1957 = vadd.f32 0.0, %v1956
      %1958 = vmatmul.f32.gmra.mxu0 %v1848
      %v1959 = vpop.f32.mrf.mxu0
      %v1960 = vadd.f32 0.0, %v1959
      %1961 = vmatmul.f32.gmra.mxu0 %v1850
      %v1962 = vpop.f32.mrf.mxu0
      %v1963 = vadd.f32 0.0, %v1962
      %1964 = vmatmul.f32.gmra.mxu0 %v1852
      %v1965 = vpop.f32.mrf.mxu0
      %v1966 = vadd.f32 0.0, %v1965
      %1967 = vmatmul.f32.gmra.mxu0 %v1854
      %v1968 = vpop.f32.mrf.mxu0
      %v1969 = vadd.f32 0.0, %v1968
      %1970 = vmatmul.f32.gmra.mxu0 %v1856
      %v1971 = vpop.f32.mrf.mxu0
      %v1972 = vadd.f32 0.0, %v1971
      %1973 = vdwg.mxu0
      %v1974 = vadd.f32 %v1680, %v1879
      %v1975 = vadd.f32 %v1681, %v1882
      %v1976 = vadd.f32 %v1682, %v1885
      %v1977 = vadd.f32 %v1683, %v1888
      %v1978 = vadd.f32 %v1684, %v1891
      %v1979 = vadd.f32 %v1685, %v1894
      %v1980 = vadd.f32 %v1686, %v1897
      %v1981 = vadd.f32 %v1687, %v1900
      %v1982 = vadd.f32 %v1688, %v1903
      %v1983 = vadd.f32 %v1689, %v1906
      %v1984 = vadd.f32 %v1690, %v1909
      %v1985 = vadd.f32 %v1691, %v1912
      %v1986 = vadd.f32 %v1692, %v1915
      %v1987 = vadd.f32 %v1693, %v1918
      %v1988 = vadd.f32 %v1694, %v1921
      %v1989 = vadd.f32 %v1695, %v1924
      %v1990 = vadd.f32 %v1696, %v1927
      %v1991 = vadd.f32 %v1697, %v1930
      %v1992 = vadd.f32 %v1698, %v1933
      %v1993 = vadd.f32 %v1699, %v1936
      %v1994 = vadd.f32 %v1700, %v1939
      %v1995 = vadd.f32 %v1701, %v1942
      %v1996 = vadd.f32 %v1702, %v1945
      %v1997 = vadd.f32 %v1703, %v1948
      %v1998 = vadd.f32 %v1704, %v1951
      %v1999 = vadd.f32 %v1705, %v1954
      %v2000 = vadd.f32 %v1706, %v1957
      %v2001 = vadd.f32 %v1707, %v1960
      %v2002 = vadd.f32 %v1708, %v1963
      %v2003 = vadd.f32 %v1709, %v1966
      %v2004 = vadd.f32 %v1710, %v1969
      %v2005 = vadd.f32 %v1711, %v1972
      %s2006 = sadd.s32 %s265, 2
      %s2007 = smul.u32 %s2006, 24
      %s2008 = scalar_lea.vmem %s248, %s2007
      %v2009 = vld [vmem:[%s2008] sm:$0xff]
      %v2010 = vld [vmem:[%s2008 + $0x8] sm:$0xff]
      %v2011 = vld [vmem:[%s2008 + $0x10] sm:$0x3]
      %v2012 = vld [vmem:[%s2008 + $0x18] sm:$0xff]
      %v2013 = vld [vmem:[%s2008 + $0x20] sm:$0xff]
      %v2014 = vld [vmem:[%s2008 + $0x28] sm:$0x3]
      %v2015 = vld [vmem:[%s2008 + $0x30] sm:$0xff]
      %v2016 = vld [vmem:[%s2008 + $0x38] sm:$0xff]
      %v2017 = vld [vmem:[%s2008 + $0x40] sm:$0x3]
      %v2018 = vld [vmem:[%s2008 + $0x48] sm:$0xff]
      %v2019 = vld [vmem:[%s2008 + $0x50] sm:$0xff]
      %v2020 = vld [vmem:[%s2008 + $0x58] sm:$0x3]
      %v2021 = vld [vmem:[%s2008 + $0x60] sm:$0xff]
      %v2022 = vld [vmem:[%s2008 + $0x68] sm:$0xff]
      %v2023 = vld [vmem:[%s2008 + $0x70] sm:$0x3]
      %v2024 = vld [vmem:[%s2008 + $0x78] sm:$0xff]
      %v2025 = vld [vmem:[%s2008 + $0x80] sm:$0xff]
      %v2026 = vld [vmem:[%s2008 + $0x88] sm:$0x3]
      %v2027 = vld [vmem:[%s2008 + $0x90] sm:$0xff]
      %v2028 = vld [vmem:[%s2008 + $0x98] sm:$0xff]
      %v2029 = vld [vmem:[%s2008 + $0xa0] sm:$0x3]
      %v2030 = vld [vmem:[%s2008 + $0xa8] sm:$0xff]
      %v2031 = vld [vmem:[%s2008 + $0xb0] sm:$0xff]
      %v2032 = vld [vmem:[%s2008 + $0xb8] sm:$0x3]
      %v2033 = vld [vmem:[%s2008 + $0xc0] sm:$0xff]
      %v2034 = vld [vmem:[%s2008 + $0xc8] sm:$0xff]
      %v2035 = vld [vmem:[%s2008 + $0xd0] sm:$0x3]
      %v2036 = vld [vmem:[%s2008 + $0xd8] sm:$0xff]
      %v2037 = vld [vmem:[%s2008 + $0xe0] sm:$0xff]
      %v2038 = vld [vmem:[%s2008 + $0xe8] sm:$0x3]
      %v2039 = vld [vmem:[%s2008 + $0xf0] sm:$0xff]
      %v2040 = vld [vmem:[%s2008 + $0xf8] sm:$0xff]
      %v2041 = vld [vmem:[%s2008 + $0x100] sm:$0x3]
      %v2042 = vld [vmem:[%s2008 + $0x108] sm:$0xff]
      %v2043 = vld [vmem:[%s2008 + $0x110] sm:$0xff]
      %v2044 = vld [vmem:[%s2008 + $0x118] sm:$0x3]
      %v2045 = vld [vmem:[%s2008 + $0x120] sm:$0xff]
      %v2046 = vld [vmem:[%s2008 + $0x128] sm:$0xff]
      %v2047 = vld [vmem:[%s2008 + $0x130] sm:$0x3]
      %v2048 = vld [vmem:[%s2008 + $0x138] sm:$0xff]
      %v2049 = vld [vmem:[%s2008 + $0x140] sm:$0xff]
      %v2050 = vld [vmem:[%s2008 + $0x148] sm:$0x3]
      %v2051 = vld [vmem:[%s2008 + $0x150] sm:$0xff]
      %v2052 = vld [vmem:[%s2008 + $0x158] sm:$0xff]
      %v2053 = vld [vmem:[%s2008 + $0x160] sm:$0x3]
      %v2054 = vld [vmem:[%s2008 + $0x168] sm:$0xff]
      %v2055 = vld [vmem:[%s2008 + $0x170] sm:$0xff]
      %v2056 = vld [vmem:[%s2008 + $0x178] sm:$0x3]
      %s2057 = scalar_lea.vmem %s1, 24
      %v2058 = vld [vmem:[%s2057] sm:$0xf]
      %v2060 = vsel %vm448, %v2009, 0
      %v2063 = vsel %vm448, %v2010, 0
      %v2066 = vsel %vm448, %v2012, 0
      %v2069 = vsel %vm448, %v2013, 0
      %v2072 = vsel %vm448, %v2015, 0
      %v2075 = vsel %vm448, %v2016, 0
      %v2078 = vsel %vm448, %v2018, 0
      %v2081 = vsel %vm448, %v2019, 0
      %v2084 = vsel %vm448, %v2021, 0
      %v2087 = vsel %vm448, %v2022, 0
      %v2090 = vsel %vm448, %v2024, 0
      %v2093 = vsel %vm448, %v2025, 0
      %v2096 = vsel %vm448, %v2027, 0
      %v2099 = vsel %vm448, %v2028, 0
      %v2102 = vsel %vm448, %v2030, 0
      %v2105 = vsel %vm448, %v2031, 0
      %v2108 = vsel %vm448, %v2033, 0
      %v2111 = vsel %vm448, %v2034, 0
      %v2114 = vsel %vm448, %v2036, 0
      %v2117 = vsel %vm448, %v2037, 0
      %v2120 = vsel %vm448, %v2039, 0
      %v2123 = vsel %vm448, %v2040, 0
      %v2126 = vsel %vm448, %v2042, 0
      %v2129 = vsel %vm448, %v2043, 0
      %v2132 = vsel %vm448, %v2045, 0
      %v2135 = vsel %vm448, %v2046, 0
      %v2138 = vsel %vm448, %v2048, 0
      %v2141 = vsel %vm448, %v2049, 0
      %v2144 = vsel %vm448, %v2051, 0
      %v2147 = vsel %vm448, %v2052, 0
      %v2150 = vsel %vm448, %v2054, 0
      %v2153 = vsel %vm448, %v2055, 0
      %v2156 = vsel %vm513, %v2058, 0
      %2158 = vmatpush.msra.mxu0 0.0
      %2159 = vmatpush.msra.mxu0 0.0
      %2160 = vmatpush.msra.mxu0 0.0
      %2161 = vmatpush.msra.mxu0 0.0
      %2162 = vmatpush.msra.mxu0 0.0
      %2163 = vmatpush.msra.mxu0 0.0
      %2164 = vmatpush.msra.mxu0 0.0
      %2165 = vmatpush.msra.mxu0 0.0
      %2166 = vmatpush.msra.mxu0 0.0
      %2167 = vmatpush.msra.mxu0 0.0
      %2168 = vmatpush.msra.mxu0 0.0
      %2169 = vmatpush.msra.mxu0 0.0
      %2170 = vmatpush.msra.mxu0 0.0
      %2171 = vmatpush.msra.mxu0 0.0
      %2172 = vmatpush.msra.mxu0 0.0
      %2173 = vmatpush.msra.mxu0 %v2156
      %2174 = vmatmul.f32.gmra.mxu0 %v2060
      %v2175 = vpop.f32.mrf.mxu0
      %v2176 = vadd.f32 0.0, %v2175
      %2177 = vmatmul.f32.gmra.mxu0 %v2063
      %v2178 = vpop.f32.mrf.mxu0
      %v2179 = vadd.f32 0.0, %v2178
      %2180 = vmatmul.f32.gmra.mxu0 %v2066
      %v2181 = vpop.f32.mrf.mxu0
      %v2182 = vadd.f32 0.0, %v2181
      %2183 = vmatmul.f32.gmra.mxu0 %v2069
      %v2184 = vpop.f32.mrf.mxu0
      %v2185 = vadd.f32 0.0, %v2184
      %2186 = vmatmul.f32.gmra.mxu0 %v2072
      %v2187 = vpop.f32.mrf.mxu0
      %v2188 = vadd.f32 0.0, %v2187
      %2189 = vmatmul.f32.gmra.mxu0 %v2075
      %v2190 = vpop.f32.mrf.mxu0
      %v2191 = vadd.f32 0.0, %v2190
      %2192 = vmatmul.f32.gmra.mxu0 %v2078
      %v2193 = vpop.f32.mrf.mxu0
      %v2194 = vadd.f32 0.0, %v2193
      %2195 = vmatmul.f32.gmra.mxu0 %v2081
      %v2196 = vpop.f32.mrf.mxu0
      %v2197 = vadd.f32 0.0, %v2196
      %2198 = vmatmul.f32.gmra.mxu0 %v2084
      %v2199 = vpop.f32.mrf.mxu0
      %v2200 = vadd.f32 0.0, %v2199
      %2201 = vmatmul.f32.gmra.mxu0 %v2087
      %v2202 = vpop.f32.mrf.mxu0
      %v2203 = vadd.f32 0.0, %v2202
      %2204 = vmatmul.f32.gmra.mxu0 %v2090
      %v2205 = vpop.f32.mrf.mxu0
      %v2206 = vadd.f32 0.0, %v2205
      %2207 = vmatmul.f32.gmra.mxu0 %v2093
      %v2208 = vpop.f32.mrf.mxu0
      %v2209 = vadd.f32 0.0, %v2208
      %2210 = vmatmul.f32.gmra.mxu0 %v2096
      %v2211 = vpop.f32.mrf.mxu0
      %v2212 = vadd.f32 0.0, %v2211
      %2213 = vmatmul.f32.gmra.mxu0 %v2099
      %v2214 = vpop.f32.mrf.mxu0
      %v2215 = vadd.f32 0.0, %v2214
      %2216 = vmatmul.f32.gmra.mxu0 %v2102
      %v2217 = vpop.f32.mrf.mxu0
      %v2218 = vadd.f32 0.0, %v2217
      %2219 = vmatmul.f32.gmra.mxu0 %v2105
      %v2220 = vpop.f32.mrf.mxu0
      %v2221 = vadd.f32 0.0, %v2220
      %2222 = vmatmul.f32.gmra.mxu0 %v2108
      %v2223 = vpop.f32.mrf.mxu0
      %v2224 = vadd.f32 0.0, %v2223
      %2225 = vmatmul.f32.gmra.mxu0 %v2111
      %v2226 = vpop.f32.mrf.mxu0
      %v2227 = vadd.f32 0.0, %v2226
      %2228 = vmatmul.f32.gmra.mxu0 %v2114
      %v2229 = vpop.f32.mrf.mxu0
      %v2230 = vadd.f32 0.0, %v2229
      %2231 = vmatmul.f32.gmra.mxu0 %v2117
      %v2232 = vpop.f32.mrf.mxu0
      %v2233 = vadd.f32 0.0, %v2232
      %2234 = vmatmul.f32.gmra.mxu0 %v2120
      %v2235 = vpop.f32.mrf.mxu0
      %v2236 = vadd.f32 0.0, %v2235
      %2237 = vmatmul.f32.gmra.mxu0 %v2123
      %v2238 = vpop.f32.mrf.mxu0
      %v2239 = vadd.f32 0.0, %v2238
      %2240 = vmatmul.f32.gmra.mxu0 %v2126
      %v2241 = vpop.f32.mrf.mxu0
      %v2242 = vadd.f32 0.0, %v2241
      %2243 = vmatmul.f32.gmra.mxu0 %v2129
      %v2244 = vpop.f32.mrf.mxu0
      %v2245 = vadd.f32 0.0, %v2244
      %2246 = vmatmul.f32.gmra.mxu0 %v2132
      %v2247 = vpop.f32.mrf.mxu0
      %v2248 = vadd.f32 0.0, %v2247
      %2249 = vmatmul.f32.gmra.mxu0 %v2135
      %v2250 = vpop.f32.mrf.mxu0
      %v2251 = vadd.f32 0.0, %v2250
      %2252 = vmatmul.f32.gmra.mxu0 %v2138
      %v2253 = vpop.f32.mrf.mxu0
      %v2254 = vadd.f32 0.0, %v2253
      %2255 = vmatmul.f32.gmra.mxu0 %v2141
      %v2256 = vpop.f32.mrf.mxu0
      %v2257 = vadd.f32 0.0, %v2256
      %2258 = vmatmul.f32.gmra.mxu0 %v2144
      %v2259 = vpop.f32.mrf.mxu0
      %v2260 = vadd.f32 0.0, %v2259
      %2261 = vmatmul.f32.gmra.mxu0 %v2147
      %v2262 = vpop.f32.mrf.mxu0
      %v2263 = vadd.f32 0.0, %v2262
      %2264 = vmatmul.f32.gmra.mxu0 %v2150
      %v2265 = vpop.f32.mrf.mxu0
      %v2266 = vadd.f32 0.0, %v2265
      %2267 = vmatmul.f32.gmra.mxu0 %v2153
      %v2268 = vpop.f32.mrf.mxu0
      %v2269 = vadd.f32 0.0, %v2268
      %2270 = vdwg.mxu0
      %v2271 = vadd.f32 %v1974, %v2176
      %v2272 = vadd.f32 %v1975, %v2179
      %v2273 = vadd.f32 %v1976, %v2182
      %v2274 = vadd.f32 %v1977, %v2185
      %v2275 = vadd.f32 %v1978, %v2188
      %v2276 = vadd.f32 %v1979, %v2191
      %v2277 = vadd.f32 %v1980, %v2194
      %v2278 = vadd.f32 %v1981, %v2197
      %v2279 = vadd.f32 %v1982, %v2200
      %v2280 = vadd.f32 %v1983, %v2203
      %v2281 = vadd.f32 %v1984, %v2206
      %v2282 = vadd.f32 %v1985, %v2209
      %v2283 = vadd.f32 %v1986, %v2212
      %v2284 = vadd.f32 %v1987, %v2215
      %v2285 = vadd.f32 %v1988, %v2218
      %v2286 = vadd.f32 %v1989, %v2221
      %v2287 = vadd.f32 %v1990, %v2224
      %v2288 = vadd.f32 %v1991, %v2227
      %v2289 = vadd.f32 %v1992, %v2230
      %v2290 = vadd.f32 %v1993, %v2233
      %v2291 = vadd.f32 %v1994, %v2236
      %v2292 = vadd.f32 %v1995, %v2239
      %v2293 = vadd.f32 %v1996, %v2242
      %v2294 = vadd.f32 %v1997, %v2245
      %v2295 = vadd.f32 %v1998, %v2248
      %v2296 = vadd.f32 %v1999, %v2251
      %v2297 = vadd.f32 %v2000, %v2254
      %v2298 = vadd.f32 %v2001, %v2257
      %v2299 = vadd.f32 %v2002, %v2260
      %v2300 = vadd.f32 %v2003, %v2263
      %v2301 = vadd.f32 %v2004, %v2266
      %v2302 = vadd.f32 %v2005, %v2269
      %v2319 = vrot.slane %v2009, 1
      %v2320 = vrot.slane %v2010, 1
      %v2321 = vsel %vm365, %v2319, %v2320
      %v2322 = vrot.slane %v2011, 1
      %v2323 = vsel %vm365, %v2320, %v2322
      %v2324 = vrot.slane %v2012, 1
      %v2325 = vrot.slane %v2013, 1
      %v2326 = vsel %vm365, %v2324, %v2325
      %v2327 = vrot.slane %v2014, 1
      %v2328 = vsel %vm365, %v2325, %v2327
      %v2329 = vrot.slane %v2015, 1
      %v2330 = vrot.slane %v2016, 1
      %v2331 = vsel %vm365, %v2329, %v2330
      %v2332 = vrot.slane %v2017, 1
      %v2333 = vsel %vm365, %v2330, %v2332
      %v2334 = vrot.slane %v2018, 1
      %v2335 = vrot.slane %v2019, 1
      %v2336 = vsel %vm365, %v2334, %v2335
      %v2337 = vrot.slane %v2020, 1
      %v2338 = vsel %vm365, %v2335, %v2337
      %v2339 = vrot.slane %v2021, 1
      %v2340 = vrot.slane %v2022, 1
      %v2341 = vsel %vm365, %v2339, %v2340
      %v2342 = vrot.slane %v2023, 1
      %v2343 = vsel %vm365, %v2340, %v2342
      %v2344 = vrot.slane %v2024, 1
      %v2345 = vrot.slane %v2025, 1
      %v2346 = vsel %vm365, %v2344, %v2345
      %v2347 = vrot.slane %v2026, 1
      %v2348 = vsel %vm365, %v2345, %v2347
      %v2349 = vrot.slane %v2027, 1
      %v2350 = vrot.slane %v2028, 1
      %v2351 = vsel %vm365, %v2349, %v2350
      %v2352 = vrot.slane %v2029, 1
      %v2353 = vsel %vm365, %v2350, %v2352
      %v2354 = vrot.slane %v2030, 1
      %v2355 = vrot.slane %v2031, 1
      %v2356 = vsel %vm365, %v2354, %v2355
      %v2357 = vrot.slane %v2032, 1
      %v2358 = vsel %vm365, %v2355, %v2357
      %v2359 = vrot.slane %v2033, 1
      %v2360 = vrot.slane %v2034, 1
      %v2361 = vsel %vm365, %v2359, %v2360
      %v2362 = vrot.slane %v2035, 1
      %v2363 = vsel %vm365, %v2360, %v2362
      %v2364 = vrot.slane %v2036, 1
      %v2365 = vrot.slane %v2037, 1
      %v2366 = vsel %vm365, %v2364, %v2365
      %v2367 = vrot.slane %v2038, 1
      %v2368 = vsel %vm365, %v2365, %v2367
      %v2369 = vrot.slane %v2039, 1
      %v2370 = vrot.slane %v2040, 1
      %v2371 = vsel %vm365, %v2369, %v2370
      %v2372 = vrot.slane %v2041, 1
      %v2373 = vsel %vm365, %v2370, %v2372
      %v2374 = vrot.slane %v2042, 1
      %v2375 = vrot.slane %v2043, 1
      %v2376 = vsel %vm365, %v2374, %v2375
      %v2377 = vrot.slane %v2044, 1
      %v2378 = vsel %vm365, %v2375, %v2377
      %v2379 = vrot.slane %v2045, 1
      %v2380 = vrot.slane %v2046, 1
      %v2381 = vsel %vm365, %v2379, %v2380
      %v2382 = vrot.slane %v2047, 1
      %v2383 = vsel %vm365, %v2380, %v2382
      %v2384 = vrot.slane %v2048, 1
      %v2385 = vrot.slane %v2049, 1
      %v2386 = vsel %vm365, %v2384, %v2385
      %v2387 = vrot.slane %v2050, 1
      %v2388 = vsel %vm365, %v2385, %v2387
      %v2389 = vrot.slane %v2051, 1
      %v2390 = vrot.slane %v2052, 1
      %v2391 = vsel %vm365, %v2389, %v2390
      %v2392 = vrot.slane %v2053, 1
      %v2393 = vsel %vm365, %v2390, %v2392
      %v2394 = vrot.slane %v2054, 1
      %v2395 = vrot.slane %v2055, 1
      %v2396 = vsel %vm365, %v2394, %v2395
      %v2397 = vrot.slane %v2056, 1
      %v2398 = vsel %vm365, %v2395, %v2397
      %s2399 = scalar_lea.vmem %s1, 28
      %v2400 = vld [vmem:[%s2399] sm:$0xf]
      %v2401 = vsel %vm448, %v2321, 0
      %v2403 = vsel %vm448, %v2323, 0
      %v2405 = vsel %vm448, %v2326, 0
      %v2407 = vsel %vm448, %v2328, 0
      %v2409 = vsel %vm448, %v2331, 0
      %v2411 = vsel %vm448, %v2333, 0
      %v2413 = vsel %vm448, %v2336, 0
      %v2415 = vsel %vm448, %v2338, 0
      %v2417 = vsel %vm448, %v2341, 0
      %v2419 = vsel %vm448, %v2343, 0
      %v2421 = vsel %vm448, %v2346, 0
      %v2423 = vsel %vm448, %v2348, 0
      %v2425 = vsel %vm448, %v2351, 0
      %v2427 = vsel %vm448, %v2353, 0
      %v2429 = vsel %vm448, %v2356, 0
      %v2431 = vsel %vm448, %v2358, 0
      %v2433 = vsel %vm448, %v2361, 0
      %v2435 = vsel %vm448, %v2363, 0
      %v2437 = vsel %vm448, %v2366, 0
      %v2439 = vsel %vm448, %v2368, 0
      %v2441 = vsel %vm448, %v2371, 0
      %v2443 = vsel %vm448, %v2373, 0
      %v2445 = vsel %vm448, %v2376, 0
      %v2447 = vsel %vm448, %v2378, 0
      %v2449 = vsel %vm448, %v2381, 0
      %v2451 = vsel %vm448, %v2383, 0
      %v2453 = vsel %vm448, %v2386, 0
      %v2455 = vsel %vm448, %v2388, 0
      %v2457 = vsel %vm448, %v2391, 0
      %v2459 = vsel %vm448, %v2393, 0
      %v2461 = vsel %vm448, %v2396, 0
      %v2463 = vsel %vm448, %v2398, 0
      %v2466 = vsel %vm513, %v2400, 0
      %2468 = vmatpush.msra.mxu0 0.0
      %2469 = vmatpush.msra.mxu0 0.0
      %2470 = vmatpush.msra.mxu0 0.0
      %2471 = vmatpush.msra.mxu0 0.0
      %2472 = vmatpush.msra.mxu0 0.0
      %2473 = vmatpush.msra.mxu0 0.0
      %2474 = vmatpush.msra.mxu0 0.0
      %2475 = vmatpush.msra.mxu0 0.0
      %2476 = vmatpush.msra.mxu0 0.0
      %2477 = vmatpush.msra.mxu0 0.0
      %2478 = vmatpush.msra.mxu0 0.0
      %2479 = vmatpush.msra.mxu0 0.0
      %2480 = vmatpush.msra.mxu0 0.0
      %2481 = vmatpush.msra.mxu0 0.0
      %2482 = vmatpush.msra.mxu0 0.0
      %2483 = vmatpush.msra.mxu0 %v2466
      %2484 = vmatmul.f32.gmra.mxu0 %v2401
      %v2485 = vpop.f32.mrf.mxu0
      %v2486 = vadd.f32 0.0, %v2485
      %2487 = vmatmul.f32.gmra.mxu0 %v2403
      %v2488 = vpop.f32.mrf.mxu0
      %v2489 = vadd.f32 0.0, %v2488
      %2490 = vmatmul.f32.gmra.mxu0 %v2405
      %v2491 = vpop.f32.mrf.mxu0
      %v2492 = vadd.f32 0.0, %v2491
      %2493 = vmatmul.f32.gmra.mxu0 %v2407
      %v2494 = vpop.f32.mrf.mxu0
      %v2495 = vadd.f32 0.0, %v2494
      %2496 = vmatmul.f32.gmra.mxu0 %v2409
      %v2497 = vpop.f32.mrf.mxu0
      %v2498 = vadd.f32 0.0, %v2497
      %2499 = vmatmul.f32.gmra.mxu0 %v2411
      %v2500 = vpop.f32.mrf.mxu0
      %v2501 = vadd.f32 0.0, %v2500
      %2502 = vmatmul.f32.gmra.mxu0 %v2413
      %v2503 = vpop.f32.mrf.mxu0
      %v2504 = vadd.f32 0.0, %v2503
      %2505 = vmatmul.f32.gmra.mxu0 %v2415
      %v2506 = vpop.f32.mrf.mxu0
      %v2507 = vadd.f32 0.0, %v2506
      %2508 = vmatmul.f32.gmra.mxu0 %v2417
      %v2509 = vpop.f32.mrf.mxu0
      %v2510 = vadd.f32 0.0, %v2509
      %2511 = vmatmul.f32.gmra.mxu0 %v2419
      %v2512 = vpop.f32.mrf.mxu0
      %v2513 = vadd.f32 0.0, %v2512
      %2514 = vmatmul.f32.gmra.mxu0 %v2421
      %v2515 = vpop.f32.mrf.mxu0
      %v2516 = vadd.f32 0.0, %v2515
      %2517 = vmatmul.f32.gmra.mxu0 %v2423
      %v2518 = vpop.f32.mrf.mxu0
      %v2519 = vadd.f32 0.0, %v2518
      %2520 = vmatmul.f32.gmra.mxu0 %v2425
      %v2521 = vpop.f32.mrf.mxu0
      %v2522 = vadd.f32 0.0, %v2521
      %2523 = vmatmul.f32.gmra.mxu0 %v2427
      %v2524 = vpop.f32.mrf.mxu0
      %v2525 = vadd.f32 0.0, %v2524
      %2526 = vmatmul.f32.gmra.mxu0 %v2429
      %v2527 = vpop.f32.mrf.mxu0
      %v2528 = vadd.f32 0.0, %v2527
      %2529 = vmatmul.f32.gmra.mxu0 %v2431
      %v2530 = vpop.f32.mrf.mxu0
      %v2531 = vadd.f32 0.0, %v2530
      %2532 = vmatmul.f32.gmra.mxu0 %v2433
      %v2533 = vpop.f32.mrf.mxu0
      %v2534 = vadd.f32 0.0, %v2533
      %2535 = vmatmul.f32.gmra.mxu0 %v2435
      %v2536 = vpop.f32.mrf.mxu0
      %v2537 = vadd.f32 0.0, %v2536
      %2538 = vmatmul.f32.gmra.mxu0 %v2437
      %v2539 = vpop.f32.mrf.mxu0
      %v2540 = vadd.f32 0.0, %v2539
      %2541 = vmatmul.f32.gmra.mxu0 %v2439
      %v2542 = vpop.f32.mrf.mxu0
      %v2543 = vadd.f32 0.0, %v2542
      %2544 = vmatmul.f32.gmra.mxu0 %v2441
      %v2545 = vpop.f32.mrf.mxu0
      %v2546 = vadd.f32 0.0, %v2545
      %2547 = vmatmul.f32.gmra.mxu0 %v2443
      %v2548 = vpop.f32.mrf.mxu0
      %v2549 = vadd.f32 0.0, %v2548
      %2550 = vmatmul.f32.gmra.mxu0 %v2445
      %v2551 = vpop.f32.mrf.mxu0
      %v2552 = vadd.f32 0.0, %v2551
      %2553 = vmatmul.f32.gmra.mxu0 %v2447
      %v2554 = vpop.f32.mrf.mxu0
      %v2555 = vadd.f32 0.0, %v2554
      %2556 = vmatmul.f32.gmra.mxu0 %v2449
      %v2557 = vpop.f32.mrf.mxu0
      %v2558 = vadd.f32 0.0, %v2557
      %2559 = vmatmul.f32.gmra.mxu0 %v2451
      %v2560 = vpop.f32.mrf.mxu0
      %v2561 = vadd.f32 0.0, %v2560
      %2562 = vmatmul.f32.gmra.mxu0 %v2453
      %v2563 = vpop.f32.mrf.mxu0
      %v2564 = vadd.f32 0.0, %v2563
      %2565 = vmatmul.f32.gmra.mxu0 %v2455
      %v2566 = vpop.f32.mrf.mxu0
      %v2567 = vadd.f32 0.0, %v2566
      %2568 = vmatmul.f32.gmra.mxu0 %v2457
      %v2569 = vpop.f32.mrf.mxu0
      %v2570 = vadd.f32 0.0, %v2569
      %2571 = vmatmul.f32.gmra.mxu0 %v2459
      %v2572 = vpop.f32.mrf.mxu0
      %v2573 = vadd.f32 0.0, %v2572
      %2574 = vmatmul.f32.gmra.mxu0 %v2461
      %v2575 = vpop.f32.mrf.mxu0
      %v2576 = vadd.f32 0.0, %v2575
      %2577 = vmatmul.f32.gmra.mxu0 %v2463
      %v2578 = vpop.f32.mrf.mxu0
      %v2579 = vadd.f32 0.0, %v2578
      %2580 = vdwg.mxu0
      %v2581 = vadd.f32 %v2271, %v2486
      %v2582 = vadd.f32 %v2272, %v2489
      %v2583 = vadd.f32 %v2273, %v2492
      %v2584 = vadd.f32 %v2274, %v2495
      %v2585 = vadd.f32 %v2275, %v2498
      %v2586 = vadd.f32 %v2276, %v2501
      %v2587 = vadd.f32 %v2277, %v2504
      %v2588 = vadd.f32 %v2278, %v2507
      %v2589 = vadd.f32 %v2279, %v2510
      %v2590 = vadd.f32 %v2280, %v2513
      %v2591 = vadd.f32 %v2281, %v2516
      %v2592 = vadd.f32 %v2282, %v2519
      %v2593 = vadd.f32 %v2283, %v2522
      %v2594 = vadd.f32 %v2284, %v2525
      %v2595 = vadd.f32 %v2285, %v2528
      %v2596 = vadd.f32 %v2286, %v2531
      %v2597 = vadd.f32 %v2287, %v2534
      %v2598 = vadd.f32 %v2288, %v2537
      %v2599 = vadd.f32 %v2289, %v2540
      %v2600 = vadd.f32 %v2290, %v2543
      %v2601 = vadd.f32 %v2291, %v2546
      %v2602 = vadd.f32 %v2292, %v2549
      %v2603 = vadd.f32 %v2293, %v2552
      %v2604 = vadd.f32 %v2294, %v2555
      %v2605 = vadd.f32 %v2295, %v2558
      %v2606 = vadd.f32 %v2296, %v2561
      %v2607 = vadd.f32 %v2297, %v2564
      %v2608 = vadd.f32 %v2298, %v2567
      %v2609 = vadd.f32 %v2299, %v2570
      %v2610 = vadd.f32 %v2300, %v2573
      %v2611 = vadd.f32 %v2301, %v2576
      %v2612 = vadd.f32 %v2302, %v2579
      %v2613 = vrot.slane %v2009, 2
      %v2614 = vrot.slane %v2010, 2
      %v2615 = vsel %vm810, %v2613, %v2614
      %v2616 = vrot.slane %v2011, 2
      %v2617 = vsel %vm810, %v2614, %v2616
      %v2618 = vrot.slane %v2012, 2
      %v2619 = vrot.slane %v2013, 2
      %v2620 = vsel %vm810, %v2618, %v2619
      %v2621 = vrot.slane %v2014, 2
      %v2622 = vsel %vm810, %v2619, %v2621
      %v2623 = vrot.slane %v2015, 2
      %v2624 = vrot.slane %v2016, 2
      %v2625 = vsel %vm810, %v2623, %v2624
      %v2626 = vrot.slane %v2017, 2
      %v2627 = vsel %vm810, %v2624, %v2626
      %v2628 = vrot.slane %v2018, 2
      %v2629 = vrot.slane %v2019, 2
      %v2630 = vsel %vm810, %v2628, %v2629
      %v2631 = vrot.slane %v2020, 2
      %v2632 = vsel %vm810, %v2629, %v2631
      %v2633 = vrot.slane %v2021, 2
      %v2634 = vrot.slane %v2022, 2
      %v2635 = vsel %vm810, %v2633, %v2634
      %v2636 = vrot.slane %v2023, 2
      %v2637 = vsel %vm810, %v2634, %v2636
      %v2638 = vrot.slane %v2024, 2
      %v2639 = vrot.slane %v2025, 2
      %v2640 = vsel %vm810, %v2638, %v2639
      %v2641 = vrot.slane %v2026, 2
      %v2642 = vsel %vm810, %v2639, %v2641
      %v2643 = vrot.slane %v2027, 2
      %v2644 = vrot.slane %v2028, 2
      %v2645 = vsel %vm810, %v2643, %v2644
      %v2646 = vrot.slane %v2029, 2
      %v2647 = vsel %vm810, %v2644, %v2646
      %v2648 = vrot.slane %v2030, 2
      %v2649 = vrot.slane %v2031, 2
      %v2650 = vsel %vm810, %v2648, %v2649
      %v2651 = vrot.slane %v2032, 2
      %v2652 = vsel %vm810, %v2649, %v2651
      %v2653 = vrot.slane %v2033, 2
      %v2654 = vrot.slane %v2034, 2
      %v2655 = vsel %vm810, %v2653, %v2654
      %v2656 = vrot.slane %v2035, 2
      %v2657 = vsel %vm810, %v2654, %v2656
      %v2658 = vrot.slane %v2036, 2
      %v2659 = vrot.slane %v2037, 2
      %v2660 = vsel %vm810, %v2658, %v2659
      %v2661 = vrot.slane %v2038, 2
      %v2662 = vsel %vm810, %v2659, %v2661
      %v2663 = vrot.slane %v2039, 2
      %v2664 = vrot.slane %v2040, 2
      %v2665 = vsel %vm810, %v2663, %v2664
      %v2666 = vrot.slane %v2041, 2
      %v2667 = vsel %vm810, %v2664, %v2666
      %v2668 = vrot.slane %v2042, 2
      %v2669 = vrot.slane %v2043, 2
      %v2670 = vsel %vm810, %v2668, %v2669
      %v2671 = vrot.slane %v2044, 2
      %v2672 = vsel %vm810, %v2669, %v2671
      %v2673 = vrot.slane %v2045, 2
      %v2674 = vrot.slane %v2046, 2
      %v2675 = vsel %vm810, %v2673, %v2674
      %v2676 = vrot.slane %v2047, 2
      %v2677 = vsel %vm810, %v2674, %v2676
      %v2678 = vrot.slane %v2048, 2
      %v2679 = vrot.slane %v2049, 2
      %v2680 = vsel %vm810, %v2678, %v2679
      %v2681 = vrot.slane %v2050, 2
      %v2682 = vsel %vm810, %v2679, %v2681
      %v2683 = vrot.slane %v2051, 2
      %v2684 = vrot.slane %v2052, 2
      %v2685 = vsel %vm810, %v2683, %v2684
      %v2686 = vrot.slane %v2053, 2
      %v2687 = vsel %vm810, %v2684, %v2686
      %v2688 = vrot.slane %v2054, 2
      %v2689 = vrot.slane %v2055, 2
      %v2690 = vsel %vm810, %v2688, %v2689
      %v2691 = vrot.slane %v2056, 2
      %v2692 = vsel %vm810, %v2689, %v2691
      %s2693 = scalar_lea.vmem %s1, 32
      %v2694 = vld [vmem:[%s2693] sm:$0xf]
      %v2695 = vsel %vm448, %v2615, 0
      %v2697 = vsel %vm448, %v2617, 0
      %v2699 = vsel %vm448, %v2620, 0
      %v2701 = vsel %vm448, %v2622, 0
      %v2703 = vsel %vm448, %v2625, 0
      %v2705 = vsel %vm448, %v2627, 0
      %v2707 = vsel %vm448, %v2630, 0
      %v2709 = vsel %vm448, %v2632, 0
      %v2711 = vsel %vm448, %v2635, 0
      %v2713 = vsel %vm448, %v2637, 0
      %v2715 = vsel %vm448, %v2640, 0
      %v2717 = vsel %vm448, %v2642, 0
      %v2719 = vsel %vm448, %v2645, 0
      %v2721 = vsel %vm448, %v2647, 0
      %v2723 = vsel %vm448, %v2650, 0
      %v2725 = vsel %vm448, %v2652, 0
      %v2727 = vsel %vm448, %v2655, 0
      %v2729 = vsel %vm448, %v2657, 0
      %v2731 = vsel %vm448, %v2660, 0
      %v2733 = vsel %vm448, %v2662, 0
      %v2735 = vsel %vm448, %v2665, 0
      %v2737 = vsel %vm448, %v2667, 0
      %v2739 = vsel %vm448, %v2670, 0
      %v2741 = vsel %vm448, %v2672, 0
      %v2743 = vsel %vm448, %v2675, 0
      %v2745 = vsel %vm448, %v2677, 0
      %v2747 = vsel %vm448, %v2680, 0
      %v2749 = vsel %vm448, %v2682, 0
      %v2751 = vsel %vm448, %v2685, 0
      %v2753 = vsel %vm448, %v2687, 0
      %v2755 = vsel %vm448, %v2690, 0
      %v2757 = vsel %vm448, %v2692, 0
      %v2760 = vsel %vm513, %v2694, 0
      %2762 = vmatpush.msra.mxu0 0.0
      %2763 = vmatpush.msra.mxu0 0.0
      %2764 = vmatpush.msra.mxu0 0.0
      %2765 = vmatpush.msra.mxu0 0.0
      %2766 = vmatpush.msra.mxu0 0.0
      %2767 = vmatpush.msra.mxu0 0.0
      %2768 = vmatpush.msra.mxu0 0.0
      %2769 = vmatpush.msra.mxu0 0.0
      %2770 = vmatpush.msra.mxu0 0.0
      %2771 = vmatpush.msra.mxu0 0.0
      %2772 = vmatpush.msra.mxu0 0.0
      %2773 = vmatpush.msra.mxu0 0.0
      %2774 = vmatpush.msra.mxu0 0.0
      %2775 = vmatpush.msra.mxu0 0.0
      %2776 = vmatpush.msra.mxu0 0.0
      %2777 = vmatpush.msra.mxu0 %v2760
      %2778 = vmatmul.f32.gmra.mxu0 %v2695
      %v2779 = vpop.f32.mrf.mxu0
      %v2780 = vadd.f32 0.0, %v2779
      %2781 = vmatmul.f32.gmra.mxu0 %v2697
      %v2782 = vpop.f32.mrf.mxu0
      %v2783 = vadd.f32 0.0, %v2782
      %2784 = vmatmul.f32.gmra.mxu0 %v2699
      %v2785 = vpop.f32.mrf.mxu0
      %v2786 = vadd.f32 0.0, %v2785
      %2787 = vmatmul.f32.gmra.mxu0 %v2701
      %v2788 = vpop.f32.mrf.mxu0
      %v2789 = vadd.f32 0.0, %v2788
      %2790 = vmatmul.f32.gmra.mxu0 %v2703
      %v2791 = vpop.f32.mrf.mxu0
      %v2792 = vadd.f32 0.0, %v2791
      %2793 = vmatmul.f32.gmra.mxu0 %v2705
      %v2794 = vpop.f32.mrf.mxu0
      %v2795 = vadd.f32 0.0, %v2794
      %2796 = vmatmul.f32.gmra.mxu0 %v2707
      %v2797 = vpop.f32.mrf.mxu0
      %v2798 = vadd.f32 0.0, %v2797
      %2799 = vmatmul.f32.gmra.mxu0 %v2709
      %v2800 = vpop.f32.mrf.mxu0
      %v2801 = vadd.f32 0.0, %v2800
      %2802 = vmatmul.f32.gmra.mxu0 %v2711
      %v2803 = vpop.f32.mrf.mxu0
      %v2804 = vadd.f32 0.0, %v2803
      %2805 = vmatmul.f32.gmra.mxu0 %v2713
      %v2806 = vpop.f32.mrf.mxu0
      %v2807 = vadd.f32 0.0, %v2806
      %2808 = vmatmul.f32.gmra.mxu0 %v2715
      %v2809 = vpop.f32.mrf.mxu0
      %v2810 = vadd.f32 0.0, %v2809
      %2811 = vmatmul.f32.gmra.mxu0 %v2717
      %v2812 = vpop.f32.mrf.mxu0
      %v2813 = vadd.f32 0.0, %v2812
      %2814 = vmatmul.f32.gmra.mxu0 %v2719
      %v2815 = vpop.f32.mrf.mxu0
      %v2816 = vadd.f32 0.0, %v2815
      %2817 = vmatmul.f32.gmra.mxu0 %v2721
      %v2818 = vpop.f32.mrf.mxu0
      %v2819 = vadd.f32 0.0, %v2818
      %2820 = vmatmul.f32.gmra.mxu0 %v2723
      %v2821 = vpop.f32.mrf.mxu0
      %v2822 = vadd.f32 0.0, %v2821
      %2823 = vmatmul.f32.gmra.mxu0 %v2725
      %v2824 = vpop.f32.mrf.mxu0
      %v2825 = vadd.f32 0.0, %v2824
      %2826 = vmatmul.f32.gmra.mxu0 %v2727
      %v2827 = vpop.f32.mrf.mxu0
      %v2828 = vadd.f32 0.0, %v2827
      %2829 = vmatmul.f32.gmra.mxu0 %v2729
      %v2830 = vpop.f32.mrf.mxu0
      %v2831 = vadd.f32 0.0, %v2830
      %2832 = vmatmul.f32.gmra.mxu0 %v2731
      %v2833 = vpop.f32.mrf.mxu0
      %v2834 = vadd.f32 0.0, %v2833
      %2835 = vmatmul.f32.gmra.mxu0 %v2733
      %v2836 = vpop.f32.mrf.mxu0
      %v2837 = vadd.f32 0.0, %v2836
      %2838 = vmatmul.f32.gmra.mxu0 %v2735
      %v2839 = vpop.f32.mrf.mxu0
      %v2840 = vadd.f32 0.0, %v2839
      %2841 = vmatmul.f32.gmra.mxu0 %v2737
      %v2842 = vpop.f32.mrf.mxu0
      %v2843 = vadd.f32 0.0, %v2842
      %2844 = vmatmul.f32.gmra.mxu0 %v2739
      %v2845 = vpop.f32.mrf.mxu0
      %v2846 = vadd.f32 0.0, %v2845
      %2847 = vmatmul.f32.gmra.mxu0 %v2741
      %v2848 = vpop.f32.mrf.mxu0
      %v2849 = vadd.f32 0.0, %v2848
      %2850 = vmatmul.f32.gmra.mxu0 %v2743
      %v2851 = vpop.f32.mrf.mxu0
      %v2852 = vadd.f32 0.0, %v2851
      %2853 = vmatmul.f32.gmra.mxu0 %v2745
      %v2854 = vpop.f32.mrf.mxu0
      %v2855 = vadd.f32 0.0, %v2854
      %2856 = vmatmul.f32.gmra.mxu0 %v2747
      %v2857 = vpop.f32.mrf.mxu0
      %v2858 = vadd.f32 0.0, %v2857
      %2859 = vmatmul.f32.gmra.mxu0 %v2749
      %v2860 = vpop.f32.mrf.mxu0
      %v2861 = vadd.f32 0.0, %v2860
      %2862 = vmatmul.f32.gmra.mxu0 %v2751
      %v2863 = vpop.f32.mrf.mxu0
      %v2864 = vadd.f32 0.0, %v2863
      %2865 = vmatmul.f32.gmra.mxu0 %v2753
      %v2866 = vpop.f32.mrf.mxu0
      %v2867 = vadd.f32 0.0, %v2866
      %2868 = vmatmul.f32.gmra.mxu0 %v2755
      %v2869 = vpop.f32.mrf.mxu0
      %v2870 = vadd.f32 0.0, %v2869
      %2871 = vmatmul.f32.gmra.mxu0 %v2757
      %v2872 = vpop.f32.mrf.mxu0
      %v2873 = vadd.f32 0.0, %v2872
      %2874 = vdwg.mxu0
      %v2875 = vadd.f32 %v2581, %v2780
      %v2876 = vadd.f32 %v2582, %v2783
      %v2877 = vadd.f32 %v2583, %v2786
      %v2878 = vadd.f32 %v2584, %v2789
      %v2879 = vadd.f32 %v2585, %v2792
      %v2880 = vadd.f32 %v2586, %v2795
      %v2881 = vadd.f32 %v2587, %v2798
      %v2882 = vadd.f32 %v2588, %v2801
      %v2883 = vadd.f32 %v2589, %v2804
      %v2884 = vadd.f32 %v2590, %v2807
      %v2885 = vadd.f32 %v2591, %v2810
      %v2886 = vadd.f32 %v2592, %v2813
      %v2887 = vadd.f32 %v2593, %v2816
      %v2888 = vadd.f32 %v2594, %v2819
      %v2889 = vadd.f32 %v2595, %v2822
      %v2890 = vadd.f32 %v2596, %v2825
      %v2891 = vadd.f32 %v2597, %v2828
      %v2892 = vadd.f32 %v2598, %v2831
      %v2893 = vadd.f32 %v2599, %v2834
      %v2894 = vadd.f32 %v2600, %v2837
      %v2895 = vadd.f32 %v2601, %v2840
      %v2896 = vadd.f32 %v2602, %v2843
      %v2897 = vadd.f32 %v2603, %v2846
      %v2898 = vadd.f32 %v2604, %v2849
      %v2899 = vadd.f32 %v2605, %v2852
      %v2900 = vadd.f32 %v2606, %v2855
      %v2901 = vadd.f32 %v2607, %v2858
      %v2902 = vadd.f32 %v2608, %v2861
      %v2903 = vadd.f32 %v2609, %v2864
      %v2904 = vadd.f32 %v2610, %v2867
      %v2905 = vadd.f32 %v2611, %v2870
      %v2906 = vadd.f32 %v2612, %v2873
      %v2907 = vld [vmem:[%s2] sm:$0x1]
      %v2909 = vperm.slane %v2907, 0
      %v2911 = vadd.f32 %v2875, %v2909
      %v2912 = vadd.f32 %v2876, %v2909
      %v2913 = vadd.f32 %v2877, %v2909
      %v2914 = vadd.f32 %v2878, %v2909
      %v2915 = vadd.f32 %v2879, %v2909
      %v2916 = vadd.f32 %v2880, %v2909
      %v2917 = vadd.f32 %v2881, %v2909
      %v2918 = vadd.f32 %v2882, %v2909
      %v2919 = vadd.f32 %v2883, %v2909
      %v2920 = vadd.f32 %v2884, %v2909
      %v2921 = vadd.f32 %v2885, %v2909
      %v2922 = vadd.f32 %v2886, %v2909
      %v2923 = vadd.f32 %v2887, %v2909
      %v2924 = vadd.f32 %v2888, %v2909
      %v2925 = vadd.f32 %v2889, %v2909
      %v2926 = vadd.f32 %v2890, %v2909
      %v2927 = vadd.f32 %v2891, %v2909
      %v2928 = vadd.f32 %v2892, %v2909
      %v2929 = vadd.f32 %v2893, %v2909
      %v2930 = vadd.f32 %v2894, %v2909
      %v2931 = vadd.f32 %v2895, %v2909
      %v2932 = vadd.f32 %v2896, %v2909
      %v2933 = vadd.f32 %v2897, %v2909
      %v2934 = vadd.f32 %v2898, %v2909
      %v2935 = vadd.f32 %v2899, %v2909
      %v2936 = vadd.f32 %v2900, %v2909
      %v2937 = vadd.f32 %v2901, %v2909
      %v2938 = vadd.f32 %v2902, %v2909
      %v2939 = vadd.f32 %v2903, %v2909
      %v2940 = vadd.f32 %v2904, %v2909
      %v2941 = vadd.f32 %v2905, %v2909
      %v2942 = vadd.f32 %v2906, %v2909
      %v2943 = vmax.f32 %v2911, 0.0
      %v2944 = vmax.f32 %v2912, 0.0
      %v2945 = vmax.f32 %v2913, 0.0
      %v2946 = vmax.f32 %v2914, 0.0
      %v2947 = vmax.f32 %v2915, 0.0
      %v2948 = vmax.f32 %v2916, 0.0
      %v2949 = vmax.f32 %v2917, 0.0
      %v2950 = vmax.f32 %v2918, 0.0
      %v2951 = vmax.f32 %v2919, 0.0
      %v2952 = vmax.f32 %v2920, 0.0
      %v2953 = vmax.f32 %v2921, 0.0
      %v2954 = vmax.f32 %v2922, 0.0
      %v2955 = vmax.f32 %v2923, 0.0
      %v2956 = vmax.f32 %v2924, 0.0
      %v2957 = vmax.f32 %v2925, 0.0
      %v2958 = vmax.f32 %v2926, 0.0
      %v2959 = vmax.f32 %v2927, 0.0
      %v2960 = vmax.f32 %v2928, 0.0
      %v2961 = vmax.f32 %v2929, 0.0
      %v2962 = vmax.f32 %v2930, 0.0
      %v2963 = vmax.f32 %v2931, 0.0
      %v2964 = vmax.f32 %v2932, 0.0
      %v2965 = vmax.f32 %v2933, 0.0
      %v2966 = vmax.f32 %v2934, 0.0
      %v2967 = vmax.f32 %v2935, 0.0
      %v2968 = vmax.f32 %v2936, 0.0
      %v2969 = vmax.f32 %v2937, 0.0
      %v2970 = vmax.f32 %v2938, 0.0
      %v2971 = vmax.f32 %v2939, 0.0
      %v2972 = vmax.f32 %v2940, 0.0
      %v2973 = vmax.f32 %v2941, 0.0
      %v2974 = vmax.f32 %v2942, 0.0
      %p2975 = scmp.eq.s32.totalorder %s22, 0
      // Predicated region
      $region33: #{conv2d_relu_bn.2} parent=31 // pred_check
        %p2976 = pneg %p2975
      $region34: #{conv2d_relu_bn.2} parent=31 // pred_check_branch
        %2978 = sbr.rel (%p2976) target = $region36
      $region35: #{conv2d_relu_bn.2} parent=31 // pred_region
        %vm2979 = vcmask 57344
        %2980 = vst.msk [vmem:[%s261] sm:$0x1] %vm2979, 0.0
        %2981 = vst.msk [vmem:[%s264] sm:$0x1] %vm2979, 0.0
      $region36: #{conv2d_relu_bn.2} parent=31 // pred_fallthru
        _
      %v2982 = vld [vmem:[%s261] sm:$0x1]
      %vm2983 = vcmask 64512
      %v2984 = vsel %vm2983, %v2943, 0.0
      %v2985 = vsel %vm2983, %v2944, 0.0
      %v2986 = vadd.f32 %v2984, %v2985
      %v2987 = vsel %vm2983, %v2945, 0.0
      %v2988 = vadd.f32 %v2986, %v2987
      %v2989 = vsel %vm2983, %v2946, 0.0
      %v2990 = vadd.f32 %v2988, %v2989
      %v2991 = vsel %vm2983, %v2947, 0.0
      %v2992 = vadd.f32 %v2990, %v2991
      %v2993 = vsel %vm2983, %v2948, 0.0
      %v2994 = vadd.f32 %v2992, %v2993
      %v2995 = vsel %vm2983, %v2949, 0.0
      %v2996 = vadd.f32 %v2994, %v2995
      %v2997 = vsel %vm2983, %v2950, 0.0
      %v2998 = vadd.f32 %v2996, %v2997
      %v2999 = vsel %vm2983, %v2951, 0.0
      %v3000 = vadd.f32 %v2998, %v2999
      %v3001 = vsel %vm2983, %v2952, 0.0
      %v3002 = vadd.f32 %v3000, %v3001
      %v3003 = vsel %vm2983, %v2953, 0.0
      %v3004 = vadd.f32 %v3002, %v3003
      %v3005 = vsel %vm2983, %v2954, 0.0
      %v3006 = vadd.f32 %v3004, %v3005
      %v3007 = vsel %vm2983, %v2955, 0.0
      %v3008 = vadd.f32 %v3006, %v3007
      %v3009 = vsel %vm2983, %v2956, 0.0
      %v3010 = vadd.f32 %v3008, %v3009
      %v3011 = vsel %vm2983, %v2957, 0.0
      %v3012 = vadd.f32 %v3010, %v3011
      %v3013 = vsel %vm2983, %v2958, 0.0
      %v3014 = vadd.f32 %v3012, %v3013
      %v3015 = vsel %vm2983, %v2959, 0.0
      %v3016 = vadd.f32 %v3014, %v3015
      %v3017 = vsel %vm2983, %v2960, 0.0
      %v3018 = vadd.f32 %v3016, %v3017
      %v3019 = vsel %vm2983, %v2961, 0.0
      %v3020 = vadd.f32 %v3018, %v3019
      %v3021 = vsel %vm2983, %v2962, 0.0
      %v3022 = vadd.f32 %v3020, %v3021
      %v3023 = vsel %vm2983, %v2963, 0.0
      %v3024 = vadd.f32 %v3022, %v3023
      %v3025 = vsel %vm2983, %v2964, 0.0
      %v3026 = vadd.f32 %v3024, %v3025
      %v3027 = vsel %vm2983, %v2965, 0.0
      %v3028 = vadd.f32 %v3026, %v3027
      %v3029 = vsel %vm2983, %v2966, 0.0
      %v3030 = vadd.f32 %v3028, %v3029
      %v3031 = vsel %vm2983, %v2967, 0.0
      %v3032 = vadd.f32 %v3030, %v3031
      %v3033 = vsel %vm2983, %v2968, 0.0
      %v3034 = vadd.f32 %v3032, %v3033
      %v3035 = vsel %vm2983, %v2969, 0.0
      %v3036 = vadd.f32 %v3034, %v3035
      %v3037 = vsel %vm2983, %v2970, 0.0
      %v3038 = vadd.f32 %v3036, %v3037
      %v3039 = vsel %vm2983, %v2971, 0.0
      %v3040 = vadd.f32 %v3038, %v3039
      %v3041 = vsel %vm2983, %v2972, 0.0
      %v3042 = vadd.f32 %v3040, %v3041
      %v3043 = vsel %vm2983, %v2973, 0.0
      %v3044 = vadd.f32 %v3042, %v3043
      %v3045 = vsel %vm2983, %v2974, 0.0
      %v3046 = vadd.f32 %v3044, %v3045
      %v3047 = vrot.slane %v3046, 4
      %v3048 = vadd.f32 %v3046, %v3047
      %v3049 = vrot.slane %v3048, 2
      %v3050 = vadd.f32 %v3048, %v3049
      %v3051 = vrot.slane %v3050, 1
      %v3052 = vadd.f32 %v3050, %v3051
      %v3053 = vadd.f32 %v2982, %v3052
      %vm3054 = vcmask 57344
      %3055 = vst.msk [vmem:[%s261] sm:$0x1] %vm3054, %v3053
      %v3056 = vld [vmem:[%s264] sm:$0x1]
      %v3057 = vmul.f32 %v2943, %v2943
      %v3058 = vmul.f32 %v2944, %v2944
      %v3059 = vmul.f32 %v2945, %v2945
      %v3060 = vmul.f32 %v2946, %v2946
      %v3061 = vmul.f32 %v2947, %v2947
      %v3062 = vmul.f32 %v2948, %v2948
      %v3063 = vmul.f32 %v2949, %v2949
      %v3064 = vmul.f32 %v2950, %v2950
      %v3065 = vmul.f32 %v2951, %v2951
      %v3066 = vmul.f32 %v2952, %v2952
      %v3067 = vmul.f32 %v2953, %v2953
      %v3068 = vmul.f32 %v2954, %v2954
      %v3069 = vmul.f32 %v2955, %v2955
      %v3070 = vmul.f32 %v2956, %v2956
      %v3071 = vmul.f32 %v2957, %v2957
      %v3072 = vmul.f32 %v2958, %v2958
      %v3073 = vmul.f32 %v2959, %v2959
      %v3074 = vmul.f32 %v2960, %v2960
      %v3075 = vmul.f32 %v2961, %v2961
      %v3076 = vmul.f32 %v2962, %v2962
      %v3077 = vmul.f32 %v2963, %v2963
      %v3078 = vmul.f32 %v2964, %v2964
      %v3079 = vmul.f32 %v2965, %v2965
      %v3080 = vmul.f32 %v2966, %v2966
      %v3081 = vmul.f32 %v2967, %v2967
      %v3082 = vmul.f32 %v2968, %v2968
      %v3083 = vmul.f32 %v2969, %v2969
      %v3084 = vmul.f32 %v2970, %v2970
      %v3085 = vmul.f32 %v2971, %v2971
      %v3086 = vmul.f32 %v2972, %v2972
      %v3087 = vmul.f32 %v2973, %v2973
      %v3088 = vmul.f32 %v2974, %v2974
      %v3089 = vsel %vm2983, %v3057, 0.0
      %v3090 = vsel %vm2983, %v3058, 0.0
      %v3091 = vadd.f32 %v3089, %v3090
      %v3092 = vsel %vm2983, %v3059, 0.0
      %v3093 = vadd.f32 %v3091, %v3092
      %v3094 = vsel %vm2983, %v3060, 0.0
      %v3095 = vadd.f32 %v3093, %v3094
      %v3096 = vsel %vm2983, %v3061, 0.0
      %v3097 = vadd.f32 %v3095, %v3096
      %v3098 = vsel %vm2983, %v3062, 0.0
      %v3099 = vadd.f32 %v3097, %v3098
      %v3100 = vsel %vm2983, %v3063, 0.0
      %v3101 = vadd.f32 %v3099, %v3100
      %v3102 = vsel %vm2983, %v3064, 0.0
      %v3103 = vadd.f32 %v3101, %v3102
      %v3104 = vsel %vm2983, %v3065, 0.0
      %v3105 = vadd.f32 %v3103, %v3104
      %v3106 = vsel %vm2983, %v3066, 0.0
      %v3107 = vadd.f32 %v3105, %v3106
      %v3108 = vsel %vm2983, %v3067, 0.0
      %v3109 = vadd.f32 %v3107, %v3108
      %v3110 = vsel %vm2983, %v3068, 0.0
      %v3111 = vadd.f32 %v3109, %v3110
      %v3112 = vsel %vm2983, %v3069, 0.0
      %v3113 = vadd.f32 %v3111, %v3112
      %v3114 = vsel %vm2983, %v3070, 0.0
      %v3115 = vadd.f32 %v3113, %v3114
      %v3116 = vsel %vm2983, %v3071, 0.0
      %v3117 = vadd.f32 %v3115, %v3116
      %v3118 = vsel %vm2983, %v3072, 0.0
      %v3119 = vadd.f32 %v3117, %v3118
      %v3120 = vsel %vm2983, %v3073, 0.0
      %v3121 = vadd.f32 %v3119, %v3120
      %v3122 = vsel %vm2983, %v3074, 0.0
      %v3123 = vadd.f32 %v3121, %v3122
      %v3124 = vsel %vm2983, %v3075, 0.0
      %v3125 = vadd.f32 %v3123, %v3124
      %v3126 = vsel %vm2983, %v3076, 0.0
      %v3127 = vadd.f32 %v3125, %v3126
      %v3128 = vsel %vm2983, %v3077, 0.0
      %v3129 = vadd.f32 %v3127, %v3128
      %v3130 = vsel %vm2983, %v3078, 0.0
      %v3131 = vadd.f32 %v3129, %v3130
      %v3132 = vsel %vm2983, %v3079, 0.0
      %v3133 = vadd.f32 %v3131, %v3132
      %v3134 = vsel %vm2983, %v3080, 0.0
      %v3135 = vadd.f32 %v3133, %v3134
      %v3136 = vsel %vm2983, %v3081, 0.0
      %v3137 = vadd.f32 %v3135, %v3136
      %v3138 = vsel %vm2983, %v3082, 0.0
      %v3139 = vadd.f32 %v3137, %v3138
      %v3140 = vsel %vm2983, %v3083, 0.0
      %v3141 = vadd.f32 %v3139, %v3140
      %v3142 = vsel %vm2983, %v3084, 0.0
      %v3143 = vadd.f32 %v3141, %v3142
      %v3144 = vsel %vm2983, %v3085, 0.0
      %v3145 = vadd.f32 %v3143, %v3144
      %v3146 = vsel %vm2983, %v3086, 0.0
      %v3147 = vadd.f32 %v3145, %v3146
      %v3148 = vsel %vm2983, %v3087, 0.0
      %v3149 = vadd.f32 %v3147, %v3148
      %v3150 = vsel %vm2983, %v3088, 0.0
      %v3151 = vadd.f32 %v3149, %v3150
      %v3152 = vrot.slane %v3151, 4
      %v3153 = vadd.f32 %v3151, %v3152
      %v3154 = vrot.slane %v3153, 2
      %v3155 = vadd.f32 %v3153, %v3154
      %v3156 = vrot.slane %v3155, 1
      %v3157 = vadd.f32 %v3155, %v3156
      %v3158 = vadd.f32 %v3056, %v3157
      %3159 = vst.msk [vmem:[%s264] sm:$0x1] %vm3054, %v3158
      %3160 = vst.msk [vmem:[%s257] sm:$0xff] %vm2983, %v2943
      %3161 = vst.msk [vmem:[%s257 + $0x8] sm:$0xff] %vm2983, %v2944
      %3162 = vst.msk [vmem:[%s257 + $0x10] sm:$0xff] %vm2983, %v2945
      %3163 = vst.msk [vmem:[%s257 + $0x18] sm:$0xff] %vm2983, %v2946
      %3164 = vst.msk [vmem:[%s257 + $0x20] sm:$0xff] %vm2983, %v2947
      %3165 = vst.msk [vmem:[%s257 + $0x28] sm:$0xff] %vm2983, %v2948
      %3166 = vst.msk [vmem:[%s257 + $0x30] sm:$0xff] %vm2983, %v2949
      %3167 = vst.msk [vmem:[%s257 + $0x38] sm:$0xff] %vm2983, %v2950
      %3168 = vst.msk [vmem:[%s257 + $0x40] sm:$0xff] %vm2983, %v2951
      %3169 = vst.msk [vmem:[%s257 + $0x48] sm:$0xff] %vm2983, %v2952
      %3170 = vst.msk [vmem:[%s257 + $0x50] sm:$0xff] %vm2983, %v2953
      %3171 = vst.msk [vmem:[%s257 + $0x58] sm:$0xff] %vm2983, %v2954
      %3172 = vst.msk [vmem:[%s257 + $0x60] sm:$0xff] %vm2983, %v2955
      %3173 = vst.msk [vmem:[%s257 + $0x68] sm:$0xff] %vm2983, %v2956
      %3174 = vst.msk [vmem:[%s257 + $0x70] sm:$0xff] %vm2983, %v2957
      %3175 = vst.msk [vmem:[%s257 + $0x78] sm:$0xff] %vm2983, %v2958
      %3176 = vst.msk [vmem:[%s257 + $0x80] sm:$0xff] %vm2983, %v2959
      %3177 = vst.msk [vmem:[%s257 + $0x88] sm:$0xff] %vm2983, %v2960
      %3178 = vst.msk [vmem:[%s257 + $0x90] sm:$0xff] %vm2983, %v2961
      %3179 = vst.msk [vmem:[%s257 + $0x98] sm:$0xff] %vm2983, %v2962
      %3180 = vst.msk [vmem:[%s257 + $0xa0] sm:$0xff] %vm2983, %v2963
      %3181 = vst.msk [vmem:[%s257 + $0xa8] sm:$0xff] %vm2983, %v2964
      %3182 = vst.msk [vmem:[%s257 + $0xb0] sm:$0xff] %vm2983, %v2965
      %3183 = vst.msk [vmem:[%s257 + $0xb8] sm:$0xff] %vm2983, %v2966
      %3184 = vst.msk [vmem:[%s257 + $0xc0] sm:$0xff] %vm2983, %v2967
      %3185 = vst.msk [vmem:[%s257 + $0xc8] sm:$0xff] %vm2983, %v2968
      %3186 = vst.msk [vmem:[%s257 + $0xd0] sm:$0xff] %vm2983, %v2969
      %3187 = vst.msk [vmem:[%s257 + $0xd8] sm:$0xff] %vm2983, %v2970
      %3188 = vst.msk [vmem:[%s257 + $0xe0] sm:$0xff] %vm2983, %v2971
      %3189 = vst.msk [vmem:[%s257 + $0xe8] sm:$0xff] %vm2983, %v2972
      %3190 = vst.msk [vmem:[%s257 + $0xf0] sm:$0xff] %vm2983, %v2973
      %3191 = vst.msk [vmem:[%s257 + $0xf8] sm:$0xff] %vm2983, %v2974
      %s3192 = smul.u32 32, %s22
      %p3193 = scmp.lt.s32.totalorder %s21, 1
      %s3194 = scalar_select %p3193, %s21, 1
      %p3195 = scmp.lt.s32.totalorder %s3192, 31
      %s3196 = scalar_select %p3195, %s3192, 31
      %s3197 = smul.addr %s3194, 32
      %s3198 = sadd.s32 %s3196, %s3197
      %s3199 = smul.addr %s3198, 8
      %s3200 = scalar_lea.vmem %s3, %s3199
      %p3201 = scmp.lt.s32.totalorder %s21, 1
      %s3202 = scalar_select %p3201, %s21, 1
      %s3203 = scalar_lea.vmem %s4, %s3202
      %p3204 = scmp.lt.s32.totalorder %s21, 1
      %s3205 = scalar_select %p3204, %s21, 1
      %s3206 = scalar_lea.vmem %s5, %s3205
      // Predicated region
      $region37: #{conv2d_relu_bn.2} parent=31 // pred_check
        %p3207 = pneg %p117
      $region38: #{conv2d_relu_bn.2} parent=31 // pred_check_branch
        %3209 = sbr.rel (%p3207) target = $region40
      $region39: #{conv2d_relu_bn.2} parent=31 // pred_region
        %s3210 = smul.u32 32, %s22
      $region40: #{conv2d_relu_bn.2} parent=31 // pred_fallthru
        _
      // Predicated region
      $region41: #{conv2d_relu_bn.2} parent=31 // pred_check
        %p3211 = pneg %p143
      $region42: #{conv2d_relu_bn.2} parent=31 // pred_check_branch
        %3213 = sbr.rel (%p3211) target = $region44
      $region43: #{conv2d_relu_bn.2} parent=31 // pred_region
        _
      $region44: #{conv2d_relu_bn.2} parent=31 // pred_fallthru
        _
      // Predicated region
      $region45: #{conv2d_relu_bn.2} parent=31 // pred_check
        %p3214 = pneg %p169
      $region46: #{conv2d_relu_bn.2} parent=31 // pred_check_branch
        %3216 = sbr.rel (%p3214) target = $region48
      $region47: #{conv2d_relu_bn.2} parent=31 // pred_region
        _
      $region48: #{conv2d_relu_bn.2} parent=31 // pred_fallthru
        _
    $region32: #{conv2d_relu_bn.2} parent=5 // pred_fallthru
      _
    %p3217 = scmp.le.s32.totalorder 2, %s12
    // Predicated region
    $region49: #{conv2d_relu_bn.2} parent=5 // pred_check
      %p3218 = pneg %p3217
    $region50: #{conv2d_relu_bn.2} parent=5 // pred_check_branch
      %3220 = sbr.rel (%p3218) target = $region52
    $region51: #{conv2d_relu_bn.2} parent=5 // pred_region
      %s3221 = ssub.s32 %s12, 2
      // Predicated region
      $region53: #{conv2d_relu_bn.2} parent=51 // pred_check
        %p3222 = pneg %p123
      $region54: #{conv2d_relu_bn.2} parent=51 // pred_check_branch
        %3224 = sbr.rel (%p3222) target = $region56
      $region55: #{conv2d_relu_bn.2} parent=51 // pred_region
        %s3225 = smul.u32 32, %s24
        %p3226 = scmp.lt.s32.totalorder %s23, 1
        %s3227 = scalar_select %p3226, %s23, 1
        %p3228 = scmp.lt.s32.totalorder %s3225, 31
        %s3229 = scalar_select %p3228, %s3225, 31
        %s3230 = smul.addr %s3227, 32
        %s3231 = sadd.s32 %s3229, %s3230
        %s3232 = smul.addr %s3231, 8
        %s3233 = scalar_lea.vmem %s3, %s3232
      $region56: #{conv2d_relu_bn.2} parent=51 // pred_fallthru
        _
      // Predicated region
      $region57: #{conv2d_relu_bn.2} parent=51 // pred_check
        %p3234 = pneg %p149
      $region58: #{conv2d_relu_bn.2} parent=51 // pred_check_branch
        %3236 = sbr.rel (%p3234) target = $region60
      $region59: #{conv2d_relu_bn.2} parent=51 // pred_region
        %p3237 = scmp.lt.s32.totalorder %s23, 1
        %s3238 = scalar_select %p3237, %s23, 1
        %s3239 = scalar_lea.vmem %s4, %s3238
      $region60: #{conv2d_relu_bn.2} parent=51 // pred_fallthru
        _
      // Predicated region
      $region61: #{conv2d_relu_bn.2} parent=51 // pred_check
        %p3240 = pneg %p175
      $region62: #{conv2d_relu_bn.2} parent=51 // pred_check_branch
        %3242 = sbr.rel (%p3240) target = $region64
      $region63: #{conv2d_relu_bn.2} parent=51 // pred_region
        %p3243 = scmp.lt.s32.totalorder %s23, 1
        %s3244 = scalar_select %p3243, %s23, 1
        %s3245 = scalar_lea.vmem %s5, %s3244
      $region64: #{conv2d_relu_bn.2} parent=51 // pred_fallthru
        _
    $region52: #{conv2d_relu_bn.2} parent=5 // pred_fallthru
      _
  $region6: #{conv2d_relu_bn.2} parent=0 // loop_footer
    %s16 = sadd.s32 1, %s12
  $region7: #{conv2d_relu_bn.2} parent=0 // loop_footer_branch
    %11 = sbr.rel target = $region3
  $region8: #{conv2d_relu_bn.2} parent=0 // loop_exit
    _

</llo_original>
